<compile_context>
chip_gen: v5e
topology: v5e:2x2
jax: 0.10.0
libtpu: 0.0.40
codegen_flags: <defaults>
</compile_context>

<pallas_src>
import jax
import jax.numpy as jnp
from jax.experimental import pallas as pl
from jax.experimental.pallas import tpu as pltpu

BN_EPS = 1e-5          # nn.BatchNorm2d default eps
LANE = 128             # TPU lane width; output channels padded to this
_DEFAULT_TILE_M = 512  # rows per tile for the M-tiled conv1 kernel


def _round_up(x, m):
    return (x + m - 1) // m * m


def _compiler_params(dimension_semantics, live_block_bytes):
    """vmem_limit sized from double-buffered live blocks + headroom.
    Hard cap 40 MiB keeps it safe on v7x (64 MiB physical VMEM)."""
    limit = int(min(40 << 20, max(16 << 20, 2 * live_block_bytes + (4 << 20))))
    return pltpu.CompilerParams(dimension_semantics=dimension_semantics,
                                vmem_limit_bytes=limit)


# ----------------------------- Pallas kernels -----------------------------

def _conv1_ds_stats_kernel(p_ref, xd_ref, w1_ref, wd_ref,
                           y1_ref, s1_ref, sd_ref):
    """conv1 tile matmul (bf16 operands, f32 accumulate), stored bf16, with
    per-tile per-channel sum / sum-of-squares partials for BN1 AND for the
    1x1 stride-2 downsample conv (its stats matmul is hoisted here, out of
    the per-image conv2 kernel, where the data is already resident)."""
    y1 = jnp.dot(p_ref[...], w1_ref[...], preferred_element_type=jnp.float32)
    y1_ref[...] = y1.astype(y1_ref.dtype)
    s1_ref[...] = jnp.concatenate(
        [jnp.sum(y1, axis=0, keepdims=True),
         jnp.sum(y1 * y1, axis=0, keepdims=True)], axis=0)[None]
    yd = jnp.dot(xd_ref[...], wd_ref[...], preferred_element_type=jnp.float32)
    sd_ref[...] = jnp.concatenate(
        [jnp.sum(yd, axis=0, keepdims=True),
         jnp.sum(yd * yd, axis=0, keepdims=True)], axis=0)[None]


def _conv2_fused_kernel(y1_ref, sc1_ref, bi1_ref, w2_ref,
                        y2_ref, s2_ref, a1p_ref):
    """Whole image per grid step: BN1+ReLU applied in-kernel to the conv1
    output, written into a zero-padded VMEM scratch slab (pad=1), then the
    3x3 stride-1 conv2 is accumulated as 9 MXU matmuls with M = Ho*Wo rows
    each.  Emits y2 (bf16) and one (2, Cp) BN2 stats partial per image."""
    _, ho, wo, cp = y1_ref.shape
    # BN1 + ReLU with the hoisted per-channel scale/bias; emit bf16 for MXU.
    a1 = jnp.maximum(
        y1_ref[0].astype(jnp.float32) * sc1_ref[...] + bi1_ref[...], 0.0
    ).astype(jnp.bfloat16)
    # Padded activation slab lives in VMEM only: no HBM pad round trip and
    # each activation row is read from HBM exactly once (no 3x halo re-read).
    a1p_ref[...] = jnp.zeros_like(a1p_ref)
    a1p_ref[pl.ds(1, ho), pl.ds(1, wo), :] = a1
    # 9 taps as 9 accumulated matmuls over the flattened (Ho*Wo, Cp) slices.
    acc = jnp.zeros((ho * wo, cp), jnp.float32)
    for kh in range(3):
        for kw in range(3):
            tap = a1p_ref[pl.ds(kh, ho), pl.ds(kw, wo), :].reshape(ho * wo, cp)
            acc = acc + jnp.dot(tap, w2_ref[kh * 3 + kw],
                                preferred_element_type=jnp.float32)
    y2_ref[...] = acc[None].astype(y2_ref.dtype)
    s2_ref[...] = jnp.concatenate(
        [jnp.sum(acc, axis=0, keepdims=True),
         jnp.sum(acc * acc, axis=0, keepdims=True)], axis=0)[None]


def _residual_out_kernel(y2_ref, xd_ref, wd_ref, sc2_ref, bi2_ref,
                         scd_ref, bid_ref, o_ref):
    """out = relu(BN2(y2) + BNd(x_ds @ wd)) for a whole image per grid step.
    The K = Cin downsample matmul is recomputed here (bit-identical to the
    stats pass, cheaper than an HBM round trip of its (M, Cp) output)."""
    y2 = y2_ref[0].astype(jnp.float32)                            # (Ho*Wo, Cp)
    yd = jnp.dot(xd_ref[0], wd_ref[...], preferred_element_type=jnp.float32)
    out = jnp.maximum(y2 * sc2_ref[...] + bi2_ref[...]
                      + yd * scd_ref[...] + bid_ref[...], 0.0)
    o_ref[...] = out[None]


# ------------------------------ pallas_call glue ---------------------------

def _conv1_and_ds_stats(p, xd, w1, wd, tile_m):
    mp, k = p.shape
    cin = xd.shape[1]
    cp = w1.shape[1]
    nt = mp // tile_m
    live = (tile_m * (k + cin) * 2 + (k + cin) * cp * 2
            + tile_m * cp * 2 + 4 * cp * 4)
    return pl.pallas_call(
        _conv1_ds_stats_kernel,
        grid=(nt,),
        in_specs=[pl.BlockSpec((tile_m, k), lambda i: (i, 0)),
                  pl.BlockSpec((tile_m, cin), lambda i: (i, 0)),
                  pl.BlockSpec((k, cp), lambda i: (0, 0)),
                  pl.BlockSpec((cin, cp), lambda i: (0, 0))],
        out_specs=[pl.BlockSpec((tile_m, cp), lambda i: (i, 0)),
                   pl.BlockSpec((1, 2, cp), lambda i: (i, 0, 0)),
                   pl.BlockSpec((1, 2, cp), lambda i: (i, 0, 0))],
        out_shape=[jax.ShapeDtypeStruct((mp, cp), jnp.bfloat16),
                   jax.ShapeDtypeStruct((nt, 2, cp), jnp.float32),
                   jax.ShapeDtypeStruct((nt, 2, cp), jnp.float32)],
        compiler_params=_compiler_params(("parallel",), live),
    )(p, xd, w1, wd)


def _conv2_fused(y1_img, sc1, bi1, w2_taps):
    n, ho, wo, cp = y1_img.shape
    hp, wp = ho + 2, wo + 2
    live = (ho * wo * cp * 2 + 9 * cp * cp * 2 + hp * wp * cp * 2
            + ho * wo * cp * (2 + 4) + 2 * cp * 4 + 2 * cp * 4)
    return pl.pallas_call(
        _conv2_fused_kernel,
        grid=(n,),
        in_specs=[pl.BlockSpec((1, ho, wo, cp), lambda i: (i, 0, 0, 0)),
                  pl.BlockSpec((1, cp), lambda i: (0, 0)),
                  pl.BlockSpec((1, cp), lambda i: (0, 0)),
                  pl.BlockSpec((9, cp, cp), lambda i: (0, 0, 0))],
        out_specs=[pl.BlockSpec((1, ho * wo, cp), lambda i: (i, 0, 0)),
                   pl.BlockSpec((1, 2, cp), lambda i: (i, 0, 0))],
        out_shape=[jax.ShapeDtypeStruct((n, ho * wo, cp), jnp.bfloat16),
                   jax.ShapeDtypeStruct((n, 2, cp), jnp.float32)],
        scratch_shapes=[pltpu.VMEM((hp, wp, cp), jnp.bfloat16)],
        compiler_params=_compiler_params(("parallel",), live),
    )(y1_img, sc1, bi1, w2_taps)


def _residual_out(y2, xd_img, wd, sc2, bi2, scd, bid):
    n, m_img, cp = y2.shape
    cin = wd.shape[0]
    live = (m_img * cp * 2 + m_img * cin * 2 + cin * cp * 2
            + m_img * cp * 4 + 4 * cp * 4)
    return pl.pallas_call(
        _residual_out_kernel,
        grid=(n,),
        in_specs=[pl.BlockSpec((1, m_img, cp), lambda i: (i, 0, 0)),
                  pl.BlockSpec((1, m_img, cin), lambda i: (i, 0, 0)),
                  pl.BlockSpec((cin, cp), lambda i: (0, 0)),
                  pl.BlockSpec((1, cp), lambda i: (0, 0)),
                  pl.BlockSpec((1, cp), lambda i: (0, 0)),
                  pl.BlockSpec((1, cp), lambda i: (0, 0)),
                  pl.BlockSpec((1, cp), lambda i: (0, 0))],
        out_specs=pl.BlockSpec((1, m_img, cp), lambda i: (i, 0, 0)),
        out_shape=jax.ShapeDtypeStruct((n, m_img, cp), jnp.float32),
        compiler_params=_compiler_params(("parallel",), live),
    )(y2, xd_img, wd, sc2, bi2, scd, bid)


# ------------------------------ host-side glue ------------------------------

def _im2col(x_nhwc, ksize, stride, pad):
    """[N,H,W,C] -> ([N*Ho*Wo, ksize*ksize*C], Ho, Wo); flat order (kh,kw,C)."""
    N, H, W, C = x_nhwc.shape
    xp = jnp.pad(x_nhwc, ((0, 0), (pad, pad), (pad, pad), (0, 0)))
    Ho = (H + 2 * pad - ksize) // stride + 1
    Wo = (W + 2 * pad - ksize) // stride + 1
    cols = []
    for kh in range(ksize):
        for kw in range(ksize):
            cols.append(xp[:, kh:kh + stride * Ho:stride,
                           kw:kw + stride * Wo:stride, :])
    patches = jnp.stack(cols, axis=-2)                # [N, Ho, Wo, k*k, C]
    return patches.reshape(N * Ho * Wo, ksize * ksize * C), Ho, Wo


def _bn_scale_bias(stats, gamma_p, beta_p, m_rows):
    """Finish global batch stats from per-tile/per-image partials and hoist
    the BN into a per-channel scale/bias pair (a single FMA in-kernel)."""
    s = jnp.sum(stats.reshape(-1, 2, stats.shape[-1]), axis=0)   # (2, Cp)
    mean = s[0] / m_rows
    var = jnp.maximum(s[1] / m_rows - mean * mean, 0.0)          # biased var
    scale = gamma_p * jax.lax.rsqrt(var + BN_EPS)
    bias = beta_p - mean * scale
    return scale.reshape(1, -1), bias.reshape(1, -1)


# ------------------------------ forward pass -------------------------------

def down_block_forward(x_nchw, params, *, tile_m=_DEFAULT_TILE_M):
    """Equivalent of down_block.forward (training-mode BatchNorm, down_stride=2)."""
    x = jnp.transpose(x_nchw, (0, 2, 3, 1)).astype(jnp.float32)   # NHWC
    N, H, W, Cin = x.shape
    Cout = params["g1"].shape[0]
    Cp = _round_up(Cout, LANE)       # lane-dense channel dim inside all kernels
    xb = x.astype(jnp.bfloat16)      # bf16 matmul operands, f32 accumulation

    # zero-pad weights / BN params to Cp channels (padded channels stay 0).
    def pad_cols(w):
        return jnp.pad(w, ((0, 0), (0, Cp - Cout))).astype(jnp.bfloat16)

    def pad_vec(v):
        return jnp.pad(v, (0, Cp - Cout)).astype(jnp.float32)

    w1p = pad_cols(params["w1"])                                   # (9*Cin, Cp)
    wdp = pad_cols(params["wd"])                                   # (Cin,   Cp)
    w2p = jnp.pad(params["w2"].reshape(9, Cout, Cout),
                  ((0, 0), (0, Cp - Cout), (0, Cp - Cout))).astype(jnp.bfloat16)
    g1, b1 = pad_vec(params["g1"]), pad_vec(params["b1"])
    g2, b2 = pad_vec(params["g2"]), pad_vec(params["b2"])
    gd, bd = pad_vec(params["gd"]), pad_vec(params["bd"])

    # conv1 im2col stays host-side: Cin is tiny so the patches array is small.
    # TODO(synk): for Cin >= 64 switch conv1 to the in-kernel tap scheme too.
    p1, Ho, Wo = _im2col(xb, ksize=3, stride=2, pad=1)             # (M, 9*Cin)
    M = N * Ho * Wo
    xds_img = xb[:, ::2, ::2, :].reshape(N, Ho * Wo, Cin)          # 1x1 stride-2 input
    xds_flat = xds_img.reshape(M, Cin)

    tm = min(tile_m, M)              # raise tile_m on v5e/v6e; nt>=2 helps v7x
    Mp = _round_up(M, tm)
    if Mp != M:
        p1 = jnp.pad(p1, ((0, Mp - M), (0, 0)))   # zero rows -> zero stats contrib
        xds_flat = jnp.pad(xds_flat, ((0, Mp - M), (0, 0)))

    # stage 1: conv1 matmul + BN1 partials + downsample-conv BN partials.
    y1, s1, sd = _conv1_and_ds_stats(p1, xds_flat, w1p, wdp, tm)   # y1 bf16
    sc1, bi1 = _bn_scale_bias(s1, g1, b1, M)
    scd, bid = _bn_scale_bias(sd, gd, bd, M)

    # stage 2: fused BN1+ReLU + VMEM pad + conv2 (whole image per step).
    y1_img = y1[:M].reshape(N, Ho, Wo, Cp)                         # free when Mp==M
    y2, s2 = _conv2_fused(y1_img, sc1, bi1, w2p)                   # (N,Ho*Wo,Cp) bf16
    sc2, bi2 = _bn_scale_bias(s2, g2, b2, M)

    # stage 3: BN2 + downsample conv + BNd + residual add + final ReLU.
    out = _residual_out(y2, xds_img, wdp, sc2, bi2, scd, bid)      # (N,Ho*Wo,Cp) f32
    out = out.reshape(N, Ho, Wo, Cp)[..., :Cout]
    return jnp.transpose(out, (0, 3, 1, 2))                        # back to NCHW


# ------------------------- pure-JAX reference (check) -----------------------

def _reference_forward(x_nchw, params):
    """Plain-JAX reference using the same bf16 matmul operands."""
    x = jnp.transpose(x_nchw, (0, 2, 3, 1)).astype(jnp.float32)
    N, H, W, Cin = x.shape
    Cout = params["g1"].shape[0]
    xb = x.astype(jnp.bfloat16)

    def bn(y, g, b):
        mean = jnp.mean(y, axis=0, keepdims=True)
        var = jnp.maximum(jnp.mean(y * y, axis=0, keepdims=True) - mean * mean, 0.0)
        scale = g * jax.lax.rsqrt(var + BN_EPS)
        return y * scale + (b - mean * scale)

    p1, Ho, Wo = _im2col(xb, 3, 2, 1)
    y1 = jnp.dot(p1, params["w1"].astype(jnp.bfloat16),
                 preferred_element_type=jnp.float32)
    a1 = jnp.maximum(bn(y1, params["g1"], params["b1"]), 0.0)
    a1 = a1.reshape(N, Ho, Wo, Cout).astype(jnp.bfloat16)

    p2, _, _ = _im2col(a1, 3, 1, 1)
    y2 = bn(jnp.dot(p2, params["w2"].astype(jnp.bfloat16),
                    preferred_element_type=jnp.float32),
            params["g2"], params["b2"])

    xd = xb[:, ::2, ::2, :].reshape(N * Ho * Wo, Cin)
    yd = bn(jnp.dot(xd, params["wd"].astype(jnp.bfloat16),
                    preferred_element_type=jnp.float32),
            params["gd"], params["bd"])

    out = jnp.maximum(y2 + yd, 0.0).reshape(N, Ho, Wo, Cout)
    return jnp.transpose(out, (0, 3, 1, 2))


def init_params(key, in_channels, out_channels):
    ks = jax.random.split(key, 6)
    # conv weights stored directly in (kh*kw*Cin, Cout) matmul form (HWIO flat)
    w1 = 0.1 * jax.random.normal(ks[0], (3 * 3 * in_channels, out_channels),
                                 jnp.float32)
    w2 = 0.1 * jax.random.normal(ks[1], (3 * 3 * out_channels, out_channels),
                                 jnp.float32)
    wd = 0.1 * jax.random.normal(ks[2], (in_channels, out_channels),
                                 jnp.float32)
    g1 = 1.0 + 0.1 * jax.random.normal(ks[3], (out_channels,), jnp.float32)
    g2 = 1.0 + 0.1 * jax.random.normal(ks[4], (out_channels,), jnp.float32)
    gd = 1.0 + 0.1 * jax.random.normal(ks[5], (out_channels,), jnp.float32)
    b1 = jnp.zeros((out_channels,), jnp.float32)
    b2 = jnp.zeros((out_channels,), jnp.float32)
    bd = jnp.zeros((out_channels,), jnp.float32)
    return dict(w1=w1, g1=g1, b1=b1, w2=w2, g2=g2, b2=b2, wd=wd, gd=gd, bd=bd)


if __name__ == "__main__":
    key = jax.random.PRNGKey(0)
    k_x, k_p = jax.random.split(key)

    N, Cin, H, W = 2, 4, 16, 16
    Cout = 64

    x = jax.random.normal(k_x, (N, Cin, H, W), jnp.float32)
    params = init_params(k_p, Cin, Cout)

    out = jax.block_until_ready(jax.jit(down_block_forward)(x, params))
    assert out.shape == (N, Cout, H // 2, W // 2), out.shape

    ref = jax.block_until_ready(jax.jit(_reference_forward)(x, params))
    max_err = float(jnp.max(jnp.abs(out - ref)))
    assert jnp.allclose(out, ref, atol=5e-2, rtol=5e-2), max_err

    print("KERNEL_OK")
</pallas_src>

<mosaic_0001>
module attributes {stable_mosaic.version = 11 : i64} {
  func.func @_conv1_ds_stats_kernel(%arg0: i32, %arg1: memref<128x36xbf16, #tpu.memory_space<vmem>>, %arg2: memref<128x4xbf16, #tpu.memory_space<vmem>>, %arg3: memref<36x128xbf16, #tpu.memory_space<vmem>>, %arg4: memref<4x128xbf16, #tpu.memory_space<vmem>>, %arg5: memref<128x128xbf16, #tpu.memory_space<vmem>>, %arg6: memref<1x2x128xf32, #tpu.memory_space<vmem>>, %arg7: memref<1x2x128xf32, #tpu.memory_space<vmem>>) attributes {dimension_semantics = [#tpu.dimension_semantics<parallel>], iteration_bounds = array<i64: 1>, scalar_prefetch = 0 : i64, scratch_operands = 0 : i64, tpu.core_type = #tpu.core_type<tc>, window_params = [{transform_indices = @transform_0, window_bounds = array<i64: 128, 36>}, {transform_indices = @transform_1, window_bounds = array<i64: 128, 4>}, {pipeline_mode = #tpu.pipeline_mode<synchronous>, transform_indices = @transform_2, window_bounds = array<i64: 36, 128>}, {pipeline_mode = #tpu.pipeline_mode<synchronous>, transform_indices = @transform_3, window_bounds = array<i64: 4, 128>}, {transform_indices = @transform_4, window_bounds = array<i64: 128, 128>}, {transform_indices = @transform_5, window_bounds = array<i64: 1, 2, 128>}, {transform_indices = @transform_6, window_bounds = array<i64: 1, 2, 128>}]} {
    %c0 = arith.constant 0 : index
    %c0_0 = arith.constant 0 : index
    %0 = vector.load %arg1[%c0, %c0_0] : memref<128x36xbf16, #tpu.memory_space<vmem>>, vector<128x36xbf16>
    %c0_1 = arith.constant 0 : index
    %c0_2 = arith.constant 0 : index
    %1 = vector.load %arg3[%c0_1, %c0_2] : memref<36x128xbf16, #tpu.memory_space<vmem>>, vector<36x128xbf16>
    %cst = arith.constant dense<0.000000e+00> : vector<128x128xf32>
    %2 = tpu.matmul %0, %1, %cst {dimension_numbers = #tpu.dot_dimension_numbers<[1], [0], [0], [1], [0, 0, 1, 1], [], []>} : vector<128x36xbf16>, vector<36x128xbf16>, vector<128x128xf32> -> vector<128x128xf32>
    %3 = arith.truncf %2 : vector<128x128xf32> to vector<128x128xbf16>
    %c0_3 = arith.constant 0 : index
    %c0_4 = arith.constant 0 : index
    %4 = vector.load %arg5[%c0_3, %c0_4] : memref<128x128xbf16, #tpu.memory_space<vmem>>, vector<128x128xbf16>
    tpu.vector_store %arg5[%c0_3, %c0_4], %3 {strides = array<i32>} : memref<128x128xbf16, #tpu.memory_space<vmem>>, vector<128x128xbf16>,
    %cst_5 = arith.constant dense<0.000000e+00> : vector<128xf32>
    %5 = vector.multi_reduction <add>, %2, %cst_5 [0] : vector<128x128xf32> to vector<128xf32>
    %6 = vector.shape_cast %5 : vector<128xf32> to vector<1x128xf32>
    %7 = arith.mulf %2, %2 : vector<128x128xf32>
    %cst_6 = arith.constant dense<0.000000e+00> : vector<128xf32>
    %8 = vector.multi_reduction <add>, %7, %cst_6 [0] : vector<128x128xf32> to vector<128xf32>
    %9 = vector.shape_cast %8 : vector<128xf32> to vector<1x128xf32>
    %10 = tpu.concatenate %6, %9 in 0 : vector<1x128xf32>, vector<1x128xf32> -> vector<2x128xf32>
    %11 = vector.shape_cast %10 : vector<2x128xf32> to vector<1x2x128xf32>
    %c0_7 = arith.constant 0 : index
    %c0_8 = arith.constant 0 : index
    %c0_9 = arith.constant 0 : index
    %12 = vector.load %arg6[%c0_7, %c0_8, %c0_9] : memref<1x2x128xf32, #tpu.memory_space<vmem>>, vector<1x2x128xf32>
    tpu.vector_store %arg6[%c0_7, %c0_8, %c0_9], %11 {strides = array<i32>} : memref<1x2x128xf32, #tpu.memory_space<vmem>>, vector<1x2x128xf32>,
    %c0_10 = arith.constant 0 : index
    %c0_11 = arith.constant 0 : index
    %13 = vector.load %arg2[%c0_10, %c0_11] : memref<128x4xbf16, #tpu.memory_space<vmem>>, vector<128x4xbf16>
    %c0_12 = arith.constant 0 : index
    %c0_13 = arith.constant 0 : index
    %14 = vector.load %arg4[%c0_12, %c0_13] : memref<4x128xbf16, #tpu.memory_space<vmem>>, vector<4x128xbf16>
    %cst_14 = arith.constant dense<0.000000e+00> : vector<128x128xf32>
    %15 = tpu.matmul %13, %14, %cst_14 {dimension_numbers = #tpu.dot_dimension_numbers<[1], [0], [0], [1], [0, 0, 1, 1], [], []>} : vector<128x4xbf16>, vector<4x128xbf16>, vector<128x128xf32> -> vector<128x128xf32>
    %cst_15 = arith.constant dense<0.000000e+00> : vector<128xf32>
    %16 = vector.multi_reduction <add>, %15, %cst_15 [0] : vector<128x128xf32> to vector<128xf32>
    %17 = vector.shape_cast %16 : vector<128xf32> to vector<1x128xf32>
    %18 = arith.mulf %15, %15 : vector<128x128xf32>
    %cst_16 = arith.constant dense<0.000000e+00> : vector<128xf32>
    %19 = vector.multi_reduction <add>, %18, %cst_16 [0] : vector<128x128xf32> to vector<128xf32>
    %20 = vector.shape_cast %19 : vector<128xf32> to vector<1x128xf32>
    %21 = tpu.concatenate %17, %20 in 0 : vector<1x128xf32>, vector<1x128xf32> -> vector<2x128xf32>
    %22 = vector.shape_cast %21 : vector<2x128xf32> to vector<1x2x128xf32>
    %c0_17 = arith.constant 0 : index
    %c0_18 = arith.constant 0 : index
    %c0_19 = arith.constant 0 : index
    %23 = vector.load %arg7[%c0_17, %c0_18, %c0_19] : memref<1x2x128xf32, #tpu.memory_space<vmem>>, vector<1x2x128xf32>
    tpu.vector_store %arg7[%c0_17, %c0_18, %c0_19], %22 {strides = array<i32>} : memref<1x2x128xf32, #tpu.memory_space<vmem>>, vector<1x2x128xf32>,
    return
  }
  func.func @transform_0(%arg0: i32) -> (i32, i32) {
    %c0_i32 = arith.constant 0 : i32
    %c0_i32_0 = arith.constant 0 : i32
    return %arg0, %c0_i32 : i32, i32
  }
  func.func @transform_1(%arg0: i32) -> (i32, i32) {
    %c0_i32 = arith.constant 0 : i32
    %c0_i32_0 = arith.constant 0 : i32
    return %arg0, %c0_i32 : i32, i32
  }
  func.func @transform_2(%arg0: i32) -> (i32, i32) {
    %c0_i32 = arith.constant 0 : i32
    %c0_i32_0 = arith.constant 0 : i32
    %c0_i32_1 = arith.constant 0 : i32
    return %c0_i32, %c0_i32_0 : i32, i32
  }
  func.func @transform_3(%arg0: i32) -> (i32, i32) {
    %c0_i32 = arith.constant 0 : i32
    %c0_i32_0 = arith.constant 0 : i32
    %c0_i32_1 = arith.constant 0 : i32
    return %c0_i32, %c0_i32_0 : i32, i32
  }
  func.func @transform_4(%arg0: i32) -> (i32, i32) {
    %c0_i32 = arith.constant 0 : i32
    %c0_i32_0 = arith.constant 0 : i32
    return %arg0, %c0_i32 : i32, i32
  }
  func.func @transform_5(%arg0: i32) -> (i32, i32, i32) {
    %c0_i32 = arith.constant 0 : i32
    %c0_i32_0 = arith.constant 0 : i32
    %c0_i32_1 = arith.constant 0 : i32
    return %arg0, %c0_i32, %c0_i32_0 : i32, i32, i32
  }
  func.func @transform_6(%arg0: i32) -> (i32, i32, i32) {
    %c0_i32 = arith.constant 0 : i32
    %c0_i32_0 = arith.constant 0 : i32
    %c0_i32_1 = arith.constant 0 : i32
    return %arg0, %c0_i32, %c0_i32_0 : i32, i32, i32
  }
}

module attributes {stable_mosaic.version = 11 : i64} {
  func.func @_conv2_fused_kernel(%arg0: i32, %arg1: memref<1x8x8x128xbf16, #tpu.memory_space<vmem>>, %arg2: memref<1x128xf32, #tpu.memory_space<vmem>>, %arg3: memref<1x128xf32, #tpu.memory_space<vmem>>, %arg4: memref<9x128x128xbf16, #tpu.memory_space<vmem>>, %arg5: memref<1x64x128xbf16, #tpu.memory_space<vmem>>, %arg6: memref<1x2x128xf32, #tpu.memory_space<vmem>>, %arg7: memref<10x10x128xbf16, #tpu.memory_space<vmem>>) attributes {dimension_semantics = [#tpu.dimension_semantics<parallel>], iteration_bounds = array<i64: 2>, scalar_prefetch = 0 : i64, scratch_operands = 1 : i64, tpu.core_type = #tpu.core_type<tc>, window_params = [{transform_indices = @transform_0, window_bounds = array<i64: 1, 8, 8, 128>}, {pipeline_mode = #tpu.pipeline_mode<synchronous>, transform_indices = @transform_1, window_bounds = array<i64: 1, 128>}, {pipeline_mode = #tpu.pipeline_mode<synchronous>, transform_indices = @transform_2, window_bounds = array<i64: 1, 128>}, {pipeline_mode = #tpu.pipeline_mode<synchronous>, transform_indices = @transform_3, window_bounds = array<i64: 9, 128, 128>}, {transform_indices = @transform_4, window_bounds = array<i64: 1, 64, 128>}, {transform_indices = @transform_5, window_bounds = array<i64: 1, 2, 128>}]} {
    %c0 = arith.constant 0 : index
    %c0_0 = arith.constant 0 : index
    %c0_1 = arith.constant 0 : index
    %c0_2 = arith.constant 0 : index
    %0 = vector.load %arg1[%c0, %c0_0, %c0_1, %c0_2] : memref<1x8x8x128xbf16, #tpu.memory_space<vmem>>, vector<1x8x8x128xbf16>
    %1 = vector.shape_cast %0 : vector<1x8x8x128xbf16> to vector<8x8x128xbf16>
    %2 = arith.extf %1 : vector<8x8x128xbf16> to vector<8x8x128xf32>
    %c0_3 = arith.constant 0 : index
    %c0_4 = arith.constant 0 : index
    %3 = vector.load %arg2[%c0_3, %c0_4] : memref<1x128xf32, #tpu.memory_space<vmem>>, vector<1x128xf32>
    %4 = vector.shape_cast %3 : vector<1x128xf32> to vector<1x1x128xf32>
    %5 = vector.broadcast %4 : vector<1x1x128xf32> to vector<8x8x128xf32>
    %6 = arith.mulf %2, %5 : vector<8x8x128xf32>
    %c0_5 = arith.constant 0 : index
    %c0_6 = arith.constant 0 : index
    %7 = vector.load %arg3[%c0_5, %c0_6] : memref<1x128xf32, #tpu.memory_space<vmem>>, vector<1x128xf32>
    %8 = vector.shape_cast %7 : vector<1x128xf32> to vector<1x1x128xf32>
    %9 = vector.broadcast %8 : vector<1x1x128xf32> to vector<8x8x128xf32>
    %10 = arith.addf %6, %9 : vector<8x8x128xf32>
    %cst = arith.constant 0.000000e+00 : f32
    %11 = vector.broadcast %cst : f32 to vector<8x8x128xf32>
    %12 = arith.maximumf %10, %11 : vector<8x8x128xf32>
    %13 = arith.truncf %12 : vector<8x8x128xf32> to vector<8x8x128xbf16>
    %cst_7 = arith.constant 0.000000e+00 : bf16
    %14 = vector.broadcast %cst_7 : bf16 to vector<10x10x128xbf16>
    %c0_8 = arith.constant 0 : index
    %c0_9 = arith.constant 0 : index
    %c0_10 = arith.constant 0 : index
    %15 = vector.load %arg7[%c0_8, %c0_9, %c0_10] : memref<10x10x128xbf16, #tpu.memory_space<vmem>>, vector<10x10x128xbf16>
    tpu.vector_store %arg7[%c0_8, %c0_9, %c0_10], %14 {strides = array<i32>} : memref<10x10x128xbf16, #tpu.memory_space<vmem>>, vector<10x10x128xbf16>,
    %c1 = arith.constant 1 : index
    %c1_11 = arith.constant 1 : index
    %c0_12 = arith.constant 0 : index
    %16 = vector.load %arg7[%c1, %c1_11, %c0_12] : memref<10x10x128xbf16, #tpu.memory_space<vmem>>, vector<8x8x128xbf16>
    tpu.vector_store %arg7[%c1, %c1_11, %c0_12], %13 {strides = array<i32>} : memref<10x10x128xbf16, #tpu.memory_space<vmem>>, vector<8x8x128xbf16>,
    %cst_13 = arith.constant 0.000000e+00 : f32
    %17 = vector.broadcast %cst_13 : f32 to vector<64x128xf32>
    %c0_14 = arith.constant 0 : index
    %c0_15 = arith.constant 0 : index
    %c0_16 = arith.constant 0 : index
    %18 = vector.load %arg7[%c0_14, %c0_15, %c0_16] : memref<10x10x128xbf16, #tpu.memory_space<vmem>>, vector<8x8x128xbf16>
    %19 = vector.shape_cast %18 : vector<8x8x128xbf16> to vector<64x128xbf16>
    %c0_17 = arith.constant 0 : index
    %c0_18 = arith.constant 0 : index
    %c0_19 = arith.constant 0 : index
    %20 = vector.load %arg4[%c0_17, %c0_18, %c0_19] : memref<9x128x128xbf16, #tpu.memory_space<vmem>>, vector<1x128x128xbf16>
    %21 = vector.shape_cast %20 : vector<1x128x128xbf16> to vector<128x128xbf16>
    %cst_20 = arith.constant dense<0.000000e+00> : vector<64x128xf32>
    %22 = tpu.matmul %19, %21, %cst_20 {dimension_numbers = #tpu.dot_dimension_numbers<[1], [0], [0], [1], [0, 0, 1, 1], [], []>} : vector<64x128xbf16>, vector<128x128xbf16>, vector<64x128xf32> -> vector<64x128xf32>
    %23 = arith.addf %17, %22 : vector<64x128xf32>
    %c0_21 = arith.constant 0 : index
    %c1_22 = arith.constant 1 : index
    %c0_23 = arith.constant 0 : index
    %24 = vector.load %arg7[%c0_21, %c1_22, %c0_23] : memref<10x10x128xbf16, #tpu.memory_space<vmem>>, vector<8x8x128xbf16>
    %25 = vector.shape_cast %24 : vector<8x8x128xbf16> to vector<64x128xbf16>
    %c1_24 = arith.constant 1 : index
    %c0_25 = arith.constant 0 : index
    %c0_26 = arith.constant 0 : index
    %26 = vector.load %arg4[%c1_24, %c0_25, %c0_26] : memref<9x128x128xbf16, #tpu.memory_space<vmem>>, vector<1x128x128xbf16>
    %27 = vector.shape_cast %26 : vector<1x128x128xbf16> to vector<128x128xbf16>
    %cst_27 = arith.constant dense<0.000000e+00> : vector<64x128xf32>
    %28 = tpu.matmul %25, %27, %cst_27 {dimension_numbers = #tpu.dot_dimension_numbers<[1], [0], [0], [1], [0, 0, 1, 1], [], []>} : vector<64x128xbf16>, vector<128x128xbf16>, vector<64x128xf32> -> vector<64x128xf32>
    %29 = arith.addf %23, %28 : vector<64x128xf32>
    %c0_28 = arith.constant 0 : index
    %c2 = arith.constant 2 : index
    %c0_29 = arith.constant 0 : index
    %30 = vector.load %arg7[%c0_28, %c2, %c0_29] : memref<10x10x128xbf16, #tpu.memory_space<vmem>>, vector<8x8x128xbf16>
    %31 = vector.shape_cast %30 : vector<8x8x128xbf16> to vector<64x128xbf16>
    %c2_30 = arith.constant 2 : index
    %c0_31 = arith.constant 0 : index
    %c0_32 = arith.constant 0 : index
    %32 = vector.load %arg4[%c2_30, %c0_31, %c0_32] : memref<9x128x128xbf16, #tpu.memory_space<vmem>>, vector<1x128x128xbf16>
    %33 = vector.shape_cast %32 : vector<1x128x128xbf16> to vector<128x128xbf16>
    %cst_33 = arith.constant dense<0.000000e+00> : vector<64x128xf32>
    %34 = tpu.matmul %31, %33, %cst_33 {dimension_numbers = #tpu.dot_dimension_numbers<[1], [0], [0], [1], [0, 0, 1, 1], [], []>} : vector<64x128xbf16>, vector<128x128xbf16>, vector<64x128xf32> -> vector<64x128xf32>
    %35 = arith.addf %29, %34 : vector<64x128xf32>
    %c1_34 = arith.constant 1 : index
    %c0_35 = arith.constant 0 : index
    %c0_36 = arith.constant 0 : index
    %36 = vector.load %arg7[%c1_34, %c0_35, %c0_36] : memref<10x10x128xbf16, #tpu.memory_space<vmem>>, vector<8x8x128xbf16>
    %37 = vector.shape_cast %36 : vector<8x8x128xbf16> to vector<64x128xbf16>
    %c3 = arith.constant 3 : index
    %c0_37 = arith.constant 0 : index
    %c0_38 = arith.constant 0 : index
    %38 = vector.load %arg4[%c3, %c0_37, %c0_38] : memref<9x128x128xbf16, #tpu.memory_space<vmem>>, vector<1x128x128xbf16>
    %39 = vector.shape_cast %38 : vector<1x128x128xbf16> to vector<128x128xbf16>
    %cst_39 = arith.constant dense<0.000000e+00> : vector<64x128xf32>
    %40 = tpu.matmul %37, %39, %cst_39 {dimension_numbers = #tpu.dot_dimension_numbers<[1], [0], [0], [1], [0, 0, 1, 1], [], []>} : vector<64x128xbf16>, vector<128x128xbf16>, vector<64x128xf32> -> vector<64x128xf32>
    %41 = arith.addf %35, %40 : vector<64x128xf32>
    %c1_40 = arith.constant 1 : index
    %c1_41 = arith.constant 1 : index
    %c0_42 = arith.constant 0 : index
    %42 = vector.load %arg7[%c1_40, %c1_41, %c0_42] : memref<10x10x128xbf16, #tpu.memory_space<vmem>>, vector<8x8x128xbf16>
    %43 = vector.shape_cast %42 : vector<8x8x128xbf16> to vector<64x128xbf16>
    %c4 = arith.constant 4 : index
    %c0_43 = arith.constant 0 : index
    %c0_44 = arith.constant 0 : index
    %44 = vector.load %arg4[%c4, %c0_43, %c0_44] : memref<9x128x128xbf16, #tpu.memory_space<vmem>>, vector<1x128x128xbf16>
    %45 = vector.shape_cast %44 : vector<1x128x128xbf16> to vector<128x128xbf16>
    %cst_45 = arith.constant dense<0.000000e+00> : vector<64x128xf32>
    %46 = tpu.matmul %43, %45, %cst_45 {dimension_numbers = #tpu.dot_dimension_numbers<[1], [0], [0], [1], [0, 0, 1, 1], [], []>} : vector<64x128xbf16>, vector<128x128xbf16>, vector<64x128xf32> -> vector<64x128xf32>
    %47 = arith.addf %41, %46 : vector<64x128xf32>
    %c1_46 = arith.constant 1 : index
    %c2_47 = arith.constant 2 : index
    %c0_48 = arith.constant 0 : index
    %48 = vector.load %arg7[%c1_46, %c2_47, %c0_48] : memref<10x10x128xbf16, #tpu.memory_space<vmem>>, vector<8x8x128xbf16>
    %49 = vector.shape_cast %48 : vector<8x8x128xbf16> to vector<64x128xbf16>
    %c5 = arith.constant 5 : index
    %c0_49 = arith.constant 0 : index
    %c0_50 = arith.constant 0 : index
    %50 = vector.load %arg4[%c5, %c0_49, %c0_50] : memref<9x128x128xbf16, #tpu.memory_space<vmem>>, vector<1x128x128xbf16>
    %51 = vector.shape_cast %50 : vector<1x128x128xbf16> to vector<128x128xbf16>
    %cst_51 = arith.constant dense<0.000000e+00> : vector<64x128xf32>
    %52 = tpu.matmul %49, %51, %cst_51 {dimension_numbers = #tpu.dot_dimension_numbers<[1], [0], [0], [1], [0, 0, 1, 1], [], []>} : vector<64x128xbf16>, vector<128x128xbf16>, vector<64x128xf32> -> vector<64x128xf32>
    %53 = arith.addf %47, %52 : vector<64x128xf32>
    %c2_52 = arith.constant 2 : index
    %c0_53 = arith.constant 0 : index
    %c0_54 = arith.constant 0 : index
    %54 = vector.load %arg7[%c2_52, %c0_53, %c0_54] : memref<10x10x128xbf16, #tpu.memory_space<vmem>>, vector<8x8x128xbf16>
    %55 = vector.shape_cast %54 : vector<8x8x128xbf16> to vector<64x128xbf16>
    %c6 = arith.constant 6 : index
    %c0_55 = arith.constant 0 : index
    %c0_56 = arith.constant 0 : index
    %56 = vector.load %arg4[%c6, %c0_55, %c0_56] : memref<9x128x128xbf16, #tpu.memory_space<vmem>>, vector<1x128x128xbf16>
    %57 = vector.shape_cast %56 : vector<1x128x128xbf16> to vector<128x128xbf16>
    %cst_57 = arith.constant dense<0.000000e+00> : vector<64x128xf32>
    %58 = tpu.matmul %55, %57, %cst_57 {dimension_numbers = #tpu.dot_dimension_numbers<[1], [0], [0], [1], [0, 0, 1, 1], [], []>} : vector<64x128xbf16>, vector<128x128xbf16>, vector<64x128xf32> -> vector<64x128xf32>
    %59 = arith.addf %53, %58 : vector<64x128xf32>
    %c2_58 = arith.constant 2 : index
    %c1_59 = arith.constant 1 : index
    %c0_60 = arith.constant 0 : index
    %60 = vector.load %arg7[%c2_58, %c1_59, %c0_60] : memref<10x10x128xbf16, #tpu.memory_space<vmem>>, vector<8x8x128xbf16>
    %61 = vector.shape_cast %60 : vector<8x8x128xbf16> to vector<64x128xbf16>
    %c7 = arith.constant 7 : index
    %c0_61 = arith.constant 0 : index
    %c0_62 = arith.constant 0 : index
    %62 = vector.load %arg4[%c7, %c0_61, %c0_62] : memref<9x128x128xbf16, #tpu.memory_space<vmem>>, vector<1x128x128xbf16>
    %63 = vector.shape_cast %62 : vector<1x128x128xbf16> to vector<128x128xbf16>
    %cst_63 = arith.constant dense<0.000000e+00> : vector<64x128xf32>
    %64 = tpu.matmul %61, %63, %cst_63 {dimension_numbers = #tpu.dot_dimension_numbers<[1], [0], [0], [1], [0, 0, 1, 1], [], []>} : vector<64x128xbf16>, vector<128x128xbf16>, vector<64x128xf32> -> vector<64x128xf32>
    %65 = arith.addf %59, %64 : vector<64x128xf32>
    %c2_64 = arith.constant 2 : index
    %c2_65 = arith.constant 2 : index
    %c0_66 = arith.constant 0 : index
    %66 = vector.load %arg7[%c2_64, %c2_65, %c0_66] : memref<10x10x128xbf16, #tpu.memory_space<vmem>>, vector<8x8x128xbf16>
    %67 = vector.shape_cast %66 : vector<8x8x128xbf16> to vector<64x128xbf16>
    %c8 = arith.constant 8 : index
    %c0_67 = arith.constant 0 : index
    %c0_68 = arith.constant 0 : index
    %68 = vector.load %arg4[%c8, %c0_67, %c0_68] : memref<9x128x128xbf16, #tpu.memory_space<vmem>>, vector<1x128x128xbf16>
    %69 = vector.shape_cast %68 : vector<1x128x128xbf16> to vector<128x128xbf16>
    %cst_69 = arith.constant dense<0.000000e+00> : vector<64x128xf32>
    %70 = tpu.matmul %67, %69, %cst_69 {dimension_numbers = #tpu.dot_dimension_numbers<[1], [0], [0], [1], [0, 0, 1, 1], [], []>} : vector<64x128xbf16>, vector<128x128xbf16>, vector<64x128xf32> -> vector<64x128xf32>
    %71 = arith.addf %65, %70 : vector<64x128xf32>
    %72 = vector.shape_cast %71 : vector<64x128xf32> to vector<1x64x128xf32>
    %73 = arith.truncf %72 : vector<1x64x128xf32> to vector<1x64x128xbf16>
    %c0_70 = arith.constant 0 : index
    %c0_71 = arith.constant 0 : index
    %c0_72 = arith.constant 0 : index
    %74 = vector.load %arg5[%c0_70, %c0_71, %c0_72] : memref<1x64x128xbf16, #tpu.memory_space<vmem>>, vector<1x64x128xbf16>
    tpu.vector_store %arg5[%c0_70, %c0_71, %c0_72], %73 {strides = array<i32>} : memref<1x64x128xbf16, #tpu.memory_space<vmem>>, vector<1x64x128xbf16>,
    %cst_73 = arith.constant dense<0.000000e+00> : vector<128xf32>
    %75 = vector.multi_reduction <add>, %71, %cst_73 [0] : vector<64x128xf32> to vector<128xf32>
    %76 = vector.shape_cast %75 : vector<128xf32> to vector<1x128xf32>
    %77 = arith.mulf %71, %71 : vector<64x128xf32>
    %cst_74 = arith.constant dense<0.000000e+00> : vector<128xf32>
    %78 = vector.multi_reduction <add>, %77, %cst_74 [0] : vector<64x128xf32> to vector<128xf32>
    %79 = vector.shape_cast %78 : vector<128xf32> to vector<1x128xf32>
    %80 = tpu.concatenate %76, %79 in 0 : vector<1x128xf32>, vector<1x128xf32> -> vector<2x128xf32>
    %81 = vector.shape_cast %80 : vector<2x128xf32> to vector<1x2x128xf32>
    %c0_75 = arith.constant 0 : index
    %c0_76 = arith.constant 0 : index
    %c0_77 = arith.constant 0 : index
    %82 = vector.load %arg6[%c0_75, %c0_76, %c0_77] : memref<1x2x128xf32, #tpu.memory_space<vmem>>, vector<1x2x128xf32>
    tpu.vector_store %arg6[%c0_75, %c0_76, %c0_77], %81 {strides = array<i32>} : memref<1x2x128xf32, #tpu.memory_space<vmem>>, vector<1x2x128xf32>,
    return
  }
  func.func @transform_0(%arg0: i32) -> (i32, i32, i32, i32) {
    %c0_i32 = arith.constant 0 : i32
    %c0_i32_0 = arith.constant 0 : i32
    %c0_i32_1 = arith.constant 0 : i32
    %c0_i32_2 = arith.constant 0 : i32
    return %arg0, %c0_i32, %c0_i32_0, %c0_i32_1 : i32, i32, i32, i32
  }
  func.func @transform_1(%arg0: i32) -> (i32, i32) {
    %c0_i32 = arith.constant 0 : i32
    %c0_i32_0 = arith.constant 0 : i32
    %c0_i32_1 = arith.constant 0 : i32
    return %c0_i32, %c0_i32_0 : i32, i32
  }
  func.func @transform_2(%arg0: i32) -> (i32, i32) {
    %c0_i32 = arith.constant 0 : i32
    %c0_i32_0 = arith.constant 0 : i32
    %c0_i32_1 = arith.constant 0 : i32
    return %c0_i32, %c0_i32_0 : i32, i32
  }
  func.func @transform_3(%arg0: i32) -> (i32, i32, i32) {
    %c0_i32 = arith.constant 0 : i32
    %c0_i32_0 = arith.constant 0 : i32
    %c0_i32_1 = arith.constant 0 : i32
    %c0_i32_2 = arith.constant 0 : i32
    return %c0_i32, %c0_i32_0, %c0_i32_1 : i32, i32, i32
  }
  func.func @transform_4(%arg0: i32) -> (i32, i32, i32) {
    %c0_i32 = arith.constant 0 : i32
    %c0_i32_0 = arith.constant 0 : i32
    %c0_i32_1 = arith.constant 0 : i32
    return %arg0, %c0_i32, %c0_i32_0 : i32, i32, i32
  }
  func.func @transform_5(%arg0: i32) -> (i32, i32, i32) {
    %c0_i32 = arith.constant 0 : i32
    %c0_i32_0 = arith.constant 0 : i32
    %c0_i32_1 = arith.constant 0 : i32
    return %arg0, %c0_i32, %c0_i32_0 : i32, i32, i32
  }
}

module attributes {stable_mosaic.version = 11 : i64} {
  func.func @_residual_out_kernel(%arg0: i32, %arg1: memref<1x64x128xbf16, #tpu.memory_space<vmem>>, %arg2: memref<1x64x4xbf16, #tpu.memory_space<vmem>>, %arg3: memref<4x128xbf16, #tpu.memory_space<vmem>>, %arg4: memref<1x128xf32, #tpu.memory_space<vmem>>, %arg5: memref<1x128xf32, #tpu.memory_space<vmem>>, %arg6: memref<1x128xf32, #tpu.memory_space<vmem>>, %arg7: memref<1x128xf32, #tpu.memory_space<vmem>>, %arg8: memref<1x64x128xf32, #tpu.memory_space<vmem>>) attributes {dimension_semantics = [#tpu.dimension_semantics<parallel>], iteration_bounds = array<i64: 2>, scalar_prefetch = 0 : i64, scratch_operands = 0 : i64, tpu.core_type = #tpu.core_type<tc>, window_params = [{transform_indices = @transform_0, window_bounds = array<i64: 1, 64, 128>}, {transform_indices = @transform_1, window_bounds = array<i64: 1, 64, 4>}, {pipeline_mode = #tpu.pipeline_mode<synchronous>, transform_indices = @transform_2, window_bounds = array<i64: 4, 128>}, {pipeline_mode = #tpu.pipeline_mode<synchronous>, transform_indices = @transform_3, window_bounds = array<i64: 1, 128>}, {pipeline_mode = #tpu.pipeline_mode<synchronous>, transform_indices = @transform_4, window_bounds = array<i64: 1, 128>}, {pipeline_mode = #tpu.pipeline_mode<synchronous>, transform_indices = @transform_5, window_bounds = array<i64: 1, 128>}, {pipeline_mode = #tpu.pipeline_mode<synchronous>, transform_indices = @transform_6, window_bounds = array<i64: 1, 128>}, {transform_indices = @transform_7, window_bounds = array<i64: 1, 64, 128>}]} {
    %c0 = arith.constant 0 : index
    %c0_0 = arith.constant 0 : index
    %c0_1 = arith.constant 0 : index
    %0 = vector.load %arg1[%c0, %c0_0, %c0_1] : memref<1x64x128xbf16, #tpu.memory_space<vmem>>, vector<1x64x128xbf16>
    %1 = vector.shape_cast %0 : vector<1x64x128xbf16> to vector<64x128xbf16>
    %2 = arith.extf %1 : vector<64x128xbf16> to vector<64x128xf32>
    %c0_2 = arith.constant 0 : index
    %c0_3 = arith.constant 0 : index
    %c0_4 = arith.constant 0 : index
    %3 = vector.load %arg2[%c0_2, %c0_3, %c0_4] : memref<1x64x4xbf16, #tpu.memory_space<vmem>>, vector<1x64x4xbf16>
    %4 = vector.shape_cast %3 : vector<1x64x4xbf16> to vector<64x4xbf16>
    %c0_5 = arith.constant 0 : index
    %c0_6 = arith.constant 0 : index
    %5 = vector.load %arg3[%c0_5, %c0_6] : memref<4x128xbf16, #tpu.memory_space<vmem>>, vector<4x128xbf16>
    %cst = arith.constant dense<0.000000e+00> : vector<64x128xf32>
    %6 = tpu.matmul %4, %5, %cst {dimension_numbers = #tpu.dot_dimension_numbers<[1], [0], [0], [1], [0, 0, 1, 1], [], []>} : vector<64x4xbf16>, vector<4x128xbf16>, vector<64x128xf32> -> vector<64x128xf32>
    %c0_7 = arith.constant 0 : index
    %c0_8 = arith.constant 0 : index
    %7 = vector.load %arg4[%c0_7, %c0_8] : memref<1x128xf32, #tpu.memory_space<vmem>>, vector<1x128xf32>
    %8 = vector.broadcast %7 : vector<1x128xf32> to vector<64x128xf32>
    %9 = arith.mulf %2, %8 : vector<64x128xf32>
    %c0_9 = arith.constant 0 : index
    %c0_10 = arith.constant 0 : index
    %10 = vector.load %arg5[%c0_9, %c0_10] : memref<1x128xf32, #tpu.memory_space<vmem>>, vector<1x128xf32>
    %11 = vector.broadcast %10 : vector<1x128xf32> to vector<64x128xf32>
    %12 = arith.addf %9, %11 : vector<64x128xf32>
    %c0_11 = arith.constant 0 : index
    %c0_12 = arith.constant 0 : index
    %13 = vector.load %arg6[%c0_11, %c0_12] : memref<1x128xf32, #tpu.memory_space<vmem>>, vector<1x128xf32>
    %14 = vector.broadcast %13 : vector<1x128xf32> to vector<64x128xf32>
    %15 = arith.mulf %6, %14 : vector<64x128xf32>
    %16 = arith.addf %12, %15 : vector<64x128xf32>
    %c0_13 = arith.constant 0 : index
    %c0_14 = arith.constant 0 : index
    %17 = vector.load %arg7[%c0_13, %c0_14] : memref<1x128xf32, #tpu.memory_space<vmem>>, vector<1x128xf32>
    %18 = vector.broadcast %17 : vector<1x128xf32> to vector<64x128xf32>
    %19 = arith.addf %16, %18 : vector<64x128xf32>
    %cst_15 = arith.constant 0.000000e+00 : f32
    %20 = vector.broadcast %cst_15 : f32 to vector<64x128xf32>
    %21 = arith.maximumf %19, %20 : vector<64x128xf32>
    %22 = vector.shape_cast %21 : vector<64x128xf32> to vector<1x64x128xf32>
    %c0_16 = arith.constant 0 : index
    %c0_17 = arith.constant 0 : index
    %c0_18 = arith.constant 0 : index
    %23 = vector.load %arg8[%c0_16, %c0_17, %c0_18] : memref<1x64x128xf32, #tpu.memory_space<vmem>>, vector<1x64x128xf32>
    tpu.vector_store %arg8[%c0_16, %c0_17, %c0_18], %22 {strides = array<i32>} : memref<1x64x128xf32, #tpu.memory_space<vmem>>, vector<1x64x128xf32>,
    return
  }
  func.func @transform_0(%arg0: i32) -> (i32, i32, i32) {
    %c0_i32 = arith.constant 0 : i32
    %c0_i32_0 = arith.constant 0 : i32
    %c0_i32_1 = arith.constant 0 : i32
    return %arg0, %c0_i32, %c0_i32_0 : i32, i32, i32
  }
  func.func @transform_1(%arg0: i32) -> (i32, i32, i32) {
    %c0_i32 = arith.constant 0 : i32
    %c0_i32_0 = arith.constant 0 : i32
    %c0_i32_1 = arith.constant 0 : i32
    return %arg0, %c0_i32, %c0_i32_0 : i32, i32, i32
  }
  func.func @transform_2(%arg0: i32) -> (i32, i32) {
    %c0_i32 = arith.constant 0 : i32
    %c0_i32_0 = arith.constant 0 : i32
    %c0_i32_1 = arith.constant 0 : i32
    return %c0_i32, %c0_i32_0 : i32, i32
  }
  func.func @transform_3(%arg0: i32) -> (i32, i32) {
    %c0_i32 = arith.constant 0 : i32
    %c0_i32_0 = arith.constant 0 : i32
    %c0_i32_1 = arith.constant 0 : i32
    return %c0_i32, %c0_i32_0 : i32, i32
  }
  func.func @transform_4(%arg0: i32) -> (i32, i32) {
    %c0_i32 = arith.constant 0 : i32
    %c0_i32_0 = arith.constant 0 : i32
    %c0_i32_1 = arith.constant 0 : i32
    return %c0_i32, %c0_i32_0 : i32, i32
  }
  func.func @transform_5(%arg0: i32) -> (i32, i32) {
    %c0_i32 = arith.constant 0 : i32
    %c0_i32_0 = arith.constant 0 : i32
    %c0_i32_1 = arith.constant 0 : i32
    return %c0_i32, %c0_i32_0 : i32, i32
  }
  func.func @transform_6(%arg0: i32) -> (i32, i32) {
    %c0_i32 = arith.constant 0 : i32
    %c0_i32_0 = arith.constant 0 : i32
    %c0_i32_1 = arith.constant 0 : i32
    return %c0_i32, %c0_i32_0 : i32, i32
  }
  func.func @transform_7(%arg0: i32) -> (i32, i32, i32) {
    %c0_i32 = arith.constant 0 : i32
    %c0_i32_0 = arith.constant 0 : i32
    %c0_i32_1 = arith.constant 0 : i32
    return %arg0, %c0_i32, %c0_i32_0 : i32, i32, i32
  }
}

</mosaic_0001>

<llo_original>
// kernel: down_block_forward.3
$region0: #{down_block_forward.3}
  #allocation0 [shape = 'u32[]', space=smem, size = 0x4, offset = 0x4, fixed_abs, tag = 'smem constant byte address 0x4 - core index']
  #allocation1 [shape = 'u32[72,128]{1,0:T(1,128)}', space=vmem, size = 0x9000, scoped, tag = 'internal scratch']
  %s0 = inlined_call_operand.vmem [shape: bf16[128,36], index: 0, kind: input, shape index: {}]
  %s1 = inlined_call_operand.vmem [shape: bf16[128,4], index: 1, kind: input, shape index: {}]
  %s2 = inlined_call_operand.vmem [shape: bf16[36,128], index: 2, kind: input, shape index: {}]
  %s3 = inlined_call_operand.vmem [shape: bf16[4,128], index: 3, kind: input, shape index: {}]
  %s4 = inlined_call_operand.vmem [shape: bf16[128,128], index: 4, kind: output, shape index: {0}]
  %s5 = inlined_call_operand.vmem [shape: f32[1,2,128], index: 5, kind: output, shape index: {1}]
  %s6 = inlined_call_operand.vmem [shape: f32[1,2,128], index: 6, kind: output, shape index: {2}]
  %7 = xla_tuple %s4, %s5, %s6
  %s8 = sld [smem:[#allocation0]]
  $region42: #{down_block_forward.3} parent=0
    _
  %s10 = ssub.s32 1, %s8
  %s11 = scalar_select 0, %s10, %s8
  // Predicated region
  $region2: #{down_block_forward.3} parent=0 // pred_check
    _
  $region3: #{down_block_forward.3} parent=0 // pred_check_branch
    %13 = sbr.rel (0) target = $region5
  $region4: #{down_block_forward.3} parent=0 // pred_region
    _
  $region5: #{down_block_forward.3} parent=0 // pred_fallthru
    _
  // Predicated region
  $region6: #{down_block_forward.3} parent=0 // pred_check
    _
  $region7: #{down_block_forward.3} parent=0 // pred_check_branch
    %15 = sbr.rel (0) target = $region9
  $region8: #{down_block_forward.3} parent=0 // pred_region
    _
  $region9: #{down_block_forward.3} parent=0 // pred_fallthru
    _
  // Predicated region
  $region10: #{down_block_forward.3} parent=0 // pred_check
    _
  $region11: #{down_block_forward.3} parent=0 // pred_check_branch
    %17 = sbr.rel (0) target = $region13
  $region12: #{down_block_forward.3} parent=0 // pred_region
    _
  $region13: #{down_block_forward.3} parent=0 // pred_fallthru
    _
  // Predicated region
  $region14: #{down_block_forward.3} parent=0 // pred_check
    _
  $region15: #{down_block_forward.3} parent=0 // pred_check_branch
    %19 = sbr.rel (0) target = $region17
  $region16: #{down_block_forward.3} parent=0 // pred_region
    _
  $region17: #{down_block_forward.3} parent=0 // pred_fallthru
    _
  %v21 = vld [vmem:[%s0] sm:$0xf]
  %v22 = vld [vmem:[%s0 + $0x4] sm:$0xf]
  %v23 = vld [vmem:[%s0 + $0x8] sm:$0xf]
  %v24 = vld [vmem:[%s0 + $0xc] sm:$0xf]
  %v25 = vld [vmem:[%s0 + $0x10] sm:$0xf]
  %v26 = vld [vmem:[%s0 + $0x14] sm:$0xf]
  %v27 = vld [vmem:[%s0 + $0x18] sm:$0xf]
  %v28 = vld [vmem:[%s0 + $0x1c] sm:$0xf]
  %v29 = vld [vmem:[%s0 + $0x20] sm:$0xf]
  %v30 = vld [vmem:[%s0 + $0x24] sm:$0xf]
  %v31 = vld [vmem:[%s0 + $0x28] sm:$0xf]
  %v32 = vld [vmem:[%s0 + $0x2c] sm:$0xf]
  %v33 = vld [vmem:[%s0 + $0x30] sm:$0xf]
  %v34 = vld [vmem:[%s0 + $0x34] sm:$0xf]
  %v35 = vld [vmem:[%s0 + $0x38] sm:$0xf]
  %v36 = vld [vmem:[%s0 + $0x3c] sm:$0xf]
  %v37 = vld [vmem:[%s2] sm:$0xf]
  %v38 = vld [vmem:[%s2 + $0x4] sm:$0xf]
  %v39 = vld [vmem:[%s2 + $0x8] sm:$0xf]
  %v40 = vld [vmem:[%s2 + $0xc] sm:$0xf]
  %v41 = vld [vmem:[%s2 + $0x10] sm:$0x3]
  %v58 = vunpack.c.l.b16 %v21
  %v59 = vunpack.c.l.b16 %v22
  %v60 = vunpack.c.l.b16 %v23
  %v61 = vunpack.c.l.b16 %v24
  %v62 = vunpack.c.l.b16 %v25
  %v63 = vunpack.c.l.b16 %v26
  %v64 = vunpack.c.l.b16 %v27
  %v65 = vunpack.c.l.b16 %v28
  %v66 = vunpack.c.l.b16 %v29
  %v67 = vunpack.c.l.b16 %v30
  %v68 = vunpack.c.l.b16 %v31
  %v69 = vunpack.c.l.b16 %v32
  %v70 = vunpack.c.l.b16 %v33
  %v71 = vunpack.c.l.b16 %v34
  %v72 = vunpack.c.l.b16 %v35
  %v73 = vunpack.c.l.b16 %v36
  %v74 = vpack.c.b16 %v59, %v58
  %v75 = vpack.c.b16 %v61, %v60
  %v76 = vpack.c.b16 %v63, %v62
  %v77 = vpack.c.b16 %v65, %v64
  %v78 = vpack.c.b16 %v67, %v66
  %v79 = vpack.c.b16 %v69, %v68
  %v80 = vpack.c.b16 %v71, %v70
  %v81 = vpack.c.b16 %v73, %v72
  %v87 = vunpack.c.l.b16 %v37
  %v88 = vunpack.c.l.b16 %v38
  %v89 = vunpack.c.l.b16 %v39
  %v90 = vunpack.c.l.b16 %v40
  %v91 = vunpack.c.l.b16 %v41
  %v92 = vpack.c.b16 %v88, %v87
  %v93 = vpack.c.b16 %v90, %v89
  %v94 = vpack.c.b16 %v91, %v91
  %vm97 = vcmask 293888
  %v99 = vsel %vm97, %v74, 0
  %v102 = vsel %vm97, %v75, 0
  %v105 = vsel %vm97, %v76, 0
  %v108 = vsel %vm97, %v77, 0
  %v111 = vsel %vm97, %v78, 0
  %v114 = vsel %vm97, %v79, 0
  %v117 = vsel %vm97, %v80, 0
  %v120 = vsel %vm97, %v81, 0
  %vm122 = vcmask 1041408
  %v124 = vsel %vm122, %v94, 0
  %126 = vmatpush.bf16.msra.mxu0 0
  %127 = vmatpush.bf16.msra.mxu0 0
  %128 = vmatpush.bf16.msra.mxu0 0
  %129 = vmatpush.bf16.msra.mxu0 0
  %130 = vmatpush.bf16.msra.mxu0 0
  %131 = vmatpush.bf16.msra.mxu0 %v124
  %132 = vmatpush.bf16.msra.mxu0 %v93
  %133 = vmatpush.bf16.msra.mxu0 %v92
  %134 = vmatmul.bf16.gmra.mxu0 %v99
  %v135 = vpop.f32.mrf.mxu0
  %v136 = vadd.f32 0.0, %v135
  %v137 = vpop.f32.mrf.mxu0
  %v138 = vadd.f32 0.0, %v137
  %139 = vmatmul.bf16.gmra.mxu0 %v102
  %v140 = vpop.f32.mrf.mxu0
  %v141 = vadd.f32 0.0, %v140
  %v142 = vpop.f32.mrf.mxu0
  %v143 = vadd.f32 0.0, %v142
  %144 = vmatmul.bf16.gmra.mxu0 %v105
  %v145 = vpop.f32.mrf.mxu0
  %v146 = vadd.f32 0.0, %v145
  %v147 = vpop.f32.mrf.mxu0
  %v148 = vadd.f32 0.0, %v147
  %149 = vmatmul.bf16.gmra.mxu0 %v108
  %v150 = vpop.f32.mrf.mxu0
  %v151 = vadd.f32 0.0, %v150
  %v152 = vpop.f32.mrf.mxu0
  %v153 = vadd.f32 0.0, %v152
  %154 = vmatmul.bf16.gmra.mxu0 %v111
  %v155 = vpop.f32.mrf.mxu0
  %v156 = vadd.f32 0.0, %v155
  %v157 = vpop.f32.mrf.mxu0
  %v158 = vadd.f32 0.0, %v157
  %159 = vmatmul.bf16.gmra.mxu0 %v114
  %v160 = vpop.f32.mrf.mxu0
  %v161 = vadd.f32 0.0, %v160
  %v162 = vpop.f32.mrf.mxu0
  %v163 = vadd.f32 0.0, %v162
  %164 = vmatmul.bf16.gmra.mxu0 %v117
  %v165 = vpop.f32.mrf.mxu0
  %v166 = vadd.f32 0.0, %v165
  %v167 = vpop.f32.mrf.mxu0
  %v168 = vadd.f32 0.0, %v167
  %169 = vmatmul.bf16.gmra.mxu0 %v120
  %v170 = vpop.f32.mrf.mxu0
  %v171 = vadd.f32 0.0, %v170
  %v172 = vpop.f32.mrf.mxu0
  %v173 = vadd.f32 0.0, %v172
  %174 = vdwg.mxu0
  %v175 = vpack.c.bf16 %v136, %v136
  %v176 = vpack.c.bf16 %v138, %v138
  %v177 = vpack.c.bf16 %v141, %v141
  %v178 = vpack.c.bf16 %v143, %v143
  %v179 = vpack.c.bf16 %v146, %v146
  %v180 = vpack.c.bf16 %v148, %v148
  %v181 = vpack.c.bf16 %v151, %v151
  %v182 = vpack.c.bf16 %v153, %v153
  %v183 = vpack.c.bf16 %v156, %v156
  %v184 = vpack.c.bf16 %v158, %v158
  %v185 = vpack.c.bf16 %v161, %v161
  %v186 = vpack.c.bf16 %v163, %v163
  %v187 = vpack.c.bf16 %v166, %v166
  %v188 = vpack.c.bf16 %v168, %v168
  %v189 = vpack.c.bf16 %v171, %v171
  %v190 = vpack.c.bf16 %v173, %v173
  %191 = vst [vmem:[%s4] sm:$0xf] %v175
  %192 = vst [vmem:[%s4 + $0x4] sm:$0xf] %v176
  %193 = vst [vmem:[%s4 + $0x8] sm:$0xf] %v177
  %194 = vst [vmem:[%s4 + $0xc] sm:$0xf] %v178
  %195 = vst [vmem:[%s4 + $0x10] sm:$0xf] %v179
  %196 = vst [vmem:[%s4 + $0x14] sm:$0xf] %v180
  %197 = vst [vmem:[%s4 + $0x18] sm:$0xf] %v181
  %198 = vst [vmem:[%s4 + $0x1c] sm:$0xf] %v182
  %199 = vst [vmem:[%s4 + $0x20] sm:$0xf] %v183
  %200 = vst [vmem:[%s4 + $0x24] sm:$0xf] %v184
  %201 = vst [vmem:[%s4 + $0x28] sm:$0xf] %v185
  %202 = vst [vmem:[%s4 + $0x2c] sm:$0xf] %v186
  %203 = vst [vmem:[%s4 + $0x30] sm:$0xf] %v187
  %204 = vst [vmem:[%s4 + $0x34] sm:$0xf] %v188
  %205 = vst [vmem:[%s4 + $0x38] sm:$0xf] %v189
  %206 = vst [vmem:[%s4 + $0x3c] sm:$0xf] %v190
  %v207 = vadd.f32 %v136, %v138
  %v208 = vadd.f32 %v207, %v141
  %v209 = vadd.f32 %v208, %v143
  %v210 = vadd.f32 %v209, %v146
  %v211 = vadd.f32 %v210, %v148
  %v212 = vadd.f32 %v211, %v151
  %v213 = vadd.f32 %v212, %v153
  %v214 = vadd.f32 %v213, %v156
  %v215 = vadd.f32 %v214, %v158
  %v216 = vadd.f32 %v215, %v161
  %v217 = vadd.f32 %v216, %v163
  %v218 = vadd.f32 %v217, %v166
  %v219 = vadd.f32 %v218, %v168
  %v220 = vadd.f32 %v219, %v171
  %v221 = vadd.f32 %v220, %v173
  %v222 = vrot.slane %v221, 4
  %v223 = vadd.f32 %v221, %v222
  %v224 = vrot.slane %v223, 2
  %v225 = vadd.f32 %v223, %v224
  %v226 = vrot.slane %v225, 1
  %v227 = vadd.f32 %v225, %v226
  %v228 = vmul.f32 %v136, %v136
  %v229 = vmul.f32 %v138, %v138
  %v230 = vmul.f32 %v141, %v141
  %v231 = vmul.f32 %v143, %v143
  %v232 = vmul.f32 %v146, %v146
  %v233 = vmul.f32 %v148, %v148
  %v234 = vmul.f32 %v151, %v151
  %v235 = vmul.f32 %v153, %v153
  %v236 = vmul.f32 %v156, %v156
  %v237 = vmul.f32 %v158, %v158
  %v238 = vmul.f32 %v161, %v161
  %v239 = vmul.f32 %v163, %v163
  %v240 = vmul.f32 %v166, %v166
  %v241 = vmul.f32 %v168, %v168
  %v242 = vmul.f32 %v171, %v171
  %v243 = vmul.f32 %v173, %v173
  %v244 = vadd.f32 %v228, %v229
  %v245 = vadd.f32 %v244, %v230
  %v246 = vadd.f32 %v245, %v231
  %v247 = vadd.f32 %v246, %v232
  %v248 = vadd.f32 %v247, %v233
  %v249 = vadd.f32 %v248, %v234
  %v250 = vadd.f32 %v249, %v235
  %v251 = vadd.f32 %v250, %v236
  %v252 = vadd.f32 %v251, %v237
  %v253 = vadd.f32 %v252, %v238
  %v254 = vadd.f32 %v253, %v239
  %v255 = vadd.f32 %v254, %v240
  %v256 = vadd.f32 %v255, %v241
  %v257 = vadd.f32 %v256, %v242
  %v258 = vadd.f32 %v257, %v243
  %v259 = vrot.slane %v258, 4
  %v260 = vadd.f32 %v258, %v259
  %v261 = vrot.slane %v260, 2
  %v262 = vadd.f32 %v260, %v261
  %v263 = vrot.slane %v262, 1
  %v264 = vadd.f32 %v262, %v263
  %vm265 = vcmask 1040384
  %v266 = vsel %vm265, %v227, %v264
  %267 = vst [vmem:[%s5] sm:$0x3] %v266
  %v268 = vld [vmem:[%s1] sm:$0xf]
  %v269 = vld [vmem:[%s1 + $0x4] sm:$0xf]
  %v270 = vld [vmem:[%s1 + $0x8] sm:$0xf]
  %v271 = vld [vmem:[%s1 + $0xc] sm:$0xf]
  %v272 = vld [vmem:[%s1 + $0x10] sm:$0xf]
  %v273 = vld [vmem:[%s1 + $0x14] sm:$0xf]
  %v274 = vld [vmem:[%s1 + $0x18] sm:$0xf]
  %v275 = vld [vmem:[%s1 + $0x1c] sm:$0xf]
  %v276 = vld [vmem:[%s1 + $0x20] sm:$0xf]
  %v277 = vld [vmem:[%s1 + $0x24] sm:$0xf]
  %v278 = vld [vmem:[%s1 + $0x28] sm:$0xf]
  %v279 = vld [vmem:[%s1 + $0x2c] sm:$0xf]
  %v280 = vld [vmem:[%s1 + $0x30] sm:$0xf]
  %v281 = vld [vmem:[%s1 + $0x34] sm:$0xf]
  %v282 = vld [vmem:[%s1 + $0x38] sm:$0xf]
  %v283 = vld [vmem:[%s1 + $0x3c] sm:$0xf]
  %v284 = vld [vmem:[%s3] sm:$0x3]
  %v301 = vunpack.c.l.b16 %v268
  %v302 = vunpack.c.l.b16 %v269
  %v303 = vunpack.c.l.b16 %v270
  %v304 = vunpack.c.l.b16 %v271
  %v305 = vunpack.c.l.b16 %v272
  %v306 = vunpack.c.l.b16 %v273
  %v307 = vunpack.c.l.b16 %v274
  %v308 = vunpack.c.l.b16 %v275
  %v309 = vunpack.c.l.b16 %v276
  %v310 = vunpack.c.l.b16 %v277
  %v311 = vunpack.c.l.b16 %v278
  %v312 = vunpack.c.l.b16 %v279
  %v313 = vunpack.c.l.b16 %v280
  %v314 = vunpack.c.l.b16 %v281
  %v315 = vunpack.c.l.b16 %v282
  %v316 = vunpack.c.l.b16 %v283
  %v317 = vpack.c.b16 %v302, %v301
  %v318 = vpack.c.b16 %v304, %v303
  %v319 = vpack.c.b16 %v306, %v305
  %v320 = vpack.c.b16 %v308, %v307
  %v321 = vpack.c.b16 %v310, %v309
  %v322 = vpack.c.b16 %v312, %v311
  %v323 = vpack.c.b16 %v314, %v313
  %v324 = vpack.c.b16 %v316, %v315
  %vm325 = vcmask 31744
  %v327 = vsel %vm325, %v317, 0
  %v330 = vsel %vm325, %v318, 0
  %v333 = vsel %vm325, %v319, 0
  %v336 = vsel %vm325, %v320, 0
  %v339 = vsel %vm325, %v321, 0
  %v342 = vsel %vm325, %v322, 0
  %v345 = vsel %vm325, %v323, 0
  %v348 = vsel %vm325, %v324, 0
  %v351 = vsel %vm122, %v284, 0
  %353 = vmatpush.bf16.msra.mxu0 0
  %354 = vmatpush.bf16.msra.mxu0 0
  %355 = vmatpush.bf16.msra.mxu0 0
  %356 = vmatpush.bf16.msra.mxu0 0
  %357 = vmatpush.bf16.msra.mxu0 0
  %358 = vmatpush.bf16.msra.mxu0 0
  %359 = vmatpush.bf16.msra.mxu0 0
  %360 = vmatpush.bf16.msra.mxu0 %v351
  %361 = vmatmul.bf16.gmra.mxu0 %v327
  %v362 = vpop.f32.mrf.mxu0
  %v363 = vadd.f32 0.0, %v362
  %v364 = vpop.f32.mrf.mxu0
  %v365 = vadd.f32 0.0, %v364
  %366 = vmatmul.bf16.gmra.mxu0 %v330
  %v367 = vpop.f32.mrf.mxu0
  %v368 = vadd.f32 0.0, %v367
  %v369 = vpop.f32.mrf.mxu0
  %v370 = vadd.f32 0.0, %v369
  %371 = vmatmul.bf16.gmra.mxu0 %v333
  %v372 = vpop.f32.mrf.mxu0
  %v373 = vadd.f32 0.0, %v372
  %v374 = vpop.f32.mrf.mxu0
  %v375 = vadd.f32 0.0, %v374
  %376 = vmatmul.bf16.gmra.mxu0 %v336
  %v377 = vpop.f32.mrf.mxu0
  %v378 = vadd.f32 0.0, %v377
  %v379 = vpop.f32.mrf.mxu0
  %v380 = vadd.f32 0.0, %v379
  %381 = vmatmul.bf16.gmra.mxu0 %v339
  %v382 = vpop.f32.mrf.mxu0
  %v383 = vadd.f32 0.0, %v382
  %v384 = vpop.f32.mrf.mxu0
  %v385 = vadd.f32 0.0, %v384
  %386 = vmatmul.bf16.gmra.mxu0 %v342
  %v387 = vpop.f32.mrf.mxu0
  %v388 = vadd.f32 0.0, %v387
  %v389 = vpop.f32.mrf.mxu0
  %v390 = vadd.f32 0.0, %v389
  %391 = vmatmul.bf16.gmra.mxu0 %v345
  %v392 = vpop.f32.mrf.mxu0
  %v393 = vadd.f32 0.0, %v392
  %v394 = vpop.f32.mrf.mxu0
  %v395 = vadd.f32 0.0, %v394
  %396 = vmatmul.bf16.gmra.mxu0 %v348
  %v397 = vpop.f32.mrf.mxu0
  %v398 = vadd.f32 0.0, %v397
  %v399 = vpop.f32.mrf.mxu0
  %v400 = vadd.f32 0.0, %v399
  %401 = vdwg.mxu0
  %v402 = vadd.f32 %v363, %v365
  %v403 = vadd.f32 %v402, %v368
  %v404 = vadd.f32 %v403, %v370
  %v405 = vadd.f32 %v404, %v373
  %v406 = vadd.f32 %v405, %v375
  %v407 = vadd.f32 %v406, %v378
  %v408 = vadd.f32 %v407, %v380
  %v409 = vadd.f32 %v408, %v383
  %v410 = vadd.f32 %v409, %v385
  %v411 = vadd.f32 %v410, %v388
  %v412 = vadd.f32 %v411, %v390
  %v413 = vadd.f32 %v412, %v393
  %v414 = vadd.f32 %v413, %v395
  %v415 = vadd.f32 %v414, %v398
  %v416 = vadd.f32 %v415, %v400
  %v417 = vrot.slane %v416, 4
  %v418 = vadd.f32 %v416, %v417
  %v419 = vrot.slane %v418, 2
  %v420 = vadd.f32 %v418, %v419
  %v421 = vrot.slane %v420, 1
  %v422 = vadd.f32 %v420, %v421
  %v423 = vmul.f32 %v363, %v363
  %v424 = vmul.f32 %v365, %v365
  %v425 = vmul.f32 %v368, %v368
  %v426 = vmul.f32 %v370, %v370
  %v427 = vmul.f32 %v373, %v373
  %v428 = vmul.f32 %v375, %v375
  %v429 = vmul.f32 %v378, %v378
  %v430 = vmul.f32 %v380, %v380
  %v431 = vmul.f32 %v383, %v383
  %v432 = vmul.f32 %v385, %v385
  %v433 = vmul.f32 %v388, %v388
  %v434 = vmul.f32 %v390, %v390
  %v435 = vmul.f32 %v393, %v393
  %v436 = vmul.f32 %v395, %v395
  %v437 = vmul.f32 %v398, %v398
  %v438 = vmul.f32 %v400, %v400
  %v439 = vadd.f32 %v423, %v424
  %v440 = vadd.f32 %v439, %v425
  %v441 = vadd.f32 %v440, %v426
  %v442 = vadd.f32 %v441, %v427
  %v443 = vadd.f32 %v442, %v428
  %v444 = vadd.f32 %v443, %v429
  %v445 = vadd.f32 %v444, %v430
  %v446 = vadd.f32 %v445, %v431
  %v447 = vadd.f32 %v446, %v432
  %v448 = vadd.f32 %v447, %v433
  %v449 = vadd.f32 %v448, %v434
  %v450 = vadd.f32 %v449, %v435
  %v451 = vadd.f32 %v450, %v436
  %v452 = vadd.f32 %v451, %v437
  %v453 = vadd.f32 %v452, %v438
  %v454 = vrot.slane %v453, 4
  %v455 = vadd.f32 %v453, %v454
  %v456 = vrot.slane %v455, 2
  %v457 = vadd.f32 %v455, %v456
  %v458 = vrot.slane %v457, 1
  %v459 = vadd.f32 %v457, %v458
  %v460 = vsel %vm265, %v422, %v459
  %461 = vst [vmem:[%s6] sm:$0x3] %v460
  // Predicated region
  $region18: #{down_block_forward.3} parent=0 // pred_check
    _
  $region19: #{down_block_forward.3} parent=0 // pred_check_branch
    %463 = sbr.rel (0) target = $region21
  $region20: #{down_block_forward.3} parent=0 // pred_region
    _
  $region21: #{down_block_forward.3} parent=0 // pred_fallthru
    _
  // Predicated region
  $region22: #{down_block_forward.3} parent=0 // pred_check
    _
  $region23: #{down_block_forward.3} parent=0 // pred_check_branch
    %465 = sbr.rel (0) target = $region25
  $region24: #{down_block_forward.3} parent=0 // pred_region
    _
  $region25: #{down_block_forward.3} parent=0 // pred_fallthru
    _
  // Predicated region
  $region26: #{down_block_forward.3} parent=0 // pred_check
    _
  $region27: #{down_block_forward.3} parent=0 // pred_check_branch
    %467 = sbr.rel (0) target = $region29
  $region28: #{down_block_forward.3} parent=0 // pred_region
    _
  $region29: #{down_block_forward.3} parent=0 // pred_fallthru
    _
  // Predicated region
  $region30: #{down_block_forward.3} parent=0 // pred_check
    _
  $region31: #{down_block_forward.3} parent=0 // pred_check_branch
    %469 = sbr.rel (0) target = $region33
  $region32: #{down_block_forward.3} parent=0 // pred_region
    _
  $region33: #{down_block_forward.3} parent=0 // pred_fallthru
    _
  // Predicated region
  $region34: #{down_block_forward.3} parent=0 // pred_check
    _
  $region35: #{down_block_forward.3} parent=0 // pred_check_branch
    %471 = sbr.rel (0) target = $region37
  $region36: #{down_block_forward.3} parent=0 // pred_region
    _
  $region37: #{down_block_forward.3} parent=0 // pred_fallthru
    _
  // Predicated region
  $region38: #{down_block_forward.3} parent=0 // pred_check
    _
  $region39: #{down_block_forward.3} parent=0 // pred_check_branch
    %473 = sbr.rel (0) target = $region41
  $region40: #{down_block_forward.3} parent=0 // pred_region
    _
  $region41: #{down_block_forward.3} parent=0 // pred_fallthru
    _

// kernel: down_block_forward.5
$region0: #{down_block_forward.5}
  #allocation0 [shape = 'u32[]', space=smem, size = 0x4, offset = 0x4, fixed_abs, tag = 'smem constant byte address 0x4 - core index']
  #allocation1 [shape = 'u32[72,128]{1,0:T(1,128)}', space=vmem, size = 0x9000, scoped, tag = 'internal scratch']
  %s0 = inlined_call_operand.vmem [shape: bf16[2,64,128], index: 0, kind: input, shape index: {}]
  %s1 = inlined_call_operand.vmem [shape: bf16[2,64,4], index: 1, kind: input, shape index: {}]
  %s2 = inlined_call_operand.vmem [shape: bf16[4,128], index: 2, kind: input, shape index: {}]
  %s3 = inlined_call_operand.vmem [shape: f32[1,128], index: 3, kind: input, shape index: {}]
  %s4 = inlined_call_operand.vmem [shape: f32[1,128], index: 4, kind: input, shape index: {}]
  %s5 = inlined_call_operand.vmem [shape: f32[1,128], index: 5, kind: input, shape index: {}]
  %s6 = inlined_call_operand.vmem [shape: f32[1,128], index: 6, kind: input, shape index: {}]
  %s7 = inlined_call_operand.vmem [shape: f32[2,64,128], index: 7, kind: output, shape index: {}]
  %s8 = sld [smem:[#allocation0]]
  $region61: #{down_block_forward.5} parent=0
    _
  %s10 = ssub.s32 1, %s8
  %s11 = scalar_select 0, %s10, %s8
  loop: start=0, step=1, limit=4
  $region2: #{down_block_forward.5} parent=0 // loop_pre_header
    _
  $region3: #{down_block_forward.5} parent=0 // loop_header
    %s13 = sphi 0, %s17
    %p14 = scmp.ge.s32.totalorder %s13, 4
    %s23 = sphi 0, %s25
    %s26 = sphi 0, %s23
    %s27 = sphi 0, %s26
    %s43 = sphi 0, %s27
    %s49 = sphi 0, %s51
    %s52 = sphi 0, %s49
    %s53 = sphi 0, %s52
    %s69 = sphi 0, %s53
    %s73 = sphi 0, %s73
    %s75 = sphi 0, %s73
    %s76 = sphi 0, %s75
    %s90 = sphi 0, %s76
    %s94 = sphi 0, %s94
    %s96 = sphi 0, %s94
    %s97 = sphi 0, %s96
    %s111 = sphi 0, %s97
    %s115 = sphi 0, %s115
    %s117 = sphi 0, %s115
    %s118 = sphi 0, %s117
    %s132 = sphi 0, %s118
    %s136 = sphi 0, %s136
    %s138 = sphi 0, %s136
    %s139 = sphi 0, %s138
    %s153 = sphi 0, %s139
    %s157 = sphi 0, %s157
    %s159 = sphi 0, %s157
    %s160 = sphi 0, %s159
    %s174 = sphi 0, %s160
    %s180 = sphi 0, %s182
    %s183 = sphi 0, %s180
    %s184 = sphi 0, %s183
    %s200 = sphi 0, %s184
  $region4: #{down_block_forward.5} parent=0 // loop_header_branch
    %16 = sbr.rel (%p14) target = $region8
  $region5: #{down_block_forward.5} parent=0 // loop_body
    %s18 = ssub.s32 %s13, 1
    %s19 = ssub.s32 %s13, 2
    %s20 = sadd.s32 %s13, 1
    %s21 = ssub.s32 %s13, %s20
    %p22 = scmp.eq.s32.totalorder %s21, 0
    %s24 = sadd.s32 %s23, 1
    %s25 = scalar_select %p22, %s23, %s24
    %p28 = pneg %p22
    %p29 = scmp.eq.s32.totalorder %s13, 1
    %p30 = por %p28, %p29
    %p31 = scmp.ne.s32.totalorder %s23, %s26
    %p32 = scmp.eq.s32.totalorder %s13, 0
    %p33 = por %p31, %p32
    %p34 = scmp.ne.s32.totalorder %s23, %s26
    %p35 = scmp.eq.s32.totalorder %s18, 1
    %p36 = por %p34, %p35
    %p37 = scmp.ne.s32.totalorder %s26, %s27
    %p38 = scmp.eq.s32.totalorder %s18, 0
    %p39 = por %p37, %p38
    %p40 = scmp.ne.s32.totalorder %s26, %s27
    %p41 = scmp.eq.s32.totalorder %s19, 1
    %p42 = por %p40, %p41
    %p44 = scmp.ne.s32.totalorder %s27, %s43
    %p45 = scmp.eq.s32.totalorder %s19, 0
    %p46 = por %p44, %p45
    %s47 = ssub.s32 %s13, %s20
    %p48 = scmp.eq.s32.totalorder %s47, 0
    %s50 = sadd.s32 %s49, 1
    %s51 = scalar_select %p48, %s49, %s50
    %p54 = pneg %p48
    %p55 = scmp.eq.s32.totalorder %s13, 1
    %p56 = por %p54, %p55
    %p57 = scmp.ne.s32.totalorder %s49, %s52
    %p58 = scmp.eq.s32.totalorder %s13, 0
    %p59 = por %p57, %p58
    %p60 = scmp.ne.s32.totalorder %s49, %s52
    %p61 = scmp.eq.s32.totalorder %s18, 1
    %p62 = por %p60, %p61
    %p63 = scmp.ne.s32.totalorder %s52, %s53
    %p64 = scmp.eq.s32.totalorder %s18, 0
    %p65 = por %p63, %p64
    %p66 = scmp.ne.s32.totalorder %s52, %s53
    %p67 = scmp.eq.s32.totalorder %s19, 1
    %p68 = por %p66, %p67
    %p70 = scmp.ne.s32.totalorder %s53, %s69
    %p71 = scmp.eq.s32.totalorder %s19, 0
    %p72 = por %p70, %p71
    %s74 = sadd.s32 %s73, 1
    %p77 = scmp.eq.s32.totalorder %s13, 1
    %p78 = scmp.ne.s32.totalorder %s73, %s75
    %p79 = scmp.eq.s32.totalorder %s13, 0
    %p80 = por %p78, %p79
    %p81 = scmp.ne.s32.totalorder %s73, %s75
    %p82 = scmp.eq.s32.totalorder %s18, 1
    %p83 = por %p81, %p82
    %p84 = scmp.ne.s32.totalorder %s75, %s76
    %p85 = scmp.eq.s32.totalorder %s18, 0
    %p86 = por %p84, %p85
    %p87 = scmp.ne.s32.totalorder %s75, %s76
    %p88 = scmp.eq.s32.totalorder %s19, 1
    %p89 = por %p87, %p88
    %p91 = scmp.ne.s32.totalorder %s76, %s90
    %p92 = scmp.eq.s32.totalorder %s19, 0
    %p93 = por %p91, %p92
    %s95 = sadd.s32 %s94, 1
    %p98 = scmp.eq.s32.totalorder %s13, 1
    %p99 = scmp.ne.s32.totalorder %s94, %s96
    %p100 = scmp.eq.s32.totalorder %s13, 0
    %p101 = por %p99, %p100
    %p102 = scmp.ne.s32.totalorder %s94, %s96
    %p103 = scmp.eq.s32.totalorder %s18, 1
    %p104 = por %p102, %p103
    %p105 = scmp.ne.s32.totalorder %s96, %s97
    %p106 = scmp.eq.s32.totalorder %s18, 0
    %p107 = por %p105, %p106
    %p108 = scmp.ne.s32.totalorder %s96, %s97
    %p109 = scmp.eq.s32.totalorder %s19, 1
    %p110 = por %p108, %p109
    %p112 = scmp.ne.s32.totalorder %s97, %s111
    %p113 = scmp.eq.s32.totalorder %s19, 0
    %p114 = por %p112, %p113
    %s116 = sadd.s32 %s115, 1
    %p119 = scmp.eq.s32.totalorder %s13, 1
    %p120 = scmp.ne.s32.totalorder %s115, %s117
    %p121 = scmp.eq.s32.totalorder %s13, 0
    %p122 = por %p120, %p121
    %p123 = scmp.ne.s32.totalorder %s115, %s117
    %p124 = scmp.eq.s32.totalorder %s18, 1
    %p125 = por %p123, %p124
    %p126 = scmp.ne.s32.totalorder %s117, %s118
    %p127 = scmp.eq.s32.totalorder %s18, 0
    %p128 = por %p126, %p127
    %p129 = scmp.ne.s32.totalorder %s117, %s118
    %p130 = scmp.eq.s32.totalorder %s19, 1
    %p131 = por %p129, %p130
    %p133 = scmp.ne.s32.totalorder %s118, %s132
    %p134 = scmp.eq.s32.totalorder %s19, 0
    %p135 = por %p133, %p134
    %s137 = sadd.s32 %s136, 1
    %p140 = scmp.eq.s32.totalorder %s13, 1
    %p141 = scmp.ne.s32.totalorder %s136, %s138
    %p142 = scmp.eq.s32.totalorder %s13, 0
    %p143 = por %p141, %p142
    %p144 = scmp.ne.s32.totalorder %s136, %s138
    %p145 = scmp.eq.s32.totalorder %s18, 1
    %p146 = por %p144, %p145
    %p147 = scmp.ne.s32.totalorder %s138, %s139
    %p148 = scmp.eq.s32.totalorder %s18, 0
    %p149 = por %p147, %p148
    %p150 = scmp.ne.s32.totalorder %s138, %s139
    %p151 = scmp.eq.s32.totalorder %s19, 1
    %p152 = por %p150, %p151
    %p154 = scmp.ne.s32.totalorder %s139, %s153
    %p155 = scmp.eq.s32.totalorder %s19, 0
    %p156 = por %p154, %p155
    %s158 = sadd.s32 %s157, 1
    %p161 = scmp.eq.s32.totalorder %s13, 1
    %p162 = scmp.ne.s32.totalorder %s157, %s159
    %p163 = scmp.eq.s32.totalorder %s13, 0
    %p164 = por %p162, %p163
    %p165 = scmp.ne.s32.totalorder %s157, %s159
    %p166 = scmp.eq.s32.totalorder %s18, 1
    %p167 = por %p165, %p166
    %p168 = scmp.ne.s32.totalorder %s159, %s160
    %p169 = scmp.eq.s32.totalorder %s18, 0
    %p170 = por %p168, %p169
    %p171 = scmp.ne.s32.totalorder %s159, %s160
    %p172 = scmp.eq.s32.totalorder %s19, 1
    %p173 = por %p171, %p172
    %p175 = scmp.ne.s32.totalorder %s160, %s174
    %p176 = scmp.eq.s32.totalorder %s19, 0
    %p177 = por %p175, %p176
    %s178 = ssub.s32 %s13, %s20
    %p179 = scmp.eq.s32.totalorder %s178, 0
    %s181 = sadd.s32 %s180, 1
    %s182 = scalar_select %p179, %s180, %s181
    %p185 = pneg %p179
    %p186 = scmp.eq.s32.totalorder %s13, 1
    %p187 = por %p185, %p186
    %p188 = scmp.ne.s32.totalorder %s180, %s183
    %p189 = scmp.eq.s32.totalorder %s13, 0
    %p190 = por %p188, %p189
    %p191 = scmp.ne.s32.totalorder %s180, %s183
    %p192 = scmp.eq.s32.totalorder %s18, 1
    %p193 = por %p191, %p192
    %p194 = scmp.ne.s32.totalorder %s183, %s184
    %p195 = scmp.eq.s32.totalorder %s18, 0
    %p196 = por %p194, %p195
    %p197 = scmp.ne.s32.totalorder %s183, %s184
    %p198 = scmp.eq.s32.totalorder %s19, 1
    %p199 = por %p197, %p198
    %p201 = scmp.ne.s32.totalorder %s184, %s200
    %p202 = scmp.eq.s32.totalorder %s19, 0
    %p203 = por %p201, %p202
    %p204 = scmp.le.s32.totalorder 1, %s13
    %p205 = scmp.lt.s32.totalorder %s13, 3
    %p206 = pnand %p204, %p205
    %p207 = pneg %p206
    // Predicated region
    $region9: #{down_block_forward.5} parent=5 // pred_check
      _
    $region10: #{down_block_forward.5} parent=5 // pred_check_branch
      %209 = sbr.rel (%p206) target = $region12
    $region11: #{down_block_forward.5} parent=5 // pred_region
      %s210 = ssub.s32 %s13, 1
      // Predicated region
      $region13: #{down_block_forward.5} parent=11 // pred_check
        %p211 = pneg %p86
      $region14: #{down_block_forward.5} parent=11 // pred_check_branch
        %213 = sbr.rel (%p211) target = $region16
      $region15: #{down_block_forward.5} parent=11 // pred_region
        _
      $region16: #{down_block_forward.5} parent=11 // pred_fallthru
        _
      // Predicated region
      $region17: #{down_block_forward.5} parent=11 // pred_check
        %p214 = pneg %p107
      $region18: #{down_block_forward.5} parent=11 // pred_check_branch
        %216 = sbr.rel (%p214) target = $region20
      $region19: #{down_block_forward.5} parent=11 // pred_region
        _
      $region20: #{down_block_forward.5} parent=11 // pred_fallthru
        _
      // Predicated region
      $region21: #{down_block_forward.5} parent=11 // pred_check
        %p217 = pneg %p128
      $region22: #{down_block_forward.5} parent=11 // pred_check_branch
        %219 = sbr.rel (%p217) target = $region24
      $region23: #{down_block_forward.5} parent=11 // pred_region
        _
      $region24: #{down_block_forward.5} parent=11 // pred_fallthru
        _
      // Predicated region
      $region25: #{down_block_forward.5} parent=11 // pred_check
        %p220 = pneg %p149
      $region26: #{down_block_forward.5} parent=11 // pred_check_branch
        %222 = sbr.rel (%p220) target = $region28
      $region27: #{down_block_forward.5} parent=11 // pred_region
        _
      $region28: #{down_block_forward.5} parent=11 // pred_fallthru
        _
      // Predicated region
      $region29: #{down_block_forward.5} parent=11 // pred_check
        %p223 = pneg %p170
      $region30: #{down_block_forward.5} parent=11 // pred_check_branch
        %225 = sbr.rel (%p223) target = $region32
      $region31: #{down_block_forward.5} parent=11 // pred_region
        _
      $region32: #{down_block_forward.5} parent=11 // pred_fallthru
        _
    $region12: #{down_block_forward.5} parent=5 // pred_fallthru
      _
    %p226 = scmp.lt.s32.totalorder %s13, 2
    // Predicated region
    $region33: #{down_block_forward.5} parent=5 // pred_check
      %p227 = pneg %p226
    $region34: #{down_block_forward.5} parent=5 // pred_check_branch
      %229 = sbr.rel (%p227) target = $region36
    $region35: #{down_block_forward.5} parent=5 // pred_region
      // Predicated region
      $region37: #{down_block_forward.5} parent=35 // pred_check
        %p230 = pneg %p33
      $region38: #{down_block_forward.5} parent=35 // pred_check_branch
        %232 = sbr.rel (%p230) target = $region40
      $region39: #{down_block_forward.5} parent=35 // pred_region
        %p233 = scmp.lt.s32.totalorder %s13, 1
        %s234 = scalar_select %p233, %s13, 1
        %s235 = smul.addr %s234, 8
        %s236 = smul.addr %s235, 4
        %s237 = scalar_lea.vmem %s0, %s236
      $region40: #{down_block_forward.5} parent=35 // pred_fallthru
        _
      // Predicated region
      $region41: #{down_block_forward.5} parent=35 // pred_check
        %p238 = pneg %p59
      $region42: #{down_block_forward.5} parent=35 // pred_check_branch
        %240 = sbr.rel (%p238) target = $region44
      $region43: #{down_block_forward.5} parent=35 // pred_region
        %p241 = scmp.lt.s32.totalorder %s13, 1
        %s242 = scalar_select %p241, %s13, 1
        %s243 = smul.addr %s242, 8
        %s244 = smul.addr %s243, 4
        %s245 = scalar_lea.vmem %s1, %s244
      $region44: #{down_block_forward.5} parent=35 // pred_fallthru
        _
    $region36: #{down_block_forward.5} parent=5 // pred_fallthru
      _
    %p246 = scmp.le.s32.totalorder 1, %s13
    %p247 = scmp.lt.s32.totalorder %s13, 3
    %p248 = pnand %p246, %p247
    %p249 = pneg %p248
    // Predicated region
    $region45: #{down_block_forward.5} parent=5 // pred_check
      _
    $region46: #{down_block_forward.5} parent=5 // pred_check_branch
      %251 = sbr.rel (%p248) target = $region48
    $region47: #{down_block_forward.5} parent=5 // pred_region
      %s252 = ssub.s32 %s13, 1
      %p253 = scmp.lt.s32.totalorder %s18, 1
      %s254 = scalar_select %p253, %s18, 1
      %s255 = smul.addr %s254, 8
      %s256 = smul.addr %s255, 4
      %s257 = scalar_lea.vmem %s0, %s256
      %p258 = pneg %p39
      %p259 = pneg %p36
      %p260 = scmp.lt.s32.totalorder %s18, 1
      %s261 = scalar_select %p260, %s18, 1
      %s262 = smul.addr %s261, 8
      %s263 = smul.addr %s262, 4
      %s264 = scalar_lea.vmem %s1, %s263
      %p265 = pneg %p65
      %p266 = pneg %p62
      %p267 = pneg %p86
      %p268 = pneg %p83
      %p269 = pneg %p107
      %p270 = pneg %p104
      %p271 = pneg %p128
      %p272 = pneg %p125
      %p273 = pneg %p149
      %p274 = pneg %p146
      %p275 = pneg %p170
      %p276 = pneg %p167
      %p277 = pneg %p196
      %p278 = pneg %p193
      %p279 = scmp.lt.s32.totalorder %s18, 1
      %s280 = scalar_select %p279, %s18, 1
      %s281 = smul.addr %s280, 8
      %s282 = smul.addr %s281, 8
      %s283 = scalar_lea.vmem %s7, %s282
      %p284 = scmp.lt.s32.totalorder %s18, 1
      %s285 = scalar_select %p284, %s18, 1
      %s286 = smul.addr %s285, 8
      %s287 = smul.addr %s286, 4
      %s288 = scalar_lea.vmem %s0, %s287
      %p289 = scmp.lt.s32.totalorder %s18, 1
      %s290 = scalar_select %p289, %s18, 1
      %s291 = smul.addr %s290, 8
      %s292 = smul.addr %s291, 4
      %s293 = scalar_lea.vmem %s1, %s292
      %p294 = scmp.lt.s32.totalorder %s18, 1
      %s295 = scalar_select %p294, %s18, 1
      %s296 = smul.addr %s295, 8
      %s297 = smul.addr %s296, 8
      %s298 = scalar_lea.vmem %s7, %s297
      %v300 = vld [vmem:[%s288] sm:$0xf]
      %v301 = vld [vmem:[%s288 + $0x4] sm:$0xf]
      %v302 = vld [vmem:[%s288 + $0x8] sm:$0xf]
      %v303 = vld [vmem:[%s288 + $0xc] sm:$0xf]
      %v304 = vld [vmem:[%s288 + $0x10] sm:$0xf]
      %v305 = vld [vmem:[%s288 + $0x14] sm:$0xf]
      %v306 = vld [vmem:[%s288 + $0x18] sm:$0xf]
      %v307 = vld [vmem:[%s288 + $0x1c] sm:$0xf]
      %v308 = vunpack.c.l.bf16 %v300
      %v309 = vunpack.c.l.bf16 %v301
      %v310 = vunpack.c.l.bf16 %v302
      %v311 = vunpack.c.l.bf16 %v303
      %v312 = vunpack.c.l.bf16 %v304
      %v313 = vunpack.c.l.bf16 %v305
      %v314 = vunpack.c.l.bf16 %v306
      %v315 = vunpack.c.l.bf16 %v307
      %v316 = vld [vmem:[%s293] sm:$0xf]
      %v317 = vld [vmem:[%s293 + $0x4] sm:$0xf]
      %v318 = vld [vmem:[%s293 + $0x8] sm:$0xf]
      %v319 = vld [vmem:[%s293 + $0xc] sm:$0xf]
      %v320 = vld [vmem:[%s293 + $0x10] sm:$0xf]
      %v321 = vld [vmem:[%s293 + $0x14] sm:$0xf]
      %v322 = vld [vmem:[%s293 + $0x18] sm:$0xf]
      %v323 = vld [vmem:[%s293 + $0x1c] sm:$0xf]
      %v324 = vld [vmem:[%s2] sm:$0x3]
      %v333 = vunpack.c.l.b16 %v316
      %v334 = vunpack.c.l.b16 %v317
      %v335 = vunpack.c.l.b16 %v318
      %v336 = vunpack.c.l.b16 %v319
      %v337 = vunpack.c.l.b16 %v320
      %v338 = vunpack.c.l.b16 %v321
      %v339 = vunpack.c.l.b16 %v322
      %v340 = vunpack.c.l.b16 %v323
      %v341 = vpack.c.b16 %v334, %v333
      %v342 = vpack.c.b16 %v336, %v335
      %v343 = vpack.c.b16 %v338, %v337
      %v344 = vpack.c.b16 %v340, %v339
      %vm345 = vcmask 31744
      %v347 = vsel %vm345, %v341, 0
      %v350 = vsel %vm345, %v342, 0
      %v353 = vsel %vm345, %v343, 0
      %v356 = vsel %vm345, %v344, 0
      %vm358 = vcmask 1041408
      %v360 = vsel %vm358, %v324, 0
      %362 = vmatpush.bf16.msra.mxu0 0
      %363 = vmatpush.bf16.msra.mxu0 0
      %364 = vmatpush.bf16.msra.mxu0 0
      %365 = vmatpush.bf16.msra.mxu0 0
      %366 = vmatpush.bf16.msra.mxu0 0
      %367 = vmatpush.bf16.msra.mxu0 0
      %368 = vmatpush.bf16.msra.mxu0 0
      %369 = vmatpush.bf16.msra.mxu0 %v360
      %370 = vmatmul.bf16.gmra.mxu0 %v347
      %v371 = vpop.f32.mrf.mxu0
      %v372 = vadd.f32 0.0, %v371
      %v373 = vpop.f32.mrf.mxu0
      %v374 = vadd.f32 0.0, %v373
      %375 = vmatmul.bf16.gmra.mxu0 %v350
      %v376 = vpop.f32.mrf.mxu0
      %v377 = vadd.f32 0.0, %v376
      %v378 = vpop.f32.mrf.mxu0
      %v379 = vadd.f32 0.0, %v378
      %380 = vmatmul.bf16.gmra.mxu0 %v353
      %v381 = vpop.f32.mrf.mxu0
      %v382 = vadd.f32 0.0, %v381
      %v383 = vpop.f32.mrf.mxu0
      %v384 = vadd.f32 0.0, %v383
      %385 = vmatmul.bf16.gmra.mxu0 %v356
      %v386 = vpop.f32.mrf.mxu0
      %v387 = vadd.f32 0.0, %v386
      %v388 = vpop.f32.mrf.mxu0
      %v389 = vadd.f32 0.0, %v388
      %390 = vdwg.mxu0
      %v391 = vld [vmem:[%s3] sm:$0x1]
      %v393 = vperm.slane %v391, 0
      %v395 = vmul.f32 %v308, %v393
      %v396 = vmul.f32 %v309, %v393
      %v397 = vmul.f32 %v310, %v393
      %v398 = vmul.f32 %v311, %v393
      %v399 = vmul.f32 %v312, %v393
      %v400 = vmul.f32 %v313, %v393
      %v401 = vmul.f32 %v314, %v393
      %v402 = vmul.f32 %v315, %v393
      %v403 = vld [vmem:[%s4] sm:$0x1]
      %v405 = vperm.slane %v403, 0
      %v407 = vadd.f32 %v395, %v405
      %v408 = vadd.f32 %v396, %v405
      %v409 = vadd.f32 %v397, %v405
      %v410 = vadd.f32 %v398, %v405
      %v411 = vadd.f32 %v399, %v405
      %v412 = vadd.f32 %v400, %v405
      %v413 = vadd.f32 %v401, %v405
      %v414 = vadd.f32 %v402, %v405
      %v415 = vld [vmem:[%s5] sm:$0x1]
      %v417 = vperm.slane %v415, 0
      %v419 = vmul.f32 %v372, %v417
      %v420 = vmul.f32 %v374, %v417
      %v421 = vmul.f32 %v377, %v417
      %v422 = vmul.f32 %v379, %v417
      %v423 = vmul.f32 %v382, %v417
      %v424 = vmul.f32 %v384, %v417
      %v425 = vmul.f32 %v387, %v417
      %v426 = vmul.f32 %v389, %v417
      %v427 = vadd.f32 %v407, %v419
      %v428 = vadd.f32 %v408, %v420
      %v429 = vadd.f32 %v409, %v421
      %v430 = vadd.f32 %v410, %v422
      %v431 = vadd.f32 %v411, %v423
      %v432 = vadd.f32 %v412, %v424
      %v433 = vadd.f32 %v413, %v425
      %v434 = vadd.f32 %v414, %v426
      %v435 = vld [vmem:[%s6] sm:$0x1]
      %v437 = vperm.slane %v435, 0
      %v439 = vadd.f32 %v427, %v437
      %v440 = vadd.f32 %v428, %v437
      %v441 = vadd.f32 %v429, %v437
      %v442 = vadd.f32 %v430, %v437
      %v443 = vadd.f32 %v431, %v437
      %v444 = vadd.f32 %v432, %v437
      %v445 = vadd.f32 %v433, %v437
      %v446 = vadd.f32 %v434, %v437
      %v447 = vmax.f32 %v439, 0.0
      %v448 = vmax.f32 %v440, 0.0
      %v449 = vmax.f32 %v441, 0.0
      %v450 = vmax.f32 %v442, 0.0
      %v451 = vmax.f32 %v443, 0.0
      %v452 = vmax.f32 %v444, 0.0
      %v453 = vmax.f32 %v445, 0.0
      %v454 = vmax.f32 %v446, 0.0
      %455 = vst [vmem:[%s298] sm:$0xff] %v447
      %456 = vst [vmem:[%s298 + $0x8] sm:$0xff] %v448
      %457 = vst [vmem:[%s298 + $0x10] sm:$0xff] %v449
      %458 = vst [vmem:[%s298 + $0x18] sm:$0xff] %v450
      %459 = vst [vmem:[%s298 + $0x20] sm:$0xff] %v451
      %460 = vst [vmem:[%s298 + $0x28] sm:$0xff] %v452
      %461 = vst [vmem:[%s298 + $0x30] sm:$0xff] %v453
      %462 = vst [vmem:[%s298 + $0x38] sm:$0xff] %v454
      %p463 = scmp.lt.s32.totalorder %s18, 1
      %s464 = scalar_select %p463, %s18, 1
      %s465 = smul.addr %s464, 8
      %s466 = smul.addr %s465, 8
      %s467 = scalar_lea.vmem %s7, %s466
      // Predicated region
      $region49: #{down_block_forward.5} parent=47 // pred_check
        %p468 = pneg %p193
      $region50: #{down_block_forward.5} parent=47 // pred_check_branch
        %470 = sbr.rel (%p468) target = $region52
      $region51: #{down_block_forward.5} parent=47 // pred_region
        _
      $region52: #{down_block_forward.5} parent=47 // pred_fallthru
        _
    $region48: #{down_block_forward.5} parent=5 // pred_fallthru
      _
    %p471 = scmp.le.s32.totalorder 2, %s13
    // Predicated region
    $region53: #{down_block_forward.5} parent=5 // pred_check
      %p472 = pneg %p471
    $region54: #{down_block_forward.5} parent=5 // pred_check_branch
      %474 = sbr.rel (%p472) target = $region56
    $region55: #{down_block_forward.5} parent=5 // pred_region
      %s475 = ssub.s32 %s13, 2
      // Predicated region
      $region57: #{down_block_forward.5} parent=55 // pred_check
        %p476 = pneg %p199
      $region58: #{down_block_forward.5} parent=55 // pred_check_branch
        %478 = sbr.rel (%p476) target = $region60
      $region59: #{down_block_forward.5} parent=55 // pred_region
        %p479 = scmp.lt.s32.totalorder %s19, 1
        %s480 = scalar_select %p479, %s19, 1
        %s481 = smul.addr %s480, 8
        %s482 = smul.addr %s481, 8
        %s483 = scalar_lea.vmem %s7, %s482
      $region60: #{down_block_forward.5} parent=55 // pred_fallthru
        _
    $region56: #{down_block_forward.5} parent=5 // pred_fallthru
      _
  $region6: #{down_block_forward.5} parent=0 // loop_footer
    %s17 = sadd.s32 1, %s13
  $region7: #{down_block_forward.5} parent=0 // loop_footer_branch
    %12 = sbr.rel target = $region3
  $region8: #{down_block_forward.5} parent=0 // loop_exit
    _

// kernel: down_block_forward.4
$region0: #{down_block_forward.4}
  #allocation0 [shape = 'u32[]', space=smem, size = 0x4, offset = 0x4, fixed_abs, tag = 'smem constant byte address 0x4 - core index']
  #allocation1 [shape = 'u32[72,128]{1,0:T(1,128)}', space=vmem, size = 0x9000, scoped, tag = 'internal scratch']
  #allocation2 [shape = 'bf16[10,10,128]{2,1,0:T(8,128)(2,1)}', space=vmem, size = 0xa000, scoped, tag = 'scratch operand']
  %s0 = inlined_call_operand.vmem [shape: bf16[2,8,8,128], index: 0, kind: input, shape index: {}]
  %s1 = inlined_call_operand.vmem [shape: f32[1,128], index: 1, kind: input, shape index: {}]
  %s2 = inlined_call_operand.vmem [shape: f32[1,128], index: 2, kind: input, shape index: {}]
  %s3 = inlined_call_operand.vmem [shape: bf16[9,128,128], index: 3, kind: input, shape index: {}]
  %s4 = inlined_call_operand.vmem [shape: bf16[2,64,128], index: 4, kind: output, shape index: {0}]
  %s5 = inlined_call_operand.vmem [shape: f32[2,2,128], index: 5, kind: output, shape index: {1}]
  %6 = xla_tuple %s4, %s5
  %s7 = sld [smem:[#allocation0]]
  $region57: #{down_block_forward.4} parent=0
    _
  %s9 = ssub.s32 1, %s7
  %s10 = scalar_select 0, %s9, %s7
  loop: start=0, step=1, limit=4
  $region2: #{down_block_forward.4} parent=0 // loop_pre_header
    _
  $region3: #{down_block_forward.4} parent=0 // loop_header
    %s12 = sphi 0, %s16
    %p13 = scmp.ge.s32.totalorder %s12, 4
    %s22 = sphi 0, %s24
    %s25 = sphi 0, %s22
    %s26 = sphi 0, %s25
    %s42 = sphi 0, %s26
    %s46 = sphi 0, %s46
    %s48 = sphi 0, %s46
    %s49 = sphi 0, %s48
    %s63 = sphi 0, %s49
    %s67 = sphi 0, %s67
    %s69 = sphi 0, %s67
    %s70 = sphi 0, %s69
    %s84 = sphi 0, %s70
    %s88 = sphi 0, %s88
    %s90 = sphi 0, %s88
    %s91 = sphi 0, %s90
    %s105 = sphi 0, %s91
    %s111 = sphi 0, %s113
    %s114 = sphi 0, %s111
    %s115 = sphi 0, %s114
    %s131 = sphi 0, %s115
    %s137 = sphi 0, %s139
    %s140 = sphi 0, %s137
    %s141 = sphi 0, %s140
    %s157 = sphi 0, %s141
  $region4: #{down_block_forward.4} parent=0 // loop_header_branch
    %15 = sbr.rel (%p13) target = $region8
  $region5: #{down_block_forward.4} parent=0 // loop_body
    %s17 = ssub.s32 %s12, 1
    %s18 = ssub.s32 %s12, 2
    %s19 = sadd.s32 %s12, 1
    %s20 = ssub.s32 %s12, %s19
    %p21 = scmp.eq.s32.totalorder %s20, 0
    %s23 = sadd.s32 %s22, 1
    %s24 = scalar_select %p21, %s22, %s23
    %p27 = pneg %p21
    %p28 = scmp.eq.s32.totalorder %s12, 1
    %p29 = por %p27, %p28
    %p30 = scmp.ne.s32.totalorder %s22, %s25
    %p31 = scmp.eq.s32.totalorder %s12, 0
    %p32 = por %p30, %p31
    %p33 = scmp.ne.s32.totalorder %s22, %s25
    %p34 = scmp.eq.s32.totalorder %s17, 1
    %p35 = por %p33, %p34
    %p36 = scmp.ne.s32.totalorder %s25, %s26
    %p37 = scmp.eq.s32.totalorder %s17, 0
    %p38 = por %p36, %p37
    %p39 = scmp.ne.s32.totalorder %s25, %s26
    %p40 = scmp.eq.s32.totalorder %s18, 1
    %p41 = por %p39, %p40
    %p43 = scmp.ne.s32.totalorder %s26, %s42
    %p44 = scmp.eq.s32.totalorder %s18, 0
    %p45 = por %p43, %p44
    %s47 = sadd.s32 %s46, 1
    %p50 = scmp.eq.s32.totalorder %s12, 1
    %p51 = scmp.ne.s32.totalorder %s46, %s48
    %p52 = scmp.eq.s32.totalorder %s12, 0
    %p53 = por %p51, %p52
    %p54 = scmp.ne.s32.totalorder %s46, %s48
    %p55 = scmp.eq.s32.totalorder %s17, 1
    %p56 = por %p54, %p55
    %p57 = scmp.ne.s32.totalorder %s48, %s49
    %p58 = scmp.eq.s32.totalorder %s17, 0
    %p59 = por %p57, %p58
    %p60 = scmp.ne.s32.totalorder %s48, %s49
    %p61 = scmp.eq.s32.totalorder %s18, 1
    %p62 = por %p60, %p61
    %p64 = scmp.ne.s32.totalorder %s49, %s63
    %p65 = scmp.eq.s32.totalorder %s18, 0
    %p66 = por %p64, %p65
    %s68 = sadd.s32 %s67, 1
    %p71 = scmp.eq.s32.totalorder %s12, 1
    %p72 = scmp.ne.s32.totalorder %s67, %s69
    %p73 = scmp.eq.s32.totalorder %s12, 0
    %p74 = por %p72, %p73
    %p75 = scmp.ne.s32.totalorder %s67, %s69
    %p76 = scmp.eq.s32.totalorder %s17, 1
    %p77 = por %p75, %p76
    %p78 = scmp.ne.s32.totalorder %s69, %s70
    %p79 = scmp.eq.s32.totalorder %s17, 0
    %p80 = por %p78, %p79
    %p81 = scmp.ne.s32.totalorder %s69, %s70
    %p82 = scmp.eq.s32.totalorder %s18, 1
    %p83 = por %p81, %p82
    %p85 = scmp.ne.s32.totalorder %s70, %s84
    %p86 = scmp.eq.s32.totalorder %s18, 0
    %p87 = por %p85, %p86
    %s89 = sadd.s32 %s88, 1
    %p92 = scmp.eq.s32.totalorder %s12, 1
    %p93 = scmp.ne.s32.totalorder %s88, %s90
    %p94 = scmp.eq.s32.totalorder %s12, 0
    %p95 = por %p93, %p94
    %p96 = scmp.ne.s32.totalorder %s88, %s90
    %p97 = scmp.eq.s32.totalorder %s17, 1
    %p98 = por %p96, %p97
    %p99 = scmp.ne.s32.totalorder %s90, %s91
    %p100 = scmp.eq.s32.totalorder %s17, 0
    %p101 = por %p99, %p100
    %p102 = scmp.ne.s32.totalorder %s90, %s91
    %p103 = scmp.eq.s32.totalorder %s18, 1
    %p104 = por %p102, %p103
    %p106 = scmp.ne.s32.totalorder %s91, %s105
    %p107 = scmp.eq.s32.totalorder %s18, 0
    %p108 = por %p106, %p107
    %s109 = ssub.s32 %s12, %s19
    %p110 = scmp.eq.s32.totalorder %s109, 0
    %s112 = sadd.s32 %s111, 1
    %s113 = scalar_select %p110, %s111, %s112
    %p116 = pneg %p110
    %p117 = scmp.eq.s32.totalorder %s12, 1
    %p118 = por %p116, %p117
    %p119 = scmp.ne.s32.totalorder %s111, %s114
    %p120 = scmp.eq.s32.totalorder %s12, 0
    %p121 = por %p119, %p120
    %p122 = scmp.ne.s32.totalorder %s111, %s114
    %p123 = scmp.eq.s32.totalorder %s17, 1
    %p124 = por %p122, %p123
    %p125 = scmp.ne.s32.totalorder %s114, %s115
    %p126 = scmp.eq.s32.totalorder %s17, 0
    %p127 = por %p125, %p126
    %p128 = scmp.ne.s32.totalorder %s114, %s115
    %p129 = scmp.eq.s32.totalorder %s18, 1
    %p130 = por %p128, %p129
    %p132 = scmp.ne.s32.totalorder %s115, %s131
    %p133 = scmp.eq.s32.totalorder %s18, 0
    %p134 = por %p132, %p133
    %s135 = ssub.s32 %s12, %s19
    %p136 = scmp.eq.s32.totalorder %s135, 0
    %s138 = sadd.s32 %s137, 1
    %s139 = scalar_select %p136, %s137, %s138
    %p142 = pneg %p136
    %p143 = scmp.eq.s32.totalorder %s12, 1
    %p144 = por %p142, %p143
    %p145 = scmp.ne.s32.totalorder %s137, %s140
    %p146 = scmp.eq.s32.totalorder %s12, 0
    %p147 = por %p145, %p146
    %p148 = scmp.ne.s32.totalorder %s137, %s140
    %p149 = scmp.eq.s32.totalorder %s17, 1
    %p150 = por %p148, %p149
    %p151 = scmp.ne.s32.totalorder %s140, %s141
    %p152 = scmp.eq.s32.totalorder %s17, 0
    %p153 = por %p151, %p152
    %p154 = scmp.ne.s32.totalorder %s140, %s141
    %p155 = scmp.eq.s32.totalorder %s18, 1
    %p156 = por %p154, %p155
    %p158 = scmp.ne.s32.totalorder %s141, %s157
    %p159 = scmp.eq.s32.totalorder %s18, 0
    %p160 = por %p158, %p159
    %p161 = scmp.le.s32.totalorder 1, %s12
    %p162 = scmp.lt.s32.totalorder %s12, 3
    %p163 = pnand %p161, %p162
    %p164 = pneg %p163
    // Predicated region
    $region9: #{down_block_forward.4} parent=5 // pred_check
      _
    $region10: #{down_block_forward.4} parent=5 // pred_check_branch
      %166 = sbr.rel (%p163) target = $region12
    $region11: #{down_block_forward.4} parent=5 // pred_region
      %s167 = ssub.s32 %s12, 1
      // Predicated region
      $region13: #{down_block_forward.4} parent=11 // pred_check
        %p168 = pneg %p59
      $region14: #{down_block_forward.4} parent=11 // pred_check_branch
        %170 = sbr.rel (%p168) target = $region16
      $region15: #{down_block_forward.4} parent=11 // pred_region
        _
      $region16: #{down_block_forward.4} parent=11 // pred_fallthru
        _
      // Predicated region
      $region17: #{down_block_forward.4} parent=11 // pred_check
        %p171 = pneg %p80
      $region18: #{down_block_forward.4} parent=11 // pred_check_branch
        %173 = sbr.rel (%p171) target = $region20
      $region19: #{down_block_forward.4} parent=11 // pred_region
        _
      $region20: #{down_block_forward.4} parent=11 // pred_fallthru
        _
      // Predicated region
      $region21: #{down_block_forward.4} parent=11 // pred_check
        %p174 = pneg %p101
      $region22: #{down_block_forward.4} parent=11 // pred_check_branch
        %176 = sbr.rel (%p174) target = $region24
      $region23: #{down_block_forward.4} parent=11 // pred_region
        _
      $region24: #{down_block_forward.4} parent=11 // pred_fallthru
        _
    $region12: #{down_block_forward.4} parent=5 // pred_fallthru
      _
    %p177 = scmp.lt.s32.totalorder %s12, 2
    // Predicated region
    $region25: #{down_block_forward.4} parent=5 // pred_check
      %p178 = pneg %p177
    $region26: #{down_block_forward.4} parent=5 // pred_check_branch
      %180 = sbr.rel (%p178) target = $region28
    $region27: #{down_block_forward.4} parent=5 // pred_region
      // Predicated region
      $region29: #{down_block_forward.4} parent=27 // pred_check
        %p181 = pneg %p32
      $region30: #{down_block_forward.4} parent=27 // pred_check_branch
        %183 = sbr.rel (%p181) target = $region32
      $region31: #{down_block_forward.4} parent=27 // pred_region
        %p184 = scmp.lt.s32.totalorder %s12, 1
        %s185 = scalar_select %p184, %s12, 1
        %s186 = smul.addr %s185, 8
        %s187 = smul.addr %s186, 4
        %s188 = scalar_lea.vmem %s0, %s187
      $region32: #{down_block_forward.4} parent=27 // pred_fallthru
        _
    $region28: #{down_block_forward.4} parent=5 // pred_fallthru
      _
    %p189 = scmp.le.s32.totalorder 1, %s12
    %p190 = scmp.lt.s32.totalorder %s12, 3
    %p191 = pnand %p189, %p190
    %p192 = pneg %p191
    // Predicated region
    $region33: #{down_block_forward.4} parent=5 // pred_check
      _
    $region34: #{down_block_forward.4} parent=5 // pred_check_branch
      %194 = sbr.rel (%p191) target = $region36
    $region35: #{down_block_forward.4} parent=5 // pred_region
      %s195 = ssub.s32 %s12, 1
      %p196 = scmp.lt.s32.totalorder %s17, 1
      %s197 = scalar_select %p196, %s17, 1
      %s198 = smul.addr %s197, 8
      %s199 = smul.addr %s198, 4
      %s200 = scalar_lea.vmem %s0, %s199
      %p201 = pneg %p38
      %p202 = pneg %p35
      %p203 = pneg %p59
      %p204 = pneg %p56
      %p205 = pneg %p80
      %p206 = pneg %p77
      %p207 = pneg %p101
      %p208 = pneg %p98
      %p209 = pneg %p127
      %p210 = pneg %p124
      %p211 = scmp.lt.s32.totalorder %s17, 1
      %s212 = scalar_select %p211, %s17, 1
      %s213 = smul.addr %s212, 8
      %s214 = smul.addr %s213, 4
      %s215 = scalar_lea.vmem %s4, %s214
      %p216 = pneg %p153
      %p217 = pneg %p150
      %p218 = scmp.lt.s32.totalorder %s17, 1
      %s219 = scalar_select %p218, %s17, 1
      %s220 = smul.addr %s219, 2
      %s221 = scalar_lea.vmem %s5, %s220
      %p222 = scmp.lt.s32.totalorder %s17, 1
      %s223 = scalar_select %p222, %s17, 1
      %s224 = smul.addr %s223, 8
      %s225 = smul.addr %s224, 4
      %s226 = scalar_lea.vmem %s0, %s225
      %p227 = scmp.lt.s32.totalorder %s17, 1
      %s228 = scalar_select %p227, %s17, 1
      %s229 = smul.addr %s228, 8
      %s230 = smul.addr %s229, 4
      %s231 = scalar_lea.vmem %s4, %s230
      %p232 = scmp.lt.s32.totalorder %s17, 1
      %s233 = scalar_select %p232, %s17, 1
      %s234 = smul.addr %s233, 2
      %s235 = scalar_lea.vmem %s5, %s234
      %v237 = vld [vmem:[%s226] sm:$0xf]
      %v238 = vld [vmem:[%s226 + $0x4] sm:$0xf]
      %v239 = vld [vmem:[%s226 + $0x8] sm:$0xf]
      %v240 = vld [vmem:[%s226 + $0xc] sm:$0xf]
      %v241 = vld [vmem:[%s226 + $0x10] sm:$0xf]
      %v242 = vld [vmem:[%s226 + $0x14] sm:$0xf]
      %v243 = vld [vmem:[%s226 + $0x18] sm:$0xf]
      %v244 = vld [vmem:[%s226 + $0x1c] sm:$0xf]
      %v245 = vunpack.c.l.bf16 %v237
      %v246 = vunpack.c.l.bf16 %v238
      %v247 = vunpack.c.l.bf16 %v239
      %v248 = vunpack.c.l.bf16 %v240
      %v249 = vunpack.c.l.bf16 %v241
      %v250 = vunpack.c.l.bf16 %v242
      %v251 = vunpack.c.l.bf16 %v243
      %v252 = vunpack.c.l.bf16 %v244
      %v253 = vld [vmem:[%s1] sm:$0x1]
      %v255 = vperm.slane %v253, 0
      %v257 = vmul.f32 %v245, %v255
      %v258 = vmul.f32 %v246, %v255
      %v259 = vmul.f32 %v247, %v255
      %v260 = vmul.f32 %v248, %v255
      %v261 = vmul.f32 %v249, %v255
      %v262 = vmul.f32 %v250, %v255
      %v263 = vmul.f32 %v251, %v255
      %v264 = vmul.f32 %v252, %v255
      %v265 = vld [vmem:[%s2] sm:$0x1]
      %v267 = vperm.slane %v265, 0
      %v269 = vadd.f32 %v257, %v267
      %v270 = vadd.f32 %v258, %v267
      %v271 = vadd.f32 %v259, %v267
      %v272 = vadd.f32 %v260, %v267
      %v273 = vadd.f32 %v261, %v267
      %v274 = vadd.f32 %v262, %v267
      %v275 = vadd.f32 %v263, %v267
      %v276 = vadd.f32 %v264, %v267
      %v277 = vmax.f32 %v269, 0.0
      %v278 = vmax.f32 %v270, 0.0
      %v279 = vmax.f32 %v271, 0.0
      %v280 = vmax.f32 %v272, 0.0
      %v281 = vmax.f32 %v273, 0.0
      %v282 = vmax.f32 %v274, 0.0
      %v283 = vmax.f32 %v275, 0.0
      %v284 = vmax.f32 %v276, 0.0
      %v285 = vpack.c.bf16 %v277, %v277
      %v286 = vpack.c.bf16 %v278, %v278
      %v287 = vpack.c.bf16 %v279, %v279
      %v288 = vpack.c.bf16 %v280, %v280
      %v289 = vpack.c.bf16 %v281, %v281
      %v290 = vpack.c.bf16 %v282, %v282
      %v291 = vpack.c.bf16 %v283, %v283
      %v292 = vpack.c.bf16 %v284, %v284
      %293 = vst [vmem:[#allocation2] sm:$0xf] 0
      %294 = vst [vmem:[#allocation2 + $0x4] sm:$0x1] 0
      %295 = vst [vmem:[#allocation2 + $0x8] sm:$0xf] 0
      %296 = vst [vmem:[#allocation2 + $0xc] sm:$0x1] 0
      %297 = vst [vmem:[#allocation2 + $0x10] sm:$0xf] 0
      %298 = vst [vmem:[#allocation2 + $0x14] sm:$0x1] 0
      %299 = vst [vmem:[#allocation2 + $0x18] sm:$0xf] 0
      %300 = vst [vmem:[#allocation2 + $0x1c] sm:$0x1] 0
      %301 = vst [vmem:[#allocation2 + $0x20] sm:$0xf] 0
      %302 = vst [vmem:[#allocation2 + $0x24] sm:$0x1] 0
      %303 = vst [vmem:[#allocation2 + $0x28] sm:$0xf] 0
      %304 = vst [vmem:[#allocation2 + $0x2c] sm:$0x1] 0
      %305 = vst [vmem:[#allocation2 + $0x30] sm:$0xf] 0
      %306 = vst [vmem:[#allocation2 + $0x34] sm:$0x1] 0
      %307 = vst [vmem:[#allocation2 + $0x38] sm:$0xf] 0
      %308 = vst [vmem:[#allocation2 + $0x3c] sm:$0x1] 0
      %309 = vst [vmem:[#allocation2 + $0x40] sm:$0xf] 0
      %310 = vst [vmem:[#allocation2 + $0x44] sm:$0x1] 0
      %311 = vst [vmem:[#allocation2 + $0x48] sm:$0xf] 0
      %312 = vst [vmem:[#allocation2 + $0x4c] sm:$0x1] 0
      %v314 = vshrl.u32 %v285, 16
      %v316 = vrot.slane %v314, 7
      %v317 = vshll.u32 %v285, 16
      %v319 = vor.u32 %v316, %v317
      %v320 = vrot.slane %v316, 4
      %v322 = vshrl.u32 %v286, 16
      %v324 = vrot.slane %v322, 7
      %v325 = vshll.u32 %v286, 16
      %v327 = vor.u32 %v324, %v325
      %v328 = vrot.slane %v324, 4
      %v330 = vshrl.u32 %v287, 16
      %v332 = vrot.slane %v330, 7
      %v333 = vshll.u32 %v287, 16
      %v335 = vor.u32 %v332, %v333
      %v336 = vrot.slane %v332, 4
      %v338 = vshrl.u32 %v288, 16
      %v340 = vrot.slane %v338, 7
      %v341 = vshll.u32 %v288, 16
      %v343 = vor.u32 %v340, %v341
      %v344 = vrot.slane %v340, 4
      %v346 = vshrl.u32 %v289, 16
      %v348 = vrot.slane %v346, 7
      %v349 = vshll.u32 %v289, 16
      %v351 = vor.u32 %v348, %v349
      %v352 = vrot.slane %v348, 4
      %v354 = vshrl.u32 %v290, 16
      %v356 = vrot.slane %v354, 7
      %v357 = vshll.u32 %v290, 16
      %v359 = vor.u32 %v356, %v357
      %v360 = vrot.slane %v356, 4
      %v362 = vshrl.u32 %v291, 16
      %v364 = vrot.slane %v362, 7
      %v365 = vshll.u32 %v291, 16
      %v367 = vor.u32 %v364, %v365
      %v368 = vrot.slane %v364, 4
      %v370 = vshrl.u32 %v292, 16
      %v372 = vrot.slane %v370, 7
      %v373 = vshll.u32 %v292, 16
      %v375 = vor.u32 %v372, %v373
      %v376 = vrot.slane %v372, 4
      %s393 = scalar_lea.vmem [#allocation2], 8
      %vm394 = vcmask 1043456
      %vm395 = vsmask.f32 7938
      %vm396 = vmand %vm394, %vm395
      %v397 = vld [vmem:[%s393] sm:$0xf]
      %v398 = vsel %vm396, %v319, %v397
      %399 = vst [vmem:[%s393] sm:$0xf] %v398
      %vm400 = vcmask 1040384
      %vm401 = vsmask.f32 256
      %vm402 = vmand %vm400, %vm401
      %v403 = vld [vmem:[%s393 + $0x4] sm:$0x1]
      %v404 = vsel %vm402, %v320, %v403
      %405 = vst [vmem:[%s393 + $0x4] sm:$0x1] %v404
      %v406 = vld [vmem:[%s393 + $0x8] sm:$0xf]
      %v407 = vsel %vm396, %v327, %v406
      %408 = vst [vmem:[%s393 + $0x8] sm:$0xf] %v407
      %v409 = vld [vmem:[%s393 + $0xc] sm:$0x1]
      %v410 = vsel %vm402, %v328, %v409
      %411 = vst [vmem:[%s393 + $0xc] sm:$0x1] %v410
      %v412 = vld [vmem:[%s393 + $0x10] sm:$0xf]
      %v413 = vsel %vm396, %v335, %v412
      %414 = vst [vmem:[%s393 + $0x10] sm:$0xf] %v413
      %v415 = vld [vmem:[%s393 + $0x14] sm:$0x1]
      %v416 = vsel %vm402, %v336, %v415
      %417 = vst [vmem:[%s393 + $0x14] sm:$0x1] %v416
      %v418 = vld [vmem:[%s393 + $0x18] sm:$0xf]
      %v419 = vsel %vm396, %v343, %v418
      %420 = vst [vmem:[%s393 + $0x18] sm:$0xf] %v419
      %v421 = vld [vmem:[%s393 + $0x1c] sm:$0x1]
      %v422 = vsel %vm402, %v344, %v421
      %423 = vst [vmem:[%s393 + $0x1c] sm:$0x1] %v422
      %v424 = vld [vmem:[%s393 + $0x20] sm:$0xf]
      %v425 = vsel %vm396, %v351, %v424
      %426 = vst [vmem:[%s393 + $0x20] sm:$0xf] %v425
      %v427 = vld [vmem:[%s393 + $0x24] sm:$0x1]
      %v428 = vsel %vm402, %v352, %v427
      %429 = vst [vmem:[%s393 + $0x24] sm:$0x1] %v428
      %v430 = vld [vmem:[%s393 + $0x28] sm:$0xf]
      %v431 = vsel %vm396, %v359, %v430
      %432 = vst [vmem:[%s393 + $0x28] sm:$0xf] %v431
      %v433 = vld [vmem:[%s393 + $0x2c] sm:$0x1]
      %v434 = vsel %vm402, %v360, %v433
      %435 = vst [vmem:[%s393 + $0x2c] sm:$0x1] %v434
      %v436 = vld [vmem:[%s393 + $0x30] sm:$0xf]
      %v437 = vsel %vm396, %v367, %v436
      %438 = vst [vmem:[%s393 + $0x30] sm:$0xf] %v437
      %v439 = vld [vmem:[%s393 + $0x34] sm:$0x1]
      %v440 = vsel %vm402, %v368, %v439
      %441 = vst [vmem:[%s393 + $0x34] sm:$0x1] %v440
      %v442 = vld [vmem:[%s393 + $0x38] sm:$0xf]
      %v443 = vsel %vm396, %v375, %v442
      %444 = vst [vmem:[%s393 + $0x38] sm:$0xf] %v443
      %v445 = vld [vmem:[%s393 + $0x3c] sm:$0x1]
      %v446 = vsel %vm402, %v376, %v445
      %447 = vst [vmem:[%s393 + $0x3c] sm:$0x1] %v446
      %v448 = vld [vmem:[#allocation2] sm:$0xf]
      %v449 = vld [vmem:[#allocation2 + $0x8] sm:$0xf]
      %v450 = vld [vmem:[#allocation2 + $0x10] sm:$0xf]
      %v451 = vld [vmem:[#allocation2 + $0x18] sm:$0xf]
      %v452 = vld [vmem:[#allocation2 + $0x20] sm:$0xf]
      %v453 = vld [vmem:[#allocation2 + $0x28] sm:$0xf]
      %v454 = vld [vmem:[#allocation2 + $0x30] sm:$0xf]
      %v455 = vld [vmem:[#allocation2 + $0x38] sm:$0xf]
      %v456 = vld [vmem:[%s3] sm:$0xf]
      %v457 = vld [vmem:[%s3 + $0x4] sm:$0xf]
      %v458 = vld [vmem:[%s3 + $0x8] sm:$0xf]
      %v459 = vld [vmem:[%s3 + $0xc] sm:$0xf]
      %v460 = vld [vmem:[%s3 + $0x10] sm:$0xf]
      %v461 = vld [vmem:[%s3 + $0x14] sm:$0xf]
      %v462 = vld [vmem:[%s3 + $0x18] sm:$0xf]
      %v463 = vld [vmem:[%s3 + $0x1c] sm:$0xf]
      %v464 = vld [vmem:[%s3 + $0x20] sm:$0xf]
      %v465 = vld [vmem:[%s3 + $0x24] sm:$0xf]
      %v466 = vld [vmem:[%s3 + $0x28] sm:$0xf]
      %v467 = vld [vmem:[%s3 + $0x2c] sm:$0xf]
      %v468 = vld [vmem:[%s3 + $0x30] sm:$0xf]
      %v469 = vld [vmem:[%s3 + $0x34] sm:$0xf]
      %v470 = vld [vmem:[%s3 + $0x38] sm:$0xf]
      %v471 = vld [vmem:[%s3 + $0x3c] sm:$0xf]
      %v472 = vld [vmem:[#allocation2 + $0x4] sm:$0x1]
      %v473 = vld [vmem:[#allocation2 + $0xc] sm:$0x1]
      %v474 = vld [vmem:[#allocation2 + $0x14] sm:$0x1]
      %v475 = vld [vmem:[#allocation2 + $0x1c] sm:$0x1]
      %v476 = vld [vmem:[#allocation2 + $0x24] sm:$0x1]
      %v477 = vld [vmem:[#allocation2 + $0x2c] sm:$0x1]
      %v478 = vld [vmem:[#allocation2 + $0x34] sm:$0x1]
      %v479 = vld [vmem:[#allocation2 + $0x3c] sm:$0x1]
      %vm480 = vsmask.f32 3328
      %vm481 = vsmask.f32 7440
      %vm482 = vmor %vm480, %vm481
      %v484 = vshrl.u32 %v448, 16
      %v486 = vrot.slane %v484, 4
      %v487 = vshll.u32 %v448, 16
      %v489 = vrot.slane %v487, 5
      %v490 = vor.u32 %v486, %v489
      %v491 = vrot.slane %v490, 4
      %v493 = vshll.u32 %v472, 16
      %v495 = vrot.slane %v493, 5
      %v496 = vsel %vm482, %v491, %v495
      %v498 = vshrl.u32 %v449, 16
      %v500 = vrot.slane %v498, 4
      %v501 = vshll.u32 %v449, 16
      %v503 = vrot.slane %v501, 5
      %v504 = vor.u32 %v500, %v503
      %v505 = vrot.slane %v504, 4
      %v507 = vshll.u32 %v473, 16
      %v509 = vrot.slane %v507, 5
      %v510 = vsel %vm482, %v505, %v509
      %v512 = vshrl.u32 %v450, 16
      %v514 = vrot.slane %v512, 4
      %v515 = vshll.u32 %v450, 16
      %v517 = vrot.slane %v515, 5
      %v518 = vor.u32 %v514, %v517
      %v519 = vrot.slane %v518, 4
      %v521 = vshll.u32 %v474, 16
      %v523 = vrot.slane %v521, 5
      %v524 = vsel %vm482, %v519, %v523
      %v526 = vshrl.u32 %v451, 16
      %v528 = vrot.slane %v526, 4
      %v529 = vshll.u32 %v451, 16
      %v531 = vrot.slane %v529, 5
      %v532 = vor.u32 %v528, %v531
      %v533 = vrot.slane %v532, 4
      %v535 = vshll.u32 %v475, 16
      %v537 = vrot.slane %v535, 5
      %v538 = vsel %vm482, %v533, %v537
      %v540 = vshrl.u32 %v452, 16
      %v542 = vrot.slane %v540, 4
      %v543 = vshll.u32 %v452, 16
      %v545 = vrot.slane %v543, 5
      %v546 = vor.u32 %v542, %v545
      %v547 = vrot.slane %v546, 4
      %v549 = vshll.u32 %v476, 16
      %v551 = vrot.slane %v549, 5
      %v552 = vsel %vm482, %v547, %v551
      %v554 = vshrl.u32 %v453, 16
      %v556 = vrot.slane %v554, 4
      %v557 = vshll.u32 %v453, 16
      %v559 = vrot.slane %v557, 5
      %v560 = vor.u32 %v556, %v559
      %v561 = vrot.slane %v560, 4
      %v563 = vshll.u32 %v477, 16
      %v565 = vrot.slane %v563, 5
      %v566 = vsel %vm482, %v561, %v565
      %v568 = vshrl.u32 %v454, 16
      %v570 = vrot.slane %v568, 4
      %v571 = vshll.u32 %v454, 16
      %v573 = vrot.slane %v571, 5
      %v574 = vor.u32 %v570, %v573
      %v575 = vrot.slane %v574, 4
      %v577 = vshll.u32 %v478, 16
      %v579 = vrot.slane %v577, 5
      %v580 = vsel %vm482, %v575, %v579
      %v582 = vshrl.u32 %v455, 16
      %v584 = vrot.slane %v582, 4
      %v585 = vshll.u32 %v455, 16
      %v587 = vrot.slane %v585, 5
      %v588 = vor.u32 %v584, %v587
      %v589 = vrot.slane %v588, 4
      %v591 = vshll.u32 %v479, 16
      %v593 = vrot.slane %v591, 5
      %v594 = vsel %vm482, %v589, %v593
      %s595 = scalar_lea.vmem %s3, 64
      %v596 = vld [vmem:[%s595] sm:$0xf]
      %v597 = vld [vmem:[%s595 + $0x4] sm:$0xf]
      %v598 = vld [vmem:[%s595 + $0x8] sm:$0xf]
      %v599 = vld [vmem:[%s595 + $0xc] sm:$0xf]
      %v600 = vld [vmem:[%s595 + $0x10] sm:$0xf]
      %v601 = vld [vmem:[%s595 + $0x14] sm:$0xf]
      %v602 = vld [vmem:[%s595 + $0x18] sm:$0xf]
      %v603 = vld [vmem:[%s595 + $0x1c] sm:$0xf]
      %v604 = vld [vmem:[%s595 + $0x20] sm:$0xf]
      %v605 = vld [vmem:[%s595 + $0x24] sm:$0xf]
      %v606 = vld [vmem:[%s595 + $0x28] sm:$0xf]
      %v607 = vld [vmem:[%s595 + $0x2c] sm:$0xf]
      %v608 = vld [vmem:[%s595 + $0x30] sm:$0xf]
      %v609 = vld [vmem:[%s595 + $0x34] sm:$0xf]
      %v610 = vld [vmem:[%s595 + $0x38] sm:$0xf]
      %v611 = vld [vmem:[%s595 + $0x3c] sm:$0xf]
      %v612 = vunpack.c.l.b16 %v496
      %v613 = vunpack.c.l.b16 %v510
      %v614 = vunpack.c.l.b16 %v524
      %v615 = vunpack.c.l.b16 %v538
      %v616 = vunpack.c.l.b16 %v552
      %v617 = vunpack.c.l.b16 %v566
      %v618 = vunpack.c.l.b16 %v580
      %v619 = vunpack.c.l.b16 %v594
      %v620 = vpack.c.b16 %v613, %v612
      %v621 = vpack.c.b16 %v615, %v614
      %v622 = vpack.c.b16 %v617, %v616
      %v623 = vpack.c.b16 %v619, %v618
      %v644 = vunpack.c.l.b16 %v596
      %v645 = vunpack.c.l.b16 %v597
      %v646 = vunpack.c.l.b16 %v598
      %v647 = vunpack.c.l.b16 %v599
      %v648 = vunpack.c.l.b16 %v600
      %v649 = vunpack.c.l.b16 %v601
      %v650 = vunpack.c.l.b16 %v602
      %v651 = vunpack.c.l.b16 %v603
      %v652 = vunpack.c.l.b16 %v604
      %v653 = vunpack.c.l.b16 %v605
      %v654 = vunpack.c.l.b16 %v606
      %v655 = vunpack.c.l.b16 %v607
      %v656 = vunpack.c.l.b16 %v608
      %v657 = vunpack.c.l.b16 %v609
      %v658 = vunpack.c.l.b16 %v610
      %v659 = vunpack.c.l.b16 %v611
      %v660 = vpack.c.b16 %v645, %v644
      %v661 = vpack.c.b16 %v647, %v646
      %v662 = vpack.c.b16 %v649, %v648
      %v663 = vpack.c.b16 %v651, %v650
      %v664 = vpack.c.b16 %v653, %v652
      %v665 = vpack.c.b16 %v655, %v654
      %v666 = vpack.c.b16 %v657, %v656
      %v667 = vpack.c.b16 %v659, %v658
      %676 = vmatpush.bf16.msra.mxu0 %v667
      %677 = vmatpush.bf16.msra.mxu0 %v666
      %678 = vmatpush.bf16.msra.mxu0 %v665
      %679 = vmatpush.bf16.msra.mxu0 %v664
      %680 = vmatpush.bf16.msra.mxu0 %v663
      %681 = vmatpush.bf16.msra.mxu0 %v662
      %682 = vmatpush.bf16.msra.mxu0 %v661
      %683 = vmatpush.bf16.msra.mxu0 %v660
      %684 = vmatmul.bf16.gmra.mxu0 %v620
      %v685 = vpop.f32.mrf.mxu0
      %v686 = vadd.f32 0.0, %v685
      %v687 = vpop.f32.mrf.mxu0
      %v688 = vadd.f32 0.0, %v687
      %689 = vmatmul.bf16.gmra.mxu0 %v621
      %v690 = vpop.f32.mrf.mxu0
      %v691 = vadd.f32 0.0, %v690
      %v692 = vpop.f32.mrf.mxu0
      %v693 = vadd.f32 0.0, %v692
      %694 = vmatmul.bf16.gmra.mxu0 %v622
      %v695 = vpop.f32.mrf.mxu0
      %v696 = vadd.f32 0.0, %v695
      %v697 = vpop.f32.mrf.mxu0
      %v698 = vadd.f32 0.0, %v697
      %699 = vmatmul.bf16.gmra.mxu0 %v623
      %v700 = vpop.f32.mrf.mxu0
      %v701 = vadd.f32 0.0, %v700
      %v702 = vpop.f32.mrf.mxu0
      %v703 = vadd.f32 0.0, %v702
      %704 = vdwg.mxu0
      %v713 = vunpack.c.l.b16 %v448
      %v714 = vunpack.c.l.b16 %v449
      %v715 = vunpack.c.l.b16 %v450
      %v716 = vunpack.c.l.b16 %v451
      %v717 = vunpack.c.l.b16 %v452
      %v718 = vunpack.c.l.b16 %v453
      %v719 = vunpack.c.l.b16 %v454
      %v720 = vunpack.c.l.b16 %v455
      %v721 = vpack.c.b16 %v714, %v713
      %v722 = vpack.c.b16 %v716, %v715
      %v723 = vpack.c.b16 %v718, %v717
      %v724 = vpack.c.b16 %v720, %v719
      %v745 = vunpack.c.l.b16 %v456
      %v746 = vunpack.c.l.b16 %v457
      %v747 = vunpack.c.l.b16 %v458
      %v748 = vunpack.c.l.b16 %v459
      %v749 = vunpack.c.l.b16 %v460
      %v750 = vunpack.c.l.b16 %v461
      %v751 = vunpack.c.l.b16 %v462
      %v752 = vunpack.c.l.b16 %v463
      %v753 = vunpack.c.l.b16 %v464
      %v754 = vunpack.c.l.b16 %v465
      %v755 = vunpack.c.l.b16 %v466
      %v756 = vunpack.c.l.b16 %v467
      %v757 = vunpack.c.l.b16 %v468
      %v758 = vunpack.c.l.b16 %v469
      %v759 = vunpack.c.l.b16 %v470
      %v760 = vunpack.c.l.b16 %v471
      %v761 = vpack.c.b16 %v746, %v745
      %v762 = vpack.c.b16 %v748, %v747
      %v763 = vpack.c.b16 %v750, %v749
      %v764 = vpack.c.b16 %v752, %v751
      %v765 = vpack.c.b16 %v754, %v753
      %v766 = vpack.c.b16 %v756, %v755
      %v767 = vpack.c.b16 %v758, %v757
      %v768 = vpack.c.b16 %v760, %v759
      %777 = vmatpush.bf16.msra.mxu0 %v768
      %778 = vmatpush.bf16.msra.mxu0 %v767
      %779 = vmatpush.bf16.msra.mxu0 %v766
      %780 = vmatpush.bf16.msra.mxu0 %v765
      %781 = vmatpush.bf16.msra.mxu0 %v764
      %782 = vmatpush.bf16.msra.mxu0 %v763
      %783 = vmatpush.bf16.msra.mxu0 %v762
      %784 = vmatpush.bf16.msra.mxu0 %v761
      %785 = vmatmul.bf16.gmra.mxu0 %v721
      %v786 = vpop.f32.mrf.mxu0
      %v787 = vadd.f32 %v686, %v786
      %v788 = vpop.f32.mrf.mxu0
      %v789 = vadd.f32 %v688, %v788
      %790 = vmatmul.bf16.gmra.mxu0 %v722
      %v791 = vpop.f32.mrf.mxu0
      %v792 = vadd.f32 %v691, %v791
      %v793 = vpop.f32.mrf.mxu0
      %v794 = vadd.f32 %v693, %v793
      %795 = vmatmul.bf16.gmra.mxu0 %v723
      %v796 = vpop.f32.mrf.mxu0
      %v797 = vadd.f32 %v696, %v796
      %v798 = vpop.f32.mrf.mxu0
      %v799 = vadd.f32 %v698, %v798
      %800 = vmatmul.bf16.gmra.mxu0 %v724
      %v801 = vpop.f32.mrf.mxu0
      %v802 = vadd.f32 %v701, %v801
      %v803 = vpop.f32.mrf.mxu0
      %v804 = vadd.f32 %v703, %v803
      %805 = vdwg.mxu0
      %v806 = vld [vmem:[#allocation2] sm:$0xe]
      %v807 = vld [vmem:[#allocation2 + $0x8] sm:$0xe]
      %v808 = vld [vmem:[#allocation2 + $0x10] sm:$0xe]
      %v809 = vld [vmem:[#allocation2 + $0x18] sm:$0xe]
      %v810 = vld [vmem:[#allocation2 + $0x20] sm:$0xe]
      %v811 = vld [vmem:[#allocation2 + $0x28] sm:$0xe]
      %v812 = vld [vmem:[#allocation2 + $0x30] sm:$0xe]
      %v813 = vld [vmem:[#allocation2 + $0x38] sm:$0xe]
      %vm830 = vcmask 1042432
      %vm831 = vcmask 1046532
      %vm832 = vmor %vm830, %vm831
      %v833 = vrot.slane %v806, 5
      %v834 = vrot.slane %v833, 4
      %v835 = vrot.slane %v472, 5
      %v836 = vsel %vm832, %v834, %v835
      %v837 = vrot.slane %v807, 5
      %v838 = vrot.slane %v837, 4
      %v839 = vrot.slane %v473, 5
      %v840 = vsel %vm832, %v838, %v839
      %v841 = vrot.slane %v808, 5
      %v842 = vrot.slane %v841, 4
      %v843 = vrot.slane %v474, 5
      %v844 = vsel %vm832, %v842, %v843
      %v845 = vrot.slane %v809, 5
      %v846 = vrot.slane %v845, 4
      %v847 = vrot.slane %v475, 5
      %v848 = vsel %vm832, %v846, %v847
      %v849 = vrot.slane %v810, 5
      %v850 = vrot.slane %v849, 4
      %v851 = vrot.slane %v476, 5
      %v852 = vsel %vm832, %v850, %v851
      %v853 = vrot.slane %v811, 5
      %v854 = vrot.slane %v853, 4
      %v855 = vrot.slane %v477, 5
      %v856 = vsel %vm832, %v854, %v855
      %v857 = vrot.slane %v812, 5
      %v858 = vrot.slane %v857, 4
      %v859 = vrot.slane %v478, 5
      %v860 = vsel %vm832, %v858, %v859
      %v861 = vrot.slane %v813, 5
      %v862 = vrot.slane %v861, 4
      %v863 = vrot.slane %v479, 5
      %v864 = vsel %vm832, %v862, %v863
      %s865 = scalar_lea.vmem %s3, 128
      %v866 = vld [vmem:[%s865] sm:$0xf]
      %v867 = vld [vmem:[%s865 + $0x4] sm:$0xf]
      %v868 = vld [vmem:[%s865 + $0x8] sm:$0xf]
      %v869 = vld [vmem:[%s865 + $0xc] sm:$0xf]
      %v870 = vld [vmem:[%s865 + $0x10] sm:$0xf]
      %v871 = vld [vmem:[%s865 + $0x14] sm:$0xf]
      %v872 = vld [vmem:[%s865 + $0x18] sm:$0xf]
      %v873 = vld [vmem:[%s865 + $0x1c] sm:$0xf]
      %v874 = vld [vmem:[%s865 + $0x20] sm:$0xf]
      %v875 = vld [vmem:[%s865 + $0x24] sm:$0xf]
      %v876 = vld [vmem:[%s865 + $0x28] sm:$0xf]
      %v877 = vld [vmem:[%s865 + $0x2c] sm:$0xf]
      %v878 = vld [vmem:[%s865 + $0x30] sm:$0xf]
      %v879 = vld [vmem:[%s865 + $0x34] sm:$0xf]
      %v880 = vld [vmem:[%s865 + $0x38] sm:$0xf]
      %v881 = vld [vmem:[%s865 + $0x3c] sm:$0xf]
      %v882 = vunpack.c.l.b16 %v836
      %v883 = vunpack.c.l.b16 %v840
      %v884 = vunpack.c.l.b16 %v844
      %v885 = vunpack.c.l.b16 %v848
      %v886 = vunpack.c.l.b16 %v852
      %v887 = vunpack.c.l.b16 %v856
      %v888 = vunpack.c.l.b16 %v860
      %v889 = vunpack.c.l.b16 %v864
      %v890 = vpack.c.b16 %v883, %v882
      %v891 = vpack.c.b16 %v885, %v884
      %v892 = vpack.c.b16 %v887, %v886
      %v893 = vpack.c.b16 %v889, %v888
      %v914 = vunpack.c.l.b16 %v866
      %v915 = vunpack.c.l.b16 %v867
      %v916 = vunpack.c.l.b16 %v868
      %v917 = vunpack.c.l.b16 %v869
      %v918 = vunpack.c.l.b16 %v870
      %v919 = vunpack.c.l.b16 %v871
      %v920 = vunpack.c.l.b16 %v872
      %v921 = vunpack.c.l.b16 %v873
      %v922 = vunpack.c.l.b16 %v874
      %v923 = vunpack.c.l.b16 %v875
      %v924 = vunpack.c.l.b16 %v876
      %v925 = vunpack.c.l.b16 %v877
      %v926 = vunpack.c.l.b16 %v878
      %v927 = vunpack.c.l.b16 %v879
      %v928 = vunpack.c.l.b16 %v880
      %v929 = vunpack.c.l.b16 %v881
      %v930 = vpack.c.b16 %v915, %v914
      %v931 = vpack.c.b16 %v917, %v916
      %v932 = vpack.c.b16 %v919, %v918
      %v933 = vpack.c.b16 %v921, %v920
      %v934 = vpack.c.b16 %v923, %v922
      %v935 = vpack.c.b16 %v925, %v924
      %v936 = vpack.c.b16 %v927, %v926
      %v937 = vpack.c.b16 %v929, %v928
      %946 = vmatpush.bf16.msra.mxu0 %v937
      %947 = vmatpush.bf16.msra.mxu0 %v936
      %948 = vmatpush.bf16.msra.mxu0 %v935
      %949 = vmatpush.bf16.msra.mxu0 %v934
      %950 = vmatpush.bf16.msra.mxu0 %v933
      %951 = vmatpush.bf16.msra.mxu0 %v932
      %952 = vmatpush.bf16.msra.mxu0 %v931
      %953 = vmatpush.bf16.msra.mxu0 %v930
      %954 = vmatmul.bf16.gmra.mxu0 %v890
      %v955 = vpop.f32.mrf.mxu0
      %v956 = vadd.f32 0.0, %v955
      %v957 = vpop.f32.mrf.mxu0
      %v958 = vadd.f32 0.0, %v957
      %959 = vmatmul.bf16.gmra.mxu0 %v891
      %v960 = vpop.f32.mrf.mxu0
      %v961 = vadd.f32 0.0, %v960
      %v962 = vpop.f32.mrf.mxu0
      %v963 = vadd.f32 0.0, %v962
      %964 = vmatmul.bf16.gmra.mxu0 %v892
      %v965 = vpop.f32.mrf.mxu0
      %v966 = vadd.f32 0.0, %v965
      %v967 = vpop.f32.mrf.mxu0
      %v968 = vadd.f32 0.0, %v967
      %969 = vmatmul.bf16.gmra.mxu0 %v893
      %v970 = vpop.f32.mrf.mxu0
      %v971 = vadd.f32 0.0, %v970
      %v972 = vpop.f32.mrf.mxu0
      %v973 = vadd.f32 0.0, %v972
      %974 = vdwg.mxu0
      %v975 = vadd.f32 %v787, %v956
      %v976 = vadd.f32 %v789, %v958
      %v977 = vadd.f32 %v792, %v961
      %v978 = vadd.f32 %v794, %v963
      %v979 = vadd.f32 %v797, %v966
      %v980 = vadd.f32 %v799, %v968
      %v981 = vadd.f32 %v802, %v971
      %v982 = vadd.f32 %v804, %v973
      %v983 = vld [vmem:[%s393] sm:$0xf]
      %v984 = vld [vmem:[%s393 + $0x8] sm:$0xf]
      %v985 = vld [vmem:[%s393 + $0x10] sm:$0xf]
      %v986 = vld [vmem:[%s393 + $0x18] sm:$0xf]
      %v987 = vld [vmem:[%s393 + $0x20] sm:$0xf]
      %v988 = vld [vmem:[%s393 + $0x28] sm:$0xf]
      %v989 = vld [vmem:[%s393 + $0x30] sm:$0xf]
      %v990 = vld [vmem:[%s393 + $0x38] sm:$0xf]
      %s991 = scalar_lea.vmem %s3, 192
      %v992 = vld [vmem:[%s991] sm:$0xf]
      %v993 = vld [vmem:[%s991 + $0x4] sm:$0xf]
      %v994 = vld [vmem:[%s991 + $0x8] sm:$0xf]
      %v995 = vld [vmem:[%s991 + $0xc] sm:$0xf]
      %v996 = vld [vmem:[%s991 + $0x10] sm:$0xf]
      %v997 = vld [vmem:[%s991 + $0x14] sm:$0xf]
      %v998 = vld [vmem:[%s991 + $0x18] sm:$0xf]
      %v999 = vld [vmem:[%s991 + $0x1c] sm:$0xf]
      %v1000 = vld [vmem:[%s991 + $0x20] sm:$0xf]
      %v1001 = vld [vmem:[%s991 + $0x24] sm:$0xf]
      %v1002 = vld [vmem:[%s991 + $0x28] sm:$0xf]
      %v1003 = vld [vmem:[%s991 + $0x2c] sm:$0xf]
      %v1004 = vld [vmem:[%s991 + $0x30] sm:$0xf]
      %v1005 = vld [vmem:[%s991 + $0x34] sm:$0xf]
      %v1006 = vld [vmem:[%s991 + $0x38] sm:$0xf]
      %v1007 = vld [vmem:[%s991 + $0x3c] sm:$0xf]
      %v1016 = vunpack.c.l.b16 %v983
      %v1017 = vunpack.c.l.b16 %v984
      %v1018 = vunpack.c.l.b16 %v985
      %v1019 = vunpack.c.l.b16 %v986
      %v1020 = vunpack.c.l.b16 %v987
      %v1021 = vunpack.c.l.b16 %v988
      %v1022 = vunpack.c.l.b16 %v989
      %v1023 = vunpack.c.l.b16 %v990
      %v1024 = vpack.c.b16 %v1017, %v1016
      %v1025 = vpack.c.b16 %v1019, %v1018
      %v1026 = vpack.c.b16 %v1021, %v1020
      %v1027 = vpack.c.b16 %v1023, %v1022
      %v1048 = vunpack.c.l.b16 %v992
      %v1049 = vunpack.c.l.b16 %v993
      %v1050 = vunpack.c.l.b16 %v994
      %v1051 = vunpack.c.l.b16 %v995
      %v1052 = vunpack.c.l.b16 %v996
      %v1053 = vunpack.c.l.b16 %v997
      %v1054 = vunpack.c.l.b16 %v998
      %v1055 = vunpack.c.l.b16 %v999
      %v1056 = vunpack.c.l.b16 %v1000
      %v1057 = vunpack.c.l.b16 %v1001
      %v1058 = vunpack.c.l.b16 %v1002
      %v1059 = vunpack.c.l.b16 %v1003
      %v1060 = vunpack.c.l.b16 %v1004
      %v1061 = vunpack.c.l.b16 %v1005
      %v1062 = vunpack.c.l.b16 %v1006
      %v1063 = vunpack.c.l.b16 %v1007
      %v1064 = vpack.c.b16 %v1049, %v1048
      %v1065 = vpack.c.b16 %v1051, %v1050
      %v1066 = vpack.c.b16 %v1053, %v1052
      %v1067 = vpack.c.b16 %v1055, %v1054
      %v1068 = vpack.c.b16 %v1057, %v1056
      %v1069 = vpack.c.b16 %v1059, %v1058
      %v1070 = vpack.c.b16 %v1061, %v1060
      %v1071 = vpack.c.b16 %v1063, %v1062
      %1080 = vmatpush.bf16.msra.mxu0 %v1071
      %1081 = vmatpush.bf16.msra.mxu0 %v1070
      %1082 = vmatpush.bf16.msra.mxu0 %v1069
      %1083 = vmatpush.bf16.msra.mxu0 %v1068
      %1084 = vmatpush.bf16.msra.mxu0 %v1067
      %1085 = vmatpush.bf16.msra.mxu0 %v1066
      %1086 = vmatpush.bf16.msra.mxu0 %v1065
      %1087 = vmatpush.bf16.msra.mxu0 %v1064
      %1088 = vmatmul.bf16.gmra.mxu0 %v1024
      %v1089 = vpop.f32.mrf.mxu0
      %v1090 = vadd.f32 0.0, %v1089
      %v1091 = vpop.f32.mrf.mxu0
      %v1092 = vadd.f32 0.0, %v1091
      %1093 = vmatmul.bf16.gmra.mxu0 %v1025
      %v1094 = vpop.f32.mrf.mxu0
      %v1095 = vadd.f32 0.0, %v1094
      %v1096 = vpop.f32.mrf.mxu0
      %v1097 = vadd.f32 0.0, %v1096
      %1098 = vmatmul.bf16.gmra.mxu0 %v1026
      %v1099 = vpop.f32.mrf.mxu0
      %v1100 = vadd.f32 0.0, %v1099
      %v1101 = vpop.f32.mrf.mxu0
      %v1102 = vadd.f32 0.0, %v1101
      %1103 = vmatmul.bf16.gmra.mxu0 %v1027
      %v1104 = vpop.f32.mrf.mxu0
      %v1105 = vadd.f32 0.0, %v1104
      %v1106 = vpop.f32.mrf.mxu0
      %v1107 = vadd.f32 0.0, %v1106
      %1108 = vdwg.mxu0
      %v1109 = vadd.f32 %v975, %v1090
      %v1110 = vadd.f32 %v976, %v1092
      %v1111 = vadd.f32 %v977, %v1095
      %v1112 = vadd.f32 %v978, %v1097
      %v1113 = vadd.f32 %v979, %v1100
      %v1114 = vadd.f32 %v980, %v1102
      %v1115 = vadd.f32 %v981, %v1105
      %v1116 = vadd.f32 %v982, %v1107
      %v1117 = vld [vmem:[%s393] sm:$0xf]
      %v1118 = vld [vmem:[%s393 + $0x4] sm:$0x1]
      %v1119 = vld [vmem:[%s393 + $0x8] sm:$0xf]
      %v1120 = vld [vmem:[%s393 + $0xc] sm:$0x1]
      %v1121 = vld [vmem:[%s393 + $0x10] sm:$0xf]
      %v1122 = vld [vmem:[%s393 + $0x14] sm:$0x1]
      %v1123 = vld [vmem:[%s393 + $0x18] sm:$0xf]
      %v1124 = vld [vmem:[%s393 + $0x1c] sm:$0x1]
      %v1125 = vld [vmem:[%s393 + $0x20] sm:$0xf]
      %v1126 = vld [vmem:[%s393 + $0x24] sm:$0x1]
      %v1127 = vld [vmem:[%s393 + $0x28] sm:$0xf]
      %v1128 = vld [vmem:[%s393 + $0x2c] sm:$0x1]
      %v1129 = vld [vmem:[%s393 + $0x30] sm:$0xf]
      %v1130 = vld [vmem:[%s393 + $0x34] sm:$0x1]
      %v1131 = vld [vmem:[%s393 + $0x38] sm:$0xf]
      %v1132 = vld [vmem:[%s393 + $0x3c] sm:$0x1]
      %v1134 = vshrl.u32 %v1117, 16
      %v1136 = vrot.slane %v1134, 4
      %v1137 = vshll.u32 %v1117, 16
      %v1139 = vrot.slane %v1137, 5
      %v1140 = vor.u32 %v1136, %v1139
      %v1141 = vrot.slane %v1140, 4
      %v1143 = vshll.u32 %v1118, 16
      %v1145 = vrot.slane %v1143, 5
      %v1146 = vsel %vm482, %v1141, %v1145
      %v1148 = vshrl.u32 %v1119, 16
      %v1150 = vrot.slane %v1148, 4
      %v1151 = vshll.u32 %v1119, 16
      %v1153 = vrot.slane %v1151, 5
      %v1154 = vor.u32 %v1150, %v1153
      %v1155 = vrot.slane %v1154, 4
      %v1157 = vshll.u32 %v1120, 16
      %v1159 = vrot.slane %v1157, 5
      %v1160 = vsel %vm482, %v1155, %v1159
      %v1162 = vshrl.u32 %v1121, 16
      %v1164 = vrot.slane %v1162, 4
      %v1165 = vshll.u32 %v1121, 16
      %v1167 = vrot.slane %v1165, 5
      %v1168 = vor.u32 %v1164, %v1167
      %v1169 = vrot.slane %v1168, 4
      %v1171 = vshll.u32 %v1122, 16
      %v1173 = vrot.slane %v1171, 5
      %v1174 = vsel %vm482, %v1169, %v1173
      %v1176 = vshrl.u32 %v1123, 16
      %v1178 = vrot.slane %v1176, 4
      %v1179 = vshll.u32 %v1123, 16
      %v1181 = vrot.slane %v1179, 5
      %v1182 = vor.u32 %v1178, %v1181
      %v1183 = vrot.slane %v1182, 4
      %v1185 = vshll.u32 %v1124, 16
      %v1187 = vrot.slane %v1185, 5
      %v1188 = vsel %vm482, %v1183, %v1187
      %v1190 = vshrl.u32 %v1125, 16
      %v1192 = vrot.slane %v1190, 4
      %v1193 = vshll.u32 %v1125, 16
      %v1195 = vrot.slane %v1193, 5
      %v1196 = vor.u32 %v1192, %v1195
      %v1197 = vrot.slane %v1196, 4
      %v1199 = vshll.u32 %v1126, 16
      %v1201 = vrot.slane %v1199, 5
      %v1202 = vsel %vm482, %v1197, %v1201
      %v1204 = vshrl.u32 %v1127, 16
      %v1206 = vrot.slane %v1204, 4
      %v1207 = vshll.u32 %v1127, 16
      %v1209 = vrot.slane %v1207, 5
      %v1210 = vor.u32 %v1206, %v1209
      %v1211 = vrot.slane %v1210, 4
      %v1213 = vshll.u32 %v1128, 16
      %v1215 = vrot.slane %v1213, 5
      %v1216 = vsel %vm482, %v1211, %v1215
      %v1218 = vshrl.u32 %v1129, 16
      %v1220 = vrot.slane %v1218, 4
      %v1221 = vshll.u32 %v1129, 16
      %v1223 = vrot.slane %v1221, 5
      %v1224 = vor.u32 %v1220, %v1223
      %v1225 = vrot.slane %v1224, 4
      %v1227 = vshll.u32 %v1130, 16
      %v1229 = vrot.slane %v1227, 5
      %v1230 = vsel %vm482, %v1225, %v1229
      %v1232 = vshrl.u32 %v1131, 16
      %v1234 = vrot.slane %v1232, 4
      %v1235 = vshll.u32 %v1131, 16
      %v1237 = vrot.slane %v1235, 5
      %v1238 = vor.u32 %v1234, %v1237
      %v1239 = vrot.slane %v1238, 4
      %v1241 = vshll.u32 %v1132, 16
      %v1243 = vrot.slane %v1241, 5
      %v1244 = vsel %vm482, %v1239, %v1243
      %s1245 = scalar_lea.vmem %s3, 256
      %v1246 = vld [vmem:[%s1245] sm:$0xf]
      %v1247 = vld [vmem:[%s1245 + $0x4] sm:$0xf]
      %v1248 = vld [vmem:[%s1245 + $0x8] sm:$0xf]
      %v1249 = vld [vmem:[%s1245 + $0xc] sm:$0xf]
      %v1250 = vld [vmem:[%s1245 + $0x10] sm:$0xf]
      %v1251 = vld [vmem:[%s1245 + $0x14] sm:$0xf]
      %v1252 = vld [vmem:[%s1245 + $0x18] sm:$0xf]
      %v1253 = vld [vmem:[%s1245 + $0x1c] sm:$0xf]
      %v1254 = vld [vmem:[%s1245 + $0x20] sm:$0xf]
      %v1255 = vld [vmem:[%s1245 + $0x24] sm:$0xf]
      %v1256 = vld [vmem:[%s1245 + $0x28] sm:$0xf]
      %v1257 = vld [vmem:[%s1245 + $0x2c] sm:$0xf]
      %v1258 = vld [vmem:[%s1245 + $0x30] sm:$0xf]
      %v1259 = vld [vmem:[%s1245 + $0x34] sm:$0xf]
      %v1260 = vld [vmem:[%s1245 + $0x38] sm:$0xf]
      %v1261 = vld [vmem:[%s1245 + $0x3c] sm:$0xf]
      %v1262 = vunpack.c.l.b16 %v1146
      %v1263 = vunpack.c.l.b16 %v1160
      %v1264 = vunpack.c.l.b16 %v1174
      %v1265 = vunpack.c.l.b16 %v1188
      %v1266 = vunpack.c.l.b16 %v1202
      %v1267 = vunpack.c.l.b16 %v1216
      %v1268 = vunpack.c.l.b16 %v1230
      %v1269 = vunpack.c.l.b16 %v1244
      %v1270 = vpack.c.b16 %v1263, %v1262
      %v1271 = vpack.c.b16 %v1265, %v1264
      %v1272 = vpack.c.b16 %v1267, %v1266
      %v1273 = vpack.c.b16 %v1269, %v1268
      %v1294 = vunpack.c.l.b16 %v1246
      %v1295 = vunpack.c.l.b16 %v1247
      %v1296 = vunpack.c.l.b16 %v1248
      %v1297 = vunpack.c.l.b16 %v1249
      %v1298 = vunpack.c.l.b16 %v1250
      %v1299 = vunpack.c.l.b16 %v1251
      %v1300 = vunpack.c.l.b16 %v1252
      %v1301 = vunpack.c.l.b16 %v1253
      %v1302 = vunpack.c.l.b16 %v1254
      %v1303 = vunpack.c.l.b16 %v1255
      %v1304 = vunpack.c.l.b16 %v1256
      %v1305 = vunpack.c.l.b16 %v1257
      %v1306 = vunpack.c.l.b16 %v1258
      %v1307 = vunpack.c.l.b16 %v1259
      %v1308 = vunpack.c.l.b16 %v1260
      %v1309 = vunpack.c.l.b16 %v1261
      %v1310 = vpack.c.b16 %v1295, %v1294
      %v1311 = vpack.c.b16 %v1297, %v1296
      %v1312 = vpack.c.b16 %v1299, %v1298
      %v1313 = vpack.c.b16 %v1301, %v1300
      %v1314 = vpack.c.b16 %v1303, %v1302
      %v1315 = vpack.c.b16 %v1305, %v1304
      %v1316 = vpack.c.b16 %v1307, %v1306
      %v1317 = vpack.c.b16 %v1309, %v1308
      %1326 = vmatpush.bf16.msra.mxu0 %v1317
      %1327 = vmatpush.bf16.msra.mxu0 %v1316
      %1328 = vmatpush.bf16.msra.mxu0 %v1315
      %1329 = vmatpush.bf16.msra.mxu0 %v1314
      %1330 = vmatpush.bf16.msra.mxu0 %v1313
      %1331 = vmatpush.bf16.msra.mxu0 %v1312
      %1332 = vmatpush.bf16.msra.mxu0 %v1311
      %1333 = vmatpush.bf16.msra.mxu0 %v1310
      %1334 = vmatmul.bf16.gmra.mxu0 %v1270
      %v1335 = vpop.f32.mrf.mxu0
      %v1336 = vadd.f32 0.0, %v1335
      %v1337 = vpop.f32.mrf.mxu0
      %v1338 = vadd.f32 0.0, %v1337
      %1339 = vmatmul.bf16.gmra.mxu0 %v1271
      %v1340 = vpop.f32.mrf.mxu0
      %v1341 = vadd.f32 0.0, %v1340
      %v1342 = vpop.f32.mrf.mxu0
      %v1343 = vadd.f32 0.0, %v1342
      %1344 = vmatmul.bf16.gmra.mxu0 %v1272
      %v1345 = vpop.f32.mrf.mxu0
      %v1346 = vadd.f32 0.0, %v1345
      %v1347 = vpop.f32.mrf.mxu0
      %v1348 = vadd.f32 0.0, %v1347
      %1349 = vmatmul.bf16.gmra.mxu0 %v1273
      %v1350 = vpop.f32.mrf.mxu0
      %v1351 = vadd.f32 0.0, %v1350
      %v1352 = vpop.f32.mrf.mxu0
      %v1353 = vadd.f32 0.0, %v1352
      %1354 = vdwg.mxu0
      %v1355 = vadd.f32 %v1109, %v1336
      %v1356 = vadd.f32 %v1110, %v1338
      %v1357 = vadd.f32 %v1111, %v1341
      %v1358 = vadd.f32 %v1112, %v1343
      %v1359 = vadd.f32 %v1113, %v1346
      %v1360 = vadd.f32 %v1114, %v1348
      %v1361 = vadd.f32 %v1115, %v1351
      %v1362 = vadd.f32 %v1116, %v1353
      %v1363 = vld [vmem:[%s393] sm:$0xe]
      %v1364 = vld [vmem:[%s393 + $0x8] sm:$0xe]
      %v1365 = vld [vmem:[%s393 + $0x10] sm:$0xe]
      %v1366 = vld [vmem:[%s393 + $0x18] sm:$0xe]
      %v1367 = vld [vmem:[%s393 + $0x20] sm:$0xe]
      %v1368 = vld [vmem:[%s393 + $0x28] sm:$0xe]
      %v1369 = vld [vmem:[%s393 + $0x30] sm:$0xe]
      %v1370 = vld [vmem:[%s393 + $0x38] sm:$0xe]
      %v1387 = vrot.slane %v1363, 5
      %v1388 = vrot.slane %v1387, 4
      %v1389 = vrot.slane %v1118, 5
      %v1390 = vsel %vm832, %v1388, %v1389
      %v1391 = vrot.slane %v1364, 5
      %v1392 = vrot.slane %v1391, 4
      %v1393 = vrot.slane %v1120, 5
      %v1394 = vsel %vm832, %v1392, %v1393
      %v1395 = vrot.slane %v1365, 5
      %v1396 = vrot.slane %v1395, 4
      %v1397 = vrot.slane %v1122, 5
      %v1398 = vsel %vm832, %v1396, %v1397
      %v1399 = vrot.slane %v1366, 5
      %v1400 = vrot.slane %v1399, 4
      %v1401 = vrot.slane %v1124, 5
      %v1402 = vsel %vm832, %v1400, %v1401
      %v1403 = vrot.slane %v1367, 5
      %v1404 = vrot.slane %v1403, 4
      %v1405 = vrot.slane %v1126, 5
      %v1406 = vsel %vm832, %v1404, %v1405
      %v1407 = vrot.slane %v1368, 5
      %v1408 = vrot.slane %v1407, 4
      %v1409 = vrot.slane %v1128, 5
      %v1410 = vsel %vm832, %v1408, %v1409
      %v1411 = vrot.slane %v1369, 5
      %v1412 = vrot.slane %v1411, 4
      %v1413 = vrot.slane %v1130, 5
      %v1414 = vsel %vm832, %v1412, %v1413
      %v1415 = vrot.slane %v1370, 5
      %v1416 = vrot.slane %v1415, 4
      %v1417 = vrot.slane %v1132, 5
      %v1418 = vsel %vm832, %v1416, %v1417
      %s1419 = scalar_lea.vmem %s3, 320
      %v1420 = vld [vmem:[%s1419] sm:$0xf]
      %v1421 = vld [vmem:[%s1419 + $0x4] sm:$0xf]
      %v1422 = vld [vmem:[%s1419 + $0x8] sm:$0xf]
      %v1423 = vld [vmem:[%s1419 + $0xc] sm:$0xf]
      %v1424 = vld [vmem:[%s1419 + $0x10] sm:$0xf]
      %v1425 = vld [vmem:[%s1419 + $0x14] sm:$0xf]
      %v1426 = vld [vmem:[%s1419 + $0x18] sm:$0xf]
      %v1427 = vld [vmem:[%s1419 + $0x1c] sm:$0xf]
      %v1428 = vld [vmem:[%s1419 + $0x20] sm:$0xf]
      %v1429 = vld [vmem:[%s1419 + $0x24] sm:$0xf]
      %v1430 = vld [vmem:[%s1419 + $0x28] sm:$0xf]
      %v1431 = vld [vmem:[%s1419 + $0x2c] sm:$0xf]
      %v1432 = vld [vmem:[%s1419 + $0x30] sm:$0xf]
      %v1433 = vld [vmem:[%s1419 + $0x34] sm:$0xf]
      %v1434 = vld [vmem:[%s1419 + $0x38] sm:$0xf]
      %v1435 = vld [vmem:[%s1419 + $0x3c] sm:$0xf]
      %v1436 = vunpack.c.l.b16 %v1390
      %v1437 = vunpack.c.l.b16 %v1394
      %v1438 = vunpack.c.l.b16 %v1398
      %v1439 = vunpack.c.l.b16 %v1402
      %v1440 = vunpack.c.l.b16 %v1406
      %v1441 = vunpack.c.l.b16 %v1410
      %v1442 = vunpack.c.l.b16 %v1414
      %v1443 = vunpack.c.l.b16 %v1418
      %v1444 = vpack.c.b16 %v1437, %v1436
      %v1445 = vpack.c.b16 %v1439, %v1438
      %v1446 = vpack.c.b16 %v1441, %v1440
      %v1447 = vpack.c.b16 %v1443, %v1442
      %v1468 = vunpack.c.l.b16 %v1420
      %v1469 = vunpack.c.l.b16 %v1421
      %v1470 = vunpack.c.l.b16 %v1422
      %v1471 = vunpack.c.l.b16 %v1423
      %v1472 = vunpack.c.l.b16 %v1424
      %v1473 = vunpack.c.l.b16 %v1425
      %v1474 = vunpack.c.l.b16 %v1426
      %v1475 = vunpack.c.l.b16 %v1427
      %v1476 = vunpack.c.l.b16 %v1428
      %v1477 = vunpack.c.l.b16 %v1429
      %v1478 = vunpack.c.l.b16 %v1430
      %v1479 = vunpack.c.l.b16 %v1431
      %v1480 = vunpack.c.l.b16 %v1432
      %v1481 = vunpack.c.l.b16 %v1433
      %v1482 = vunpack.c.l.b16 %v1434
      %v1483 = vunpack.c.l.b16 %v1435
      %v1484 = vpack.c.b16 %v1469, %v1468
      %v1485 = vpack.c.b16 %v1471, %v1470
      %v1486 = vpack.c.b16 %v1473, %v1472
      %v1487 = vpack.c.b16 %v1475, %v1474
      %v1488 = vpack.c.b16 %v1477, %v1476
      %v1489 = vpack.c.b16 %v1479, %v1478
      %v1490 = vpack.c.b16 %v1481, %v1480
      %v1491 = vpack.c.b16 %v1483, %v1482
      %1500 = vmatpush.bf16.msra.mxu0 %v1491
      %1501 = vmatpush.bf16.msra.mxu0 %v1490
      %1502 = vmatpush.bf16.msra.mxu0 %v1489
      %1503 = vmatpush.bf16.msra.mxu0 %v1488
      %1504 = vmatpush.bf16.msra.mxu0 %v1487
      %1505 = vmatpush.bf16.msra.mxu0 %v1486
      %1506 = vmatpush.bf16.msra.mxu0 %v1485
      %1507 = vmatpush.bf16.msra.mxu0 %v1484
      %1508 = vmatmul.bf16.gmra.mxu0 %v1444
      %v1509 = vpop.f32.mrf.mxu0
      %v1510 = vadd.f32 0.0, %v1509
      %v1511 = vpop.f32.mrf.mxu0
      %v1512 = vadd.f32 0.0, %v1511
      %1513 = vmatmul.bf16.gmra.mxu0 %v1445
      %v1514 = vpop.f32.mrf.mxu0
      %v1515 = vadd.f32 0.0, %v1514
      %v1516 = vpop.f32.mrf.mxu0
      %v1517 = vadd.f32 0.0, %v1516
      %1518 = vmatmul.bf16.gmra.mxu0 %v1446
      %v1519 = vpop.f32.mrf.mxu0
      %v1520 = vadd.f32 0.0, %v1519
      %v1521 = vpop.f32.mrf.mxu0
      %v1522 = vadd.f32 0.0, %v1521
      %1523 = vmatmul.bf16.gmra.mxu0 %v1447
      %v1524 = vpop.f32.mrf.mxu0
      %v1525 = vadd.f32 0.0, %v1524
      %v1526 = vpop.f32.mrf.mxu0
      %v1527 = vadd.f32 0.0, %v1526
      %1528 = vdwg.mxu0
      %v1529 = vadd.f32 %v1355, %v1510
      %v1530 = vadd.f32 %v1356, %v1512
      %v1531 = vadd.f32 %v1357, %v1515
      %v1532 = vadd.f32 %v1358, %v1517
      %v1533 = vadd.f32 %v1359, %v1520
      %v1534 = vadd.f32 %v1360, %v1522
      %v1535 = vadd.f32 %v1361, %v1525
      %v1536 = vadd.f32 %v1362, %v1527
      %s1537 = scalar_lea.vmem [#allocation2], 16
      %v1538 = vld [vmem:[%s1537] sm:$0xf]
      %v1539 = vld [vmem:[%s1537 + $0x8] sm:$0xf]
      %v1540 = vld [vmem:[%s1537 + $0x10] sm:$0xf]
      %v1541 = vld [vmem:[%s1537 + $0x18] sm:$0xf]
      %v1542 = vld [vmem:[%s1537 + $0x20] sm:$0xf]
      %v1543 = vld [vmem:[%s1537 + $0x28] sm:$0xf]
      %v1544 = vld [vmem:[%s1537 + $0x30] sm:$0xf]
      %v1545 = vld [vmem:[%s1537 + $0x38] sm:$0xf]
      %s1546 = scalar_lea.vmem %s3, 384
      %v1547 = vld [vmem:[%s1546] sm:$0xf]
      %v1548 = vld [vmem:[%s1546 + $0x4] sm:$0xf]
      %v1549 = vld [vmem:[%s1546 + $0x8] sm:$0xf]
      %v1550 = vld [vmem:[%s1546 + $0xc] sm:$0xf]
      %v1551 = vld [vmem:[%s1546 + $0x10] sm:$0xf]
      %v1552 = vld [vmem:[%s1546 + $0x14] sm:$0xf]
      %v1553 = vld [vmem:[%s1546 + $0x18] sm:$0xf]
      %v1554 = vld [vmem:[%s1546 + $0x1c] sm:$0xf]
      %v1555 = vld [vmem:[%s1546 + $0x20] sm:$0xf]
      %v1556 = vld [vmem:[%s1546 + $0x24] sm:$0xf]
      %v1557 = vld [vmem:[%s1546 + $0x28] sm:$0xf]
      %v1558 = vld [vmem:[%s1546 + $0x2c] sm:$0xf]
      %v1559 = vld [vmem:[%s1546 + $0x30] sm:$0xf]
      %v1560 = vld [vmem:[%s1546 + $0x34] sm:$0xf]
      %v1561 = vld [vmem:[%s1546 + $0x38] sm:$0xf]
      %v1562 = vld [vmem:[%s1546 + $0x3c] sm:$0xf]
      %v1571 = vunpack.c.l.b16 %v1538
      %v1572 = vunpack.c.l.b16 %v1539
      %v1573 = vunpack.c.l.b16 %v1540
      %v1574 = vunpack.c.l.b16 %v1541
      %v1575 = vunpack.c.l.b16 %v1542
      %v1576 = vunpack.c.l.b16 %v1543
      %v1577 = vunpack.c.l.b16 %v1544
      %v1578 = vunpack.c.l.b16 %v1545
      %v1579 = vpack.c.b16 %v1572, %v1571
      %v1580 = vpack.c.b16 %v1574, %v1573
      %v1581 = vpack.c.b16 %v1576, %v1575
      %v1582 = vpack.c.b16 %v1578, %v1577
      %v1603 = vunpack.c.l.b16 %v1547
      %v1604 = vunpack.c.l.b16 %v1548
      %v1605 = vunpack.c.l.b16 %v1549
      %v1606 = vunpack.c.l.b16 %v1550
      %v1607 = vunpack.c.l.b16 %v1551
      %v1608 = vunpack.c.l.b16 %v1552
      %v1609 = vunpack.c.l.b16 %v1553
      %v1610 = vunpack.c.l.b16 %v1554
      %v1611 = vunpack.c.l.b16 %v1555
      %v1612 = vunpack.c.l.b16 %v1556
      %v1613 = vunpack.c.l.b16 %v1557
      %v1614 = vunpack.c.l.b16 %v1558
      %v1615 = vunpack.c.l.b16 %v1559
      %v1616 = vunpack.c.l.b16 %v1560
      %v1617 = vunpack.c.l.b16 %v1561
      %v1618 = vunpack.c.l.b16 %v1562
      %v1619 = vpack.c.b16 %v1604, %v1603
      %v1620 = vpack.c.b16 %v1606, %v1605
      %v1621 = vpack.c.b16 %v1608, %v1607
      %v1622 = vpack.c.b16 %v1610, %v1609
      %v1623 = vpack.c.b16 %v1612, %v1611
      %v1624 = vpack.c.b16 %v1614, %v1613
      %v1625 = vpack.c.b16 %v1616, %v1615
      %v1626 = vpack.c.b16 %v1618, %v1617
      %1635 = vmatpush.bf16.msra.mxu0 %v1626
      %1636 = vmatpush.bf16.msra.mxu0 %v1625
      %1637 = vmatpush.bf16.msra.mxu0 %v1624
      %1638 = vmatpush.bf16.msra.mxu0 %v1623
      %1639 = vmatpush.bf16.msra.mxu0 %v1622
      %1640 = vmatpush.bf16.msra.mxu0 %v1621
      %1641 = vmatpush.bf16.msra.mxu0 %v1620
      %1642 = vmatpush.bf16.msra.mxu0 %v1619
      %1643 = vmatmul.bf16.gmra.mxu0 %v1579
      %v1644 = vpop.f32.mrf.mxu0
      %v1645 = vadd.f32 0.0, %v1644
      %v1646 = vpop.f32.mrf.mxu0
      %v1647 = vadd.f32 0.0, %v1646
      %1648 = vmatmul.bf16.gmra.mxu0 %v1580
      %v1649 = vpop.f32.mrf.mxu0
      %v1650 = vadd.f32 0.0, %v1649
      %v1651 = vpop.f32.mrf.mxu0
      %v1652 = vadd.f32 0.0, %v1651
      %1653 = vmatmul.bf16.gmra.mxu0 %v1581
      %v1654 = vpop.f32.mrf.mxu0
      %v1655 = vadd.f32 0.0, %v1654
      %v1656 = vpop.f32.mrf.mxu0
      %v1657 = vadd.f32 0.0, %v1656
      %1658 = vmatmul.bf16.gmra.mxu0 %v1582
      %v1659 = vpop.f32.mrf.mxu0
      %v1660 = vadd.f32 0.0, %v1659
      %v1661 = vpop.f32.mrf.mxu0
      %v1662 = vadd.f32 0.0, %v1661
      %1663 = vdwg.mxu0
      %v1664 = vadd.f32 %v1529, %v1645
      %v1665 = vadd.f32 %v1530, %v1647
      %v1666 = vadd.f32 %v1531, %v1650
      %v1667 = vadd.f32 %v1532, %v1652
      %v1668 = vadd.f32 %v1533, %v1655
      %v1669 = vadd.f32 %v1534, %v1657
      %v1670 = vadd.f32 %v1535, %v1660
      %v1671 = vadd.f32 %v1536, %v1662
      %v1672 = vld [vmem:[%s1537] sm:$0xf]
      %v1673 = vld [vmem:[%s1537 + $0x4] sm:$0x1]
      %v1674 = vld [vmem:[%s1537 + $0x8] sm:$0xf]
      %v1675 = vld [vmem:[%s1537 + $0xc] sm:$0x1]
      %v1676 = vld [vmem:[%s1537 + $0x10] sm:$0xf]
      %v1677 = vld [vmem:[%s1537 + $0x14] sm:$0x1]
      %v1678 = vld [vmem:[%s1537 + $0x18] sm:$0xf]
      %v1679 = vld [vmem:[%s1537 + $0x1c] sm:$0x1]
      %v1680 = vld [vmem:[%s1537 + $0x20] sm:$0xf]
      %v1681 = vld [vmem:[%s1537 + $0x24] sm:$0x1]
      %v1682 = vld [vmem:[%s1537 + $0x28] sm:$0xf]
      %v1683 = vld [vmem:[%s1537 + $0x2c] sm:$0x1]
      %v1684 = vld [vmem:[%s1537 + $0x30] sm:$0xf]
      %v1685 = vld [vmem:[%s1537 + $0x34] sm:$0x1]
      %v1686 = vld [vmem:[%s1537 + $0x38] sm:$0xf]
      %v1687 = vld [vmem:[%s1537 + $0x3c] sm:$0x1]
      %v1689 = vshrl.u32 %v1672, 16
      %v1691 = vrot.slane %v1689, 4
      %v1692 = vshll.u32 %v1672, 16
      %v1694 = vrot.slane %v1692, 5
      %v1695 = vor.u32 %v1691, %v1694
      %v1696 = vrot.slane %v1695, 4
      %v1698 = vshll.u32 %v1673, 16
      %v1700 = vrot.slane %v1698, 5
      %v1701 = vsel %vm482, %v1696, %v1700
      %v1703 = vshrl.u32 %v1674, 16
      %v1705 = vrot.slane %v1703, 4
      %v1706 = vshll.u32 %v1674, 16
      %v1708 = vrot.slane %v1706, 5
      %v1709 = vor.u32 %v1705, %v1708
      %v1710 = vrot.slane %v1709, 4
      %v1712 = vshll.u32 %v1675, 16
      %v1714 = vrot.slane %v1712, 5
      %v1715 = vsel %vm482, %v1710, %v1714
      %v1717 = vshrl.u32 %v1676, 16
      %v1719 = vrot.slane %v1717, 4
      %v1720 = vshll.u32 %v1676, 16
      %v1722 = vrot.slane %v1720, 5
      %v1723 = vor.u32 %v1719, %v1722
      %v1724 = vrot.slane %v1723, 4
      %v1726 = vshll.u32 %v1677, 16
      %v1728 = vrot.slane %v1726, 5
      %v1729 = vsel %vm482, %v1724, %v1728
      %v1731 = vshrl.u32 %v1678, 16
      %v1733 = vrot.slane %v1731, 4
      %v1734 = vshll.u32 %v1678, 16
      %v1736 = vrot.slane %v1734, 5
      %v1737 = vor.u32 %v1733, %v1736
      %v1738 = vrot.slane %v1737, 4
      %v1740 = vshll.u32 %v1679, 16
      %v1742 = vrot.slane %v1740, 5
      %v1743 = vsel %vm482, %v1738, %v1742
      %v1745 = vshrl.u32 %v1680, 16
      %v1747 = vrot.slane %v1745, 4
      %v1748 = vshll.u32 %v1680, 16
      %v1750 = vrot.slane %v1748, 5
      %v1751 = vor.u32 %v1747, %v1750
      %v1752 = vrot.slane %v1751, 4
      %v1754 = vshll.u32 %v1681, 16
      %v1756 = vrot.slane %v1754, 5
      %v1757 = vsel %vm482, %v1752, %v1756
      %v1759 = vshrl.u32 %v1682, 16
      %v1761 = vrot.slane %v1759, 4
      %v1762 = vshll.u32 %v1682, 16
      %v1764 = vrot.slane %v1762, 5
      %v1765 = vor.u32 %v1761, %v1764
      %v1766 = vrot.slane %v1765, 4
      %v1768 = vshll.u32 %v1683, 16
      %v1770 = vrot.slane %v1768, 5
      %v1771 = vsel %vm482, %v1766, %v1770
      %v1773 = vshrl.u32 %v1684, 16
      %v1775 = vrot.slane %v1773, 4
      %v1776 = vshll.u32 %v1684, 16
      %v1778 = vrot.slane %v1776, 5
      %v1779 = vor.u32 %v1775, %v1778
      %v1780 = vrot.slane %v1779, 4
      %v1782 = vshll.u32 %v1685, 16
      %v1784 = vrot.slane %v1782, 5
      %v1785 = vsel %vm482, %v1780, %v1784
      %v1787 = vshrl.u32 %v1686, 16
      %v1789 = vrot.slane %v1787, 4
      %v1790 = vshll.u32 %v1686, 16
      %v1792 = vrot.slane %v1790, 5
      %v1793 = vor.u32 %v1789, %v1792
      %v1794 = vrot.slane %v1793, 4
      %v1796 = vshll.u32 %v1687, 16
      %v1798 = vrot.slane %v1796, 5
      %v1799 = vsel %vm482, %v1794, %v1798
      %s1800 = scalar_lea.vmem %s3, 448
      %v1801 = vld [vmem:[%s1800] sm:$0xf]
      %v1802 = vld [vmem:[%s1800 + $0x4] sm:$0xf]
      %v1803 = vld [vmem:[%s1800 + $0x8] sm:$0xf]
      %v1804 = vld [vmem:[%s1800 + $0xc] sm:$0xf]
      %v1805 = vld [vmem:[%s1800 + $0x10] sm:$0xf]
      %v1806 = vld [vmem:[%s1800 + $0x14] sm:$0xf]
      %v1807 = vld [vmem:[%s1800 + $0x18] sm:$0xf]
      %v1808 = vld [vmem:[%s1800 + $0x1c] sm:$0xf]
      %v1809 = vld [vmem:[%s1800 + $0x20] sm:$0xf]
      %v1810 = vld [vmem:[%s1800 + $0x24] sm:$0xf]
      %v1811 = vld [vmem:[%s1800 + $0x28] sm:$0xf]
      %v1812 = vld [vmem:[%s1800 + $0x2c] sm:$0xf]
      %v1813 = vld [vmem:[%s1800 + $0x30] sm:$0xf]
      %v1814 = vld [vmem:[%s1800 + $0x34] sm:$0xf]
      %v1815 = vld [vmem:[%s1800 + $0x38] sm:$0xf]
      %v1816 = vld [vmem:[%s1800 + $0x3c] sm:$0xf]
      %v1817 = vunpack.c.l.b16 %v1701
      %v1818 = vunpack.c.l.b16 %v1715
      %v1819 = vunpack.c.l.b16 %v1729
      %v1820 = vunpack.c.l.b16 %v1743
      %v1821 = vunpack.c.l.b16 %v1757
      %v1822 = vunpack.c.l.b16 %v1771
      %v1823 = vunpack.c.l.b16 %v1785
      %v1824 = vunpack.c.l.b16 %v1799
      %v1825 = vpack.c.b16 %v1818, %v1817
      %v1826 = vpack.c.b16 %v1820, %v1819
      %v1827 = vpack.c.b16 %v1822, %v1821
      %v1828 = vpack.c.b16 %v1824, %v1823
      %v1849 = vunpack.c.l.b16 %v1801
      %v1850 = vunpack.c.l.b16 %v1802
      %v1851 = vunpack.c.l.b16 %v1803
      %v1852 = vunpack.c.l.b16 %v1804
      %v1853 = vunpack.c.l.b16 %v1805
      %v1854 = vunpack.c.l.b16 %v1806
      %v1855 = vunpack.c.l.b16 %v1807
      %v1856 = vunpack.c.l.b16 %v1808
      %v1857 = vunpack.c.l.b16 %v1809
      %v1858 = vunpack.c.l.b16 %v1810
      %v1859 = vunpack.c.l.b16 %v1811
      %v1860 = vunpack.c.l.b16 %v1812
      %v1861 = vunpack.c.l.b16 %v1813
      %v1862 = vunpack.c.l.b16 %v1814
      %v1863 = vunpack.c.l.b16 %v1815
      %v1864 = vunpack.c.l.b16 %v1816
      %v1865 = vpack.c.b16 %v1850, %v1849
      %v1866 = vpack.c.b16 %v1852, %v1851
      %v1867 = vpack.c.b16 %v1854, %v1853
      %v1868 = vpack.c.b16 %v1856, %v1855
      %v1869 = vpack.c.b16 %v1858, %v1857
      %v1870 = vpack.c.b16 %v1860, %v1859
      %v1871 = vpack.c.b16 %v1862, %v1861
      %v1872 = vpack.c.b16 %v1864, %v1863
      %1881 = vmatpush.bf16.msra.mxu0 %v1872
      %1882 = vmatpush.bf16.msra.mxu0 %v1871
      %1883 = vmatpush.bf16.msra.mxu0 %v1870
      %1884 = vmatpush.bf16.msra.mxu0 %v1869
      %1885 = vmatpush.bf16.msra.mxu0 %v1868
      %1886 = vmatpush.bf16.msra.mxu0 %v1867
      %1887 = vmatpush.bf16.msra.mxu0 %v1866
      %1888 = vmatpush.bf16.msra.mxu0 %v1865
      %1889 = vmatmul.bf16.gmra.mxu0 %v1825
      %v1890 = vpop.f32.mrf.mxu0
      %v1891 = vadd.f32 0.0, %v1890
      %v1892 = vpop.f32.mrf.mxu0
      %v1893 = vadd.f32 0.0, %v1892
      %1894 = vmatmul.bf16.gmra.mxu0 %v1826
      %v1895 = vpop.f32.mrf.mxu0
      %v1896 = vadd.f32 0.0, %v1895
      %v1897 = vpop.f32.mrf.mxu0
      %v1898 = vadd.f32 0.0, %v1897
      %1899 = vmatmul.bf16.gmra.mxu0 %v1827
      %v1900 = vpop.f32.mrf.mxu0
      %v1901 = vadd.f32 0.0, %v1900
      %v1902 = vpop.f32.mrf.mxu0
      %v1903 = vadd.f32 0.0, %v1902
      %1904 = vmatmul.bf16.gmra.mxu0 %v1828
      %v1905 = vpop.f32.mrf.mxu0
      %v1906 = vadd.f32 0.0, %v1905
      %v1907 = vpop.f32.mrf.mxu0
      %v1908 = vadd.f32 0.0, %v1907
      %1909 = vdwg.mxu0
      %v1910 = vadd.f32 %v1664, %v1891
      %v1911 = vadd.f32 %v1665, %v1893
      %v1912 = vadd.f32 %v1666, %v1896
      %v1913 = vadd.f32 %v1667, %v1898
      %v1914 = vadd.f32 %v1668, %v1901
      %v1915 = vadd.f32 %v1669, %v1903
      %v1916 = vadd.f32 %v1670, %v1906
      %v1917 = vadd.f32 %v1671, %v1908
      %v1918 = vld [vmem:[%s1537] sm:$0xe]
      %v1919 = vld [vmem:[%s1537 + $0x8] sm:$0xe]
      %v1920 = vld [vmem:[%s1537 + $0x10] sm:$0xe]
      %v1921 = vld [vmem:[%s1537 + $0x18] sm:$0xe]
      %v1922 = vld [vmem:[%s1537 + $0x20] sm:$0xe]
      %v1923 = vld [vmem:[%s1537 + $0x28] sm:$0xe]
      %v1924 = vld [vmem:[%s1537 + $0x30] sm:$0xe]
      %v1925 = vld [vmem:[%s1537 + $0x38] sm:$0xe]
      %v1942 = vrot.slane %v1918, 5
      %v1943 = vrot.slane %v1942, 4
      %v1944 = vrot.slane %v1673, 5
      %v1945 = vsel %vm832, %v1943, %v1944
      %v1946 = vrot.slane %v1919, 5
      %v1947 = vrot.slane %v1946, 4
      %v1948 = vrot.slane %v1675, 5
      %v1949 = vsel %vm832, %v1947, %v1948
      %v1950 = vrot.slane %v1920, 5
      %v1951 = vrot.slane %v1950, 4
      %v1952 = vrot.slane %v1677, 5
      %v1953 = vsel %vm832, %v1951, %v1952
      %v1954 = vrot.slane %v1921, 5
      %v1955 = vrot.slane %v1954, 4
      %v1956 = vrot.slane %v1679, 5
      %v1957 = vsel %vm832, %v1955, %v1956
      %v1958 = vrot.slane %v1922, 5
      %v1959 = vrot.slane %v1958, 4
      %v1960 = vrot.slane %v1681, 5
      %v1961 = vsel %vm832, %v1959, %v1960
      %v1962 = vrot.slane %v1923, 5
      %v1963 = vrot.slane %v1962, 4
      %v1964 = vrot.slane %v1683, 5
      %v1965 = vsel %vm832, %v1963, %v1964
      %v1966 = vrot.slane %v1924, 5
      %v1967 = vrot.slane %v1966, 4
      %v1968 = vrot.slane %v1685, 5
      %v1969 = vsel %vm832, %v1967, %v1968
      %v1970 = vrot.slane %v1925, 5
      %v1971 = vrot.slane %v1970, 4
      %v1972 = vrot.slane %v1687, 5
      %v1973 = vsel %vm832, %v1971, %v1972
      %s1974 = scalar_lea.vmem %s3, 512
      %v1975 = vld [vmem:[%s1974] sm:$0xf]
      %v1976 = vld [vmem:[%s1974 + $0x4] sm:$0xf]
      %v1977 = vld [vmem:[%s1974 + $0x8] sm:$0xf]
      %v1978 = vld [vmem:[%s1974 + $0xc] sm:$0xf]
      %v1979 = vld [vmem:[%s1974 + $0x10] sm:$0xf]
      %v1980 = vld [vmem:[%s1974 + $0x14] sm:$0xf]
      %v1981 = vld [vmem:[%s1974 + $0x18] sm:$0xf]
      %v1982 = vld [vmem:[%s1974 + $0x1c] sm:$0xf]
      %v1983 = vld [vmem:[%s1974 + $0x20] sm:$0xf]
      %v1984 = vld [vmem:[%s1974 + $0x24] sm:$0xf]
      %v1985 = vld [vmem:[%s1974 + $0x28] sm:$0xf]
      %v1986 = vld [vmem:[%s1974 + $0x2c] sm:$0xf]
      %v1987 = vld [vmem:[%s1974 + $0x30] sm:$0xf]
      %v1988 = vld [vmem:[%s1974 + $0x34] sm:$0xf]
      %v1989 = vld [vmem:[%s1974 + $0x38] sm:$0xf]
      %v1990 = vld [vmem:[%s1974 + $0x3c] sm:$0xf]
      %v1991 = vunpack.c.l.b16 %v1945
      %v1992 = vunpack.c.l.b16 %v1949
      %v1993 = vunpack.c.l.b16 %v1953
      %v1994 = vunpack.c.l.b16 %v1957
      %v1995 = vunpack.c.l.b16 %v1961
      %v1996 = vunpack.c.l.b16 %v1965
      %v1997 = vunpack.c.l.b16 %v1969
      %v1998 = vunpack.c.l.b16 %v1973
      %v1999 = vpack.c.b16 %v1992, %v1991
      %v2000 = vpack.c.b16 %v1994, %v1993
      %v2001 = vpack.c.b16 %v1996, %v1995
      %v2002 = vpack.c.b16 %v1998, %v1997
      %v2023 = vunpack.c.l.b16 %v1975
      %v2024 = vunpack.c.l.b16 %v1976
      %v2025 = vunpack.c.l.b16 %v1977
      %v2026 = vunpack.c.l.b16 %v1978
      %v2027 = vunpack.c.l.b16 %v1979
      %v2028 = vunpack.c.l.b16 %v1980
      %v2029 = vunpack.c.l.b16 %v1981
      %v2030 = vunpack.c.l.b16 %v1982
      %v2031 = vunpack.c.l.b16 %v1983
      %v2032 = vunpack.c.l.b16 %v1984
      %v2033 = vunpack.c.l.b16 %v1985
      %v2034 = vunpack.c.l.b16 %v1986
      %v2035 = vunpack.c.l.b16 %v1987
      %v2036 = vunpack.c.l.b16 %v1988
      %v2037 = vunpack.c.l.b16 %v1989
      %v2038 = vunpack.c.l.b16 %v1990
      %v2039 = vpack.c.b16 %v2024, %v2023
      %v2040 = vpack.c.b16 %v2026, %v2025
      %v2041 = vpack.c.b16 %v2028, %v2027
      %v2042 = vpack.c.b16 %v2030, %v2029
      %v2043 = vpack.c.b16 %v2032, %v2031
      %v2044 = vpack.c.b16 %v2034, %v2033
      %v2045 = vpack.c.b16 %v2036, %v2035
      %v2046 = vpack.c.b16 %v2038, %v2037
      %2055 = vmatpush.bf16.msra.mxu0 %v2046
      %2056 = vmatpush.bf16.msra.mxu0 %v2045
      %2057 = vmatpush.bf16.msra.mxu0 %v2044
      %2058 = vmatpush.bf16.msra.mxu0 %v2043
      %2059 = vmatpush.bf16.msra.mxu0 %v2042
      %2060 = vmatpush.bf16.msra.mxu0 %v2041
      %2061 = vmatpush.bf16.msra.mxu0 %v2040
      %2062 = vmatpush.bf16.msra.mxu0 %v2039
      %2063 = vmatmul.bf16.gmra.mxu0 %v1999
      %v2064 = vpop.f32.mrf.mxu0
      %v2065 = vadd.f32 0.0, %v2064
      %v2066 = vpop.f32.mrf.mxu0
      %v2067 = vadd.f32 0.0, %v2066
      %2068 = vmatmul.bf16.gmra.mxu0 %v2000
      %v2069 = vpop.f32.mrf.mxu0
      %v2070 = vadd.f32 0.0, %v2069
      %v2071 = vpop.f32.mrf.mxu0
      %v2072 = vadd.f32 0.0, %v2071
      %2073 = vmatmul.bf16.gmra.mxu0 %v2001
      %v2074 = vpop.f32.mrf.mxu0
      %v2075 = vadd.f32 0.0, %v2074
      %v2076 = vpop.f32.mrf.mxu0
      %v2077 = vadd.f32 0.0, %v2076
      %2078 = vmatmul.bf16.gmra.mxu0 %v2002
      %v2079 = vpop.f32.mrf.mxu0
      %v2080 = vadd.f32 0.0, %v2079
      %v2081 = vpop.f32.mrf.mxu0
      %v2082 = vadd.f32 0.0, %v2081
      %2083 = vdwg.mxu0
      %v2084 = vadd.f32 %v1910, %v2065
      %v2085 = vadd.f32 %v1911, %v2067
      %v2086 = vadd.f32 %v1912, %v2070
      %v2087 = vadd.f32 %v1913, %v2072
      %v2088 = vadd.f32 %v1914, %v2075
      %v2089 = vadd.f32 %v1915, %v2077
      %v2090 = vadd.f32 %v1916, %v2080
      %v2091 = vadd.f32 %v1917, %v2082
      %v2092 = vpack.c.bf16 %v2084, %v2084
      %v2093 = vpack.c.bf16 %v2085, %v2085
      %v2094 = vpack.c.bf16 %v2086, %v2086
      %v2095 = vpack.c.bf16 %v2087, %v2087
      %v2096 = vpack.c.bf16 %v2088, %v2088
      %v2097 = vpack.c.bf16 %v2089, %v2089
      %v2098 = vpack.c.bf16 %v2090, %v2090
      %v2099 = vpack.c.bf16 %v2091, %v2091
      %2100 = vst [vmem:[%s231] sm:$0xf] %v2092
      %2101 = vst [vmem:[%s231 + $0x4] sm:$0xf] %v2093
      %2102 = vst [vmem:[%s231 + $0x8] sm:$0xf] %v2094
      %2103 = vst [vmem:[%s231 + $0xc] sm:$0xf] %v2095
      %2104 = vst [vmem:[%s231 + $0x10] sm:$0xf] %v2096
      %2105 = vst [vmem:[%s231 + $0x14] sm:$0xf] %v2097
      %2106 = vst [vmem:[%s231 + $0x18] sm:$0xf] %v2098
      %2107 = vst [vmem:[%s231 + $0x1c] sm:$0xf] %v2099
      %v2108 = vadd.f32 %v2084, %v2085
      %v2109 = vadd.f32 %v2108, %v2086
      %v2110 = vadd.f32 %v2109, %v2087
      %v2111 = vadd.f32 %v2110, %v2088
      %v2112 = vadd.f32 %v2111, %v2089
      %v2113 = vadd.f32 %v2112, %v2090
      %v2114 = vadd.f32 %v2113, %v2091
      %v2115 = vrot.slane %v2114, 4
      %v2116 = vadd.f32 %v2114, %v2115
      %v2117 = vrot.slane %v2116, 2
      %v2118 = vadd.f32 %v2116, %v2117
      %v2119 = vrot.slane %v2118, 1
      %v2120 = vadd.f32 %v2118, %v2119
      %v2121 = vmul.f32 %v2084, %v2084
      %v2122 = vmul.f32 %v2085, %v2085
      %v2123 = vmul.f32 %v2086, %v2086
      %v2124 = vmul.f32 %v2087, %v2087
      %v2125 = vmul.f32 %v2088, %v2088
      %v2126 = vmul.f32 %v2089, %v2089
      %v2127 = vmul.f32 %v2090, %v2090
      %v2128 = vmul.f32 %v2091, %v2091
      %v2129 = vadd.f32 %v2121, %v2122
      %v2130 = vadd.f32 %v2129, %v2123
      %v2131 = vadd.f32 %v2130, %v2124
      %v2132 = vadd.f32 %v2131, %v2125
      %v2133 = vadd.f32 %v2132, %v2126
      %v2134 = vadd.f32 %v2133, %v2127
      %v2135 = vadd.f32 %v2134, %v2128
      %v2136 = vrot.slane %v2135, 4
      %v2137 = vadd.f32 %v2135, %v2136
      %v2138 = vrot.slane %v2137, 2
      %v2139 = vadd.f32 %v2137, %v2138
      %v2140 = vrot.slane %v2139, 1
      %v2141 = vadd.f32 %v2139, %v2140
      %vm2142 = vcmask 1040384
      %v2143 = vsel %vm2142, %v2120, %v2141
      %2144 = vst [vmem:[%s235] sm:$0x3] %v2143
      %p2145 = scmp.lt.s32.totalorder %s17, 1
      %s2146 = scalar_select %p2145, %s17, 1
      %s2147 = smul.addr %s2146, 8
      %s2148 = smul.addr %s2147, 4
      %s2149 = scalar_lea.vmem %s4, %s2148
      %p2150 = scmp.lt.s32.totalorder %s17, 1
      %s2151 = scalar_select %p2150, %s17, 1
      %s2152 = smul.addr %s2151, 2
      %s2153 = scalar_lea.vmem %s5, %s2152
      // Predicated region
      $region37: #{down_block_forward.4} parent=35 // pred_check
        %p2154 = pneg %p124
      $region38: #{down_block_forward.4} parent=35 // pred_check_branch
        %2156 = sbr.rel (%p2154) target = $region40
      $region39: #{down_block_forward.4} parent=35 // pred_region
        _
      $region40: #{down_block_forward.4} parent=35 // pred_fallthru
        _
      // Predicated region
      $region41: #{down_block_forward.4} parent=35 // pred_check
        %p2157 = pneg %p150
      $region42: #{down_block_forward.4} parent=35 // pred_check_branch
        %2159 = sbr.rel (%p2157) target = $region44
      $region43: #{down_block_forward.4} parent=35 // pred_region
        _
      $region44: #{down_block_forward.4} parent=35 // pred_fallthru
        _
    $region36: #{down_block_forward.4} parent=5 // pred_fallthru
      _
    %p2160 = scmp.le.s32.totalorder 2, %s12
    // Predicated region
    $region45: #{down_block_forward.4} parent=5 // pred_check
      %p2161 = pneg %p2160
    $region46: #{down_block_forward.4} parent=5 // pred_check_branch
      %2163 = sbr.rel (%p2161) target = $region48
    $region47: #{down_block_forward.4} parent=5 // pred_region
      %s2164 = ssub.s32 %s12, 2
      // Predicated region
      $region49: #{down_block_forward.4} parent=47 // pred_check
        %p2165 = pneg %p130
      $region50: #{down_block_forward.4} parent=47 // pred_check_branch
        %2167 = sbr.rel (%p2165) target = $region52
      $region51: #{down_block_forward.4} parent=47 // pred_region
        %p2168 = scmp.lt.s32.totalorder %s18, 1
        %s2169 = scalar_select %p2168, %s18, 1
        %s2170 = smul.addr %s2169, 8
        %s2171 = smul.addr %s2170, 4
        %s2172 = scalar_lea.vmem %s4, %s2171
      $region52: #{down_block_forward.4} parent=47 // pred_fallthru
        _
      // Predicated region
      $region53: #{down_block_forward.4} parent=47 // pred_check
        %p2173 = pneg %p156
      $region54: #{down_block_forward.4} parent=47 // pred_check_branch
        %2175 = sbr.rel (%p2173) target = $region56
      $region55: #{down_block_forward.4} parent=47 // pred_region
        %p2176 = scmp.lt.s32.totalorder %s18, 1
        %s2177 = scalar_select %p2176, %s18, 1
        %s2178 = smul.addr %s2177, 2
        %s2179 = scalar_lea.vmem %s5, %s2178
      $region56: #{down_block_forward.4} parent=47 // pred_fallthru
        _
    $region48: #{down_block_forward.4} parent=5 // pred_fallthru
      _
  $region6: #{down_block_forward.4} parent=0 // loop_footer
    %s16 = sadd.s32 1, %s12
  $region7: #{down_block_forward.4} parent=0 // loop_footer_branch
    %11 = sbr.rel target = $region3
  $region8: #{down_block_forward.4} parent=0 // loop_exit
    _

</llo_original>
